<compile_context>
chip_gen: v5e
topology: v5e:2x2
jax: 0.10.0
libtpu: 0.0.40
codegen_flags: <defaults>
</compile_context>

<pallas_src>
import functools
import math

import jax
import jax.numpy as jnp
from jax import lax
from jax.experimental import pallas as pl
from jax.experimental.pallas import tpu as pltpu

_VMEM_LIMIT = 48 * 1024 * 1024  # scoped VMEM ceiling; safe headroom on v5e/v6e/v7x


def _round_up(x, m):
    return ((x + m - 1) // m) * m


# ---------------------------------------------------------------------------
# Kernels
# ---------------------------------------------------------------------------

def _dual_pw_conv_kernel(x_ref, w1_ref, s1_ref, b1_ref, w2_ref, s2_ref, b2_ref,
                         o1_ref, o2_ref):
    """cv1 & cv2 share the input: two fused 1x1 conv + folded BN + SiLU per row tile."""
    x = x_ref[...]
    y1 = jnp.dot(x, w1_ref[...], preferred_element_type=jnp.float32)
    y1 = y1 * s1_ref[...] + b1_ref[...]
    o1_ref[...] = (y1 * jax.nn.sigmoid(y1)).astype(o1_ref.dtype)
    y2 = jnp.dot(x, w2_ref[...], preferred_element_type=jnp.float32)
    y2 = y2 * s2_ref[...] + b2_ref[...]
    o2_ref[...] = (y2 * jax.nn.sigmoid(y2)).astype(o2_ref.dtype)


def _concat_pw_conv_kernel(a_ref, b_ref, wa_ref, wb_ref, s_ref, bi_ref, o_ref):
    """silu(BN(conv1x1(concat([a, b], channel)))) without materializing the concat."""
    y = jnp.dot(a_ref[...], wa_ref[...], preferred_element_type=jnp.float32)
    y = y + jnp.dot(b_ref[...], wb_ref[...], preferred_element_type=jnp.float32)
    y = y * s_ref[...] + bi_ref[...]
    o_ref[...] = (y * jax.nn.sigmoid(y)).astype(o_ref.dtype)


def _bottleneck_kernel(xp_ref, w1_ref, s1_ref, b1_ref, w9_ref, s2_ref, b2_ref,
                       o_ref, t_ref, *, W, M, TM, HALO, add):
    """Fused Bottleneck on one pixel-row tile of one image.

    xp_ref : (rows, Cin)       flattened NHWC image, zero-padded with W+1 rows in front
                               (whole padded image resident in VMEM across row tiles).
    w1_ref : (Cin, Cmid)       bottleneck cv1 (1x1) weight.
    w9_ref : (9, Cmid, Cout)   bottleneck cv2 (3x3) taps in (ky, kx) row-major order.
    o_ref  : (TM, Cout)        output row tile.
    t_ref  : (HALO, Cmid) f32  scratch: silu(bn1(conv1x1(x))) on the haloed window.
    """
    P = W + 1
    r = pl.program_id(1)
    start = pl.multiple_of(r * TM, 8)

    # --- fused 1x1 conv + BN + SiLU on the haloed pixel-row window (never hits HBM) ---
    xh = xp_ref[pl.ds(start, HALO), :]
    t = jnp.dot(xh, w1_ref[...], preferred_element_type=jnp.float32)
    t = t * s1_ref[...] + b1_ref[...]
    t = t * jax.nn.sigmoid(t)
    # rows whose source pixel lies outside the image are the 3x3 conv's zero padding
    gpix = start - P + lax.broadcasted_iota(jnp.int32, (HALO, 1), 0)
    t = jnp.where((gpix >= 0) & (gpix < M), t, 0.0)
    t_ref[...] = t

    # --- 3x3 conv as 9 row-shifted matmuls; horizontal border masks hoisted ---
    col = (start + lax.broadcasted_iota(jnp.int32, (TM, 1), 0)) % W
    not_left = col != 0
    not_right = col != W - 1

    Cout = o_ref.shape[-1]
    acc = jnp.zeros((TM, Cout), jnp.float32)
    for ky in range(3):
        for kx in range(3):
            off = P + (ky - 1) * W + (kx - 1)  # static offset into the halo scratch
            win = t_ref[pl.ds(off, TM), :]
            if kx == 0:
                win = jnp.where(not_left, win, 0.0)
            elif kx == 2:
                win = jnp.where(not_right, win, 0.0)
            acc = acc + jnp.dot(win, w9_ref[3 * ky + kx],
                                preferred_element_type=jnp.float32)

    y = acc * s2_ref[...] + b2_ref[...]
    y = y * jax.nn.sigmoid(y)
    if add:
        # residual = the tile's own input rows, sliced from the already-loaded window
        y = y + xh[P:P + TM, :].astype(jnp.float32)
    o_ref[...] = y.astype(o_ref.dtype)


# ---------------------------------------------------------------------------
# Wrappers
# ---------------------------------------------------------------------------

def dual_pointwise_conv_bn_silu(x, w1, s1, b1, w2, s2, b2, *, tm=512):
    """cv1 & cv2 fused: x (B,H,W,Cin) -> (y1 (B,H,W,C1), y2 (B,H,W,C2))."""
    B, H, W, Cin = x.shape
    C1, C2 = w1.shape[1], w2.shape[1]
    M = B * H * W
    tm = min(tm, _round_up(M, 8))
    Mp = _round_up(M, tm)
    x2 = x.reshape(M, Cin)
    if Mp != M:
        x2 = jnp.pad(x2, ((0, Mp - M), (0, 0)))
    o1, o2 = pl.pallas_call(
        _dual_pw_conv_kernel,
        out_shape=(jax.ShapeDtypeStruct((Mp, C1), x.dtype),
                   jax.ShapeDtypeStruct((Mp, C2), x.dtype)),
        grid_spec=pltpu.PrefetchScalarGridSpec(
            num_scalar_prefetch=0,
            grid=(Mp // tm,),
            in_specs=[
                pl.BlockSpec((tm, Cin), lambda i: (i, 0)),    # pixel-row tile
                pl.BlockSpec((Cin, C1), lambda i: (0, 0)),    # cv1 weight (resident)
                pl.BlockSpec((1, C1), lambda i: (0, 0)),      # cv1 folded BN scale
                pl.BlockSpec((1, C1), lambda i: (0, 0)),      # cv1 folded BN bias
                pl.BlockSpec((Cin, C2), lambda i: (0, 0)),    # cv2 weight
                pl.BlockSpec((1, C2), lambda i: (0, 0)),
                pl.BlockSpec((1, C2), lambda i: (0, 0)),
            ],
            out_specs=(pl.BlockSpec((tm, C1), lambda i: (i, 0)),
                       pl.BlockSpec((tm, C2), lambda i: (i, 0))),
        ),
        compiler_params=pltpu.CompilerParams(
            dimension_semantics=("parallel",), vmem_limit_bytes=_VMEM_LIMIT),
    )(x2, w1, s1.reshape(1, C1), b1.reshape(1, C1),
      w2, s2.reshape(1, C2), b2.reshape(1, C2))
    return o1[:M].reshape(B, H, W, C1), o2[:M].reshape(B, H, W, C2)


def concat_pointwise_conv_bn_silu(a, b, wa, wb, scale, bias, *, tm=512):
    """cv3: 1x1 conv over channel-concat of a and b, fused (no concat materialized)."""
    B, H, W, Ca = a.shape
    Cb = b.shape[-1]
    Cout = wa.shape[1]
    M = B * H * W
    tm = min(tm, _round_up(M, 8))
    Mp = _round_up(M, tm)
    a2 = a.reshape(M, Ca)
    b2 = b.reshape(M, Cb)
    if Mp != M:
        a2 = jnp.pad(a2, ((0, Mp - M), (0, 0)))
        b2 = jnp.pad(b2, ((0, Mp - M), (0, 0)))
    out = pl.pallas_call(
        _concat_pw_conv_kernel,
        out_shape=jax.ShapeDtypeStruct((Mp, Cout), a.dtype),
        grid_spec=pltpu.PrefetchScalarGridSpec(
            num_scalar_prefetch=0,
            grid=(Mp // tm,),
            in_specs=[
                pl.BlockSpec((tm, Ca), lambda i: (i, 0)),
                pl.BlockSpec((tm, Cb), lambda i: (i, 0)),
                pl.BlockSpec((Ca, Cout), lambda i: (0, 0)),
                pl.BlockSpec((Cb, Cout), lambda i: (0, 0)),
                pl.BlockSpec((1, Cout), lambda i: (0, 0)),
                pl.BlockSpec((1, Cout), lambda i: (0, 0)),
            ],
            out_specs=pl.BlockSpec((tm, Cout), lambda i: (i, 0)),
        ),
        compiler_params=pltpu.CompilerParams(
            dimension_semantics=("parallel",), vmem_limit_bytes=_VMEM_LIMIT),
    )(a2, b2, wa, wb, scale.reshape(1, Cout), bias.reshape(1, Cout))
    return out[:M].reshape(B, H, W, Cout)


def bottleneck_fused(x, w1, s1, b1, w2, s2, b2, *, add, tm=512):
    """One fused Bottleneck: silu(bn2(conv3x3(silu(bn1(conv1x1(x)))))) (+ x).

    x : (B,H,W,Cin) NHWC; w1: (Cin,Cmid); w2: (3,3,Cmid,Cout) HWIO. stride 1, pad 1, g=1.
    """
    B, H, W, Cin = x.shape
    Cmid = w1.shape[1]
    Cout = w2.shape[-1]
    if add:
        assert Cin == Cout, "residual add requires Cin == Cout"
    M = H * W
    P = W + 1
    TM = min(tm, _round_up(M, 8))
    Mp = _round_up(M, TM)
    HALO = _round_up(TM + 2 * P, 8)
    rows = Mp - TM + HALO              # guarantees r*TM + HALO <= rows for all tiles
    xf = x.reshape(B, M, Cin)
    xp = jnp.pad(xf, ((0, 0), (P, rows - P - M), (0, 0)))
    w9 = w2.reshape(9, Cmid, Cout)
    kernel = functools.partial(_bottleneck_kernel, W=W, M=M, TM=TM, HALO=HALO, add=add)
    out = pl.pallas_call(
        kernel,
        out_shape=jax.ShapeDtypeStruct((B, Mp, Cout), x.dtype),
        grid_spec=pltpu.PrefetchScalarGridSpec(
            num_scalar_prefetch=0,
            grid=(B, Mp // TM),
            in_specs=[
                # whole padded image resident across its row tiles (re-DMA'd per image)
                pl.BlockSpec((None, rows, Cin), lambda b, r: (b, 0, 0)),
                pl.BlockSpec((Cin, Cmid), lambda b, r: (0, 0)),
                pl.BlockSpec((1, Cmid), lambda b, r: (0, 0)),
                pl.BlockSpec((1, Cmid), lambda b, r: (0, 0)),
                pl.BlockSpec((9, Cmid, Cout), lambda b, r: (0, 0, 0)),
                pl.BlockSpec((1, Cout), lambda b, r: (0, 0)),
                pl.BlockSpec((1, Cout), lambda b, r: (0, 0)),
            ],
            out_specs=pl.BlockSpec((None, TM, Cout), lambda b, r: (b, r, 0)),
            scratch_shapes=[pltpu.VMEM((HALO, Cmid), jnp.float32)],
        ),
        compiler_params=pltpu.CompilerParams(
            dimension_semantics=("parallel", "parallel"),
            vmem_limit_bytes=_VMEM_LIMIT),
    )(xp, w1, s1.reshape(1, Cmid), b1.reshape(1, Cmid),
      w9, s2.reshape(1, Cout), b2.reshape(1, Cout))
    return out[:, :M].reshape(B, H, W, Cout)


def c3_pallas(x_nchw, p, *, shortcut=True):
    """C3 forward: (B, c1, H, W) -> (B, c2, H, W). BatchNorm in eval (folded) mode."""
    x = jnp.transpose(x_nchw, (0, 2, 3, 1))  # NHWC
    y1, y2 = dual_pointwise_conv_bn_silu(
        x, p["cv1_w"], p["cv1_s"], p["cv1_b"], p["cv2_w"], p["cv2_s"], p["cv2_b"])
    for blk in p["m"]:
        y1 = bottleneck_fused(y1, blk["cv1_w"], blk["cv1_s"], blk["cv1_b"],
                              blk["cv2_w"], blk["cv2_s"], blk["cv2_b"], add=shortcut)
    out = concat_pointwise_conv_bn_silu(
        y1, y2, p["cv3_wa"], p["cv3_wb"], p["cv3_s"], p["cv3_b"])
    return jnp.transpose(out, (0, 3, 1, 2))  # back to NCHW


# ---------------------------------------------------------------------------
# Parameter construction (PyTorch-like init, BN folded to scale/bias) + reference
# ---------------------------------------------------------------------------

def _make_conv_params(key, cin, cout, k):
    kw, kg, kb, km, kv = jax.random.split(key, 5)
    fan_in = cin * k * k
    limit = math.sqrt(3.0 / fan_in)  # kaiming_uniform(a=sqrt(5))
    if k == 1:
        w = jax.random.uniform(kw, (cin, cout), jnp.float32, -limit, limit)
    else:
        w = jax.random.uniform(kw, (k, k, cin, cout), jnp.float32, -limit, limit)  # HWIO
    gamma = jax.random.uniform(kg, (cout,), jnp.float32, 0.5, 1.5)
    beta = 0.1 * jax.random.normal(kb, (cout,), jnp.float32)
    mean = 0.1 * jax.random.normal(km, (cout,), jnp.float32)
    var = jax.random.uniform(kv, (cout,), jnp.float32, 0.5, 1.5)
    eps = 1e-5  # nn.BatchNorm2d default
    scale = gamma / jnp.sqrt(var + eps)
    bias = beta - mean * scale
    return w, scale, bias


def _conv_bn_silu_ref(x, w, scale, bias, k):
    if k == 1:
        w = w.reshape(1, 1, *w.shape)
    y = lax.conv_general_dilated(
        x, w, window_strides=(1, 1), padding="SAME",
        dimension_numbers=("NHWC", "HWIO", "NHWC"),
        precision=lax.Precision.HIGHEST)
    y = y * scale + bias
    return y * jax.nn.sigmoid(y)


def c3_reference(x_nchw, p, *, shortcut=True):
    x = jnp.transpose(x_nchw, (0, 2, 3, 1))
    y1 = _conv_bn_silu_ref(x, p["cv1_w"], p["cv1_s"], p["cv1_b"], 1)
    y2 = _conv_bn_silu_ref(x, p["cv2_w"], p["cv2_s"], p["cv2_b"], 1)
    for blk in p["m"]:
        t = _conv_bn_silu_ref(y1, blk["cv1_w"], blk["cv1_s"], blk["cv1_b"], 1)
        t = _conv_bn_silu_ref(t, blk["cv2_w"], blk["cv2_s"], blk["cv2_b"], 3)
        y1 = y1 + t if shortcut else t
    cat = jnp.concatenate([y1, y2], axis=-1)
    wcat = jnp.concatenate([p["cv3_wa"], p["cv3_wb"]], axis=0)
    out = _conv_bn_silu_ref(cat, wcat, p["cv3_s"], p["cv3_b"], 1)
    return jnp.transpose(out, (0, 3, 1, 2))


if __name__ == "__main__":
    key = jax.random.PRNGKey(0)
    ks = jax.random.split(key, 8)

    B, c1, H, W = 2, 32, 16, 16
    c2 = 32
    shortcut = True
    e = 0.5
    c_ = int(c2 * e)

    x = jax.random.normal(ks[0], (B, c1, H, W), jnp.float32)

    cv1_w, cv1_s, cv1_b = _make_conv_params(ks[1], c1, c_, 1)
    cv2_w, cv2_s, cv2_b = _make_conv_params(ks[2], c1, c_, 1)
    b_cv1_w, b_cv1_s, b_cv1_b = _make_conv_params(ks[3], c_, c_, 1)
    b_cv2_w, b_cv2_s, b_cv2_b = _make_conv_params(ks[4], c_, c_, 3)
    cv3_w, cv3_s, cv3_b = _make_conv_params(ks[5], 2 * c_, c2, 1)

    params = dict(
        cv1_w=cv1_w, cv1_s=cv1_s, cv1_b=cv1_b,
        cv2_w=cv2_w, cv2_s=cv2_s, cv2_b=cv2_b,
        m=[dict(cv1_w=b_cv1_w, cv1_s=b_cv1_s, cv1_b=b_cv1_b,
                cv2_w=b_cv2_w, cv2_s=b_cv2_s, cv2_b=b_cv2_b)],
        cv3_wa=cv3_w[:c_], cv3_wb=cv3_w[c_:], cv3_s=cv3_s, cv3_b=cv3_b,
    )

    y = c3_pallas(x, params, shortcut=shortcut)
    y = jax.block_until_ready(y)

    y_ref = c3_reference(x, params, shortcut=shortcut)
    assert y.shape == (B, c2, H, W)
    max_err = float(jnp.max(jnp.abs(y - y_ref)))
    assert jnp.allclose(y, y_ref, atol=1e-3, rtol=1e-3), (
        "mismatch vs reference: max abs err = %g" % max_err)

    print("KERNEL_OK")
</pallas_src>

<mosaic_0001>
module attributes {stable_mosaic.version = 11 : i64} {
  func.func @_dual_pw_conv_kernel(%arg0: i32, %arg1: memref<512x32xf32, #tpu.memory_space<vmem>>, %arg2: memref<32x16xf32, #tpu.memory_space<vmem>>, %arg3: memref<1x16xf32, #tpu.memory_space<vmem>>, %arg4: memref<1x16xf32, #tpu.memory_space<vmem>>, %arg5: memref<32x16xf32, #tpu.memory_space<vmem>>, %arg6: memref<1x16xf32, #tpu.memory_space<vmem>>, %arg7: memref<1x16xf32, #tpu.memory_space<vmem>>, %arg8: memref<512x16xf32, #tpu.memory_space<vmem>>, %arg9: memref<512x16xf32, #tpu.memory_space<vmem>>) attributes {dimension_semantics = [#tpu.dimension_semantics<parallel>], iteration_bounds = array<i64: 1>, scalar_prefetch = 0 : i64, scratch_operands = 0 : i64, tpu.core_type = #tpu.core_type<tc>, window_params = [{transform_indices = @transform_0, window_bounds = array<i64: 512, 32>}, {pipeline_mode = #tpu.pipeline_mode<synchronous>, transform_indices = @transform_1, window_bounds = array<i64: 32, 16>}, {pipeline_mode = #tpu.pipeline_mode<synchronous>, transform_indices = @transform_2, window_bounds = array<i64: 1, 16>}, {pipeline_mode = #tpu.pipeline_mode<synchronous>, transform_indices = @transform_3, window_bounds = array<i64: 1, 16>}, {pipeline_mode = #tpu.pipeline_mode<synchronous>, transform_indices = @transform_4, window_bounds = array<i64: 32, 16>}, {pipeline_mode = #tpu.pipeline_mode<synchronous>, transform_indices = @transform_5, window_bounds = array<i64: 1, 16>}, {pipeline_mode = #tpu.pipeline_mode<synchronous>, transform_indices = @transform_6, window_bounds = array<i64: 1, 16>}, {transform_indices = @transform_7, window_bounds = array<i64: 512, 16>}, {transform_indices = @transform_8, window_bounds = array<i64: 512, 16>}]} {
    %c0 = arith.constant 0 : index
    %c0_0 = arith.constant 0 : index
    %0 = vector.load %arg1[%c0, %c0_0] : memref<512x32xf32, #tpu.memory_space<vmem>>, vector<512x32xf32>
    %c0_1 = arith.constant 0 : index
    %c0_2 = arith.constant 0 : index
    %1 = vector.load %arg2[%c0_1, %c0_2] : memref<32x16xf32, #tpu.memory_space<vmem>>, vector<32x16xf32>
    %cst = arith.constant dense<0.000000e+00> : vector<512x16xf32>
    %2 = tpu.matmul %0, %1, %cst {dimension_numbers = #tpu.dot_dimension_numbers<[1], [0], [0], [1], [0, 0, 1, 1], [], []>} : vector<512x32xf32>, vector<32x16xf32>, vector<512x16xf32> -> vector<512x16xf32>
    %c0_3 = arith.constant 0 : index
    %c0_4 = arith.constant 0 : index
    %3 = vector.load %arg3[%c0_3, %c0_4] : memref<1x16xf32, #tpu.memory_space<vmem>>, vector<1x16xf32>
    %4 = vector.broadcast %3 : vector<1x16xf32> to vector<512x16xf32>
    %5 = arith.mulf %2, %4 : vector<512x16xf32>
    %c0_5 = arith.constant 0 : index
    %c0_6 = arith.constant 0 : index
    %6 = vector.load %arg4[%c0_5, %c0_6] : memref<1x16xf32, #tpu.memory_space<vmem>>, vector<1x16xf32>
    %7 = vector.broadcast %6 : vector<1x16xf32> to vector<512x16xf32>
    %8 = arith.addf %5, %7 : vector<512x16xf32>
    %9 = arith.negf %8 : vector<512x16xf32>
    %10 = math.exp %9 : vector<512x16xf32>
    %cst_7 = arith.constant 1.000000e+00 : f32
    %11 = vector.broadcast %cst_7 : f32 to vector<512x16xf32>
    %12 = arith.addf %11, %10 : vector<512x16xf32>
    %13 = arith.divf %11, %12 : vector<512x16xf32>
    %14 = arith.mulf %8, %13 : vector<512x16xf32>
    %c0_8 = arith.constant 0 : index
    %c0_9 = arith.constant 0 : index
    %15 = vector.load %arg8[%c0_8, %c0_9] : memref<512x16xf32, #tpu.memory_space<vmem>>, vector<512x16xf32>
    tpu.vector_store %arg8[%c0_8, %c0_9], %14 {strides = array<i32>} : memref<512x16xf32, #tpu.memory_space<vmem>>, vector<512x16xf32>,
    %c0_10 = arith.constant 0 : index
    %c0_11 = arith.constant 0 : index
    %16 = vector.load %arg5[%c0_10, %c0_11] : memref<32x16xf32, #tpu.memory_space<vmem>>, vector<32x16xf32>
    %cst_12 = arith.constant dense<0.000000e+00> : vector<512x16xf32>
    %17 = tpu.matmul %0, %16, %cst_12 {dimension_numbers = #tpu.dot_dimension_numbers<[1], [0], [0], [1], [0, 0, 1, 1], [], []>} : vector<512x32xf32>, vector<32x16xf32>, vector<512x16xf32> -> vector<512x16xf32>
    %c0_13 = arith.constant 0 : index
    %c0_14 = arith.constant 0 : index
    %18 = vector.load %arg6[%c0_13, %c0_14] : memref<1x16xf32, #tpu.memory_space<vmem>>, vector<1x16xf32>
    %19 = vector.broadcast %18 : vector<1x16xf32> to vector<512x16xf32>
    %20 = arith.mulf %17, %19 : vector<512x16xf32>
    %c0_15 = arith.constant 0 : index
    %c0_16 = arith.constant 0 : index
    %21 = vector.load %arg7[%c0_15, %c0_16] : memref<1x16xf32, #tpu.memory_space<vmem>>, vector<1x16xf32>
    %22 = vector.broadcast %21 : vector<1x16xf32> to vector<512x16xf32>
    %23 = arith.addf %20, %22 : vector<512x16xf32>
    %24 = arith.negf %23 : vector<512x16xf32>
    %25 = math.exp %24 : vector<512x16xf32>
    %cst_17 = arith.constant 1.000000e+00 : f32
    %26 = vector.broadcast %cst_17 : f32 to vector<512x16xf32>
    %27 = arith.addf %26, %25 : vector<512x16xf32>
    %28 = arith.divf %26, %27 : vector<512x16xf32>
    %29 = arith.mulf %23, %28 : vector<512x16xf32>
    %c0_18 = arith.constant 0 : index
    %c0_19 = arith.constant 0 : index
    %30 = vector.load %arg9[%c0_18, %c0_19] : memref<512x16xf32, #tpu.memory_space<vmem>>, vector<512x16xf32>
    tpu.vector_store %arg9[%c0_18, %c0_19], %29 {strides = array<i32>} : memref<512x16xf32, #tpu.memory_space<vmem>>, vector<512x16xf32>,
    return
  }
  func.func @transform_0(%arg0: i32) -> (i32, i32) {
    %c0_i32 = arith.constant 0 : i32
    %c0_i32_0 = arith.constant 0 : i32
    return %arg0, %c0_i32 : i32, i32
  }
  func.func @transform_1(%arg0: i32) -> (i32, i32) {
    %c0_i32 = arith.constant 0 : i32
    %c0_i32_0 = arith.constant 0 : i32
    %c0_i32_1 = arith.constant 0 : i32
    return %c0_i32, %c0_i32_0 : i32, i32
  }
  func.func @transform_2(%arg0: i32) -> (i32, i32) {
    %c0_i32 = arith.constant 0 : i32
    %c0_i32_0 = arith.constant 0 : i32
    %c0_i32_1 = arith.constant 0 : i32
    return %c0_i32, %c0_i32_0 : i32, i32
  }
  func.func @transform_3(%arg0: i32) -> (i32, i32) {
    %c0_i32 = arith.constant 0 : i32
    %c0_i32_0 = arith.constant 0 : i32
    %c0_i32_1 = arith.constant 0 : i32
    return %c0_i32, %c0_i32_0 : i32, i32
  }
  func.func @transform_4(%arg0: i32) -> (i32, i32) {
    %c0_i32 = arith.constant 0 : i32
    %c0_i32_0 = arith.constant 0 : i32
    %c0_i32_1 = arith.constant 0 : i32
    return %c0_i32, %c0_i32_0 : i32, i32
  }
  func.func @transform_5(%arg0: i32) -> (i32, i32) {
    %c0_i32 = arith.constant 0 : i32
    %c0_i32_0 = arith.constant 0 : i32
    %c0_i32_1 = arith.constant 0 : i32
    return %c0_i32, %c0_i32_0 : i32, i32
  }
  func.func @transform_6(%arg0: i32) -> (i32, i32) {
    %c0_i32 = arith.constant 0 : i32
    %c0_i32_0 = arith.constant 0 : i32
    %c0_i32_1 = arith.constant 0 : i32
    return %c0_i32, %c0_i32_0 : i32, i32
  }
  func.func @transform_7(%arg0: i32) -> (i32, i32) {
    %c0_i32 = arith.constant 0 : i32
    %c0_i32_0 = arith.constant 0 : i32
    return %arg0, %c0_i32 : i32, i32
  }
  func.func @transform_8(%arg0: i32) -> (i32, i32) {
    %c0_i32 = arith.constant 0 : i32
    %c0_i32_0 = arith.constant 0 : i32
    return %arg0, %c0_i32 : i32, i32
  }
}

</mosaic_0001>

<llo_original>
// kernel: tpu_custom_call.1
$region0: #{tpu_custom_call.1}
  #allocation0 [shape = 'u32[]', space=smem, size = 0x4, offset = 0x4, fixed_abs, tag = 'smem constant byte address 0x4 - core index']
  #allocation1 [shape = 'u32[72,128]{1,0:T(1,128)}', space=vmem, size = 0x9000, scoped, tag = 'internal scratch']
  %s0 = inlined_call_operand.vmem [shape: f32[512,32], index: 0, kind: input, shape index: {}]
  %s1 = inlined_call_operand.vmem [shape: f32[32,16], index: 1, kind: input, shape index: {}]
  %s2 = inlined_call_operand.vmem [shape: f32[1,16], index: 2, kind: input, shape index: {}]
  %s3 = inlined_call_operand.vmem [shape: f32[1,16], index: 3, kind: input, shape index: {}]
  %s4 = inlined_call_operand.vmem [shape: f32[32,16], index: 4, kind: input, shape index: {}]
  %s5 = inlined_call_operand.vmem [shape: f32[1,16], index: 5, kind: input, shape index: {}]
  %s6 = inlined_call_operand.vmem [shape: f32[1,16], index: 6, kind: input, shape index: {}]
  %s7 = inlined_call_operand.vmem [shape: f32[512,16], index: 7, kind: output, shape index: {0}]
  %s8 = inlined_call_operand.vmem [shape: f32[512,16], index: 8, kind: output, shape index: {1}]
  %9 = xla_tuple %s7, %s8
  %s10 = sld [smem:[#allocation0]]
  $region46: #{tpu_custom_call.1} parent=0
    _
  %s12 = ssub.s32 1, %s10
  %s13 = scalar_select 0, %s12, %s10
  // Predicated region
  $region2: #{tpu_custom_call.1} parent=0 // pred_check
    _
  $region3: #{tpu_custom_call.1} parent=0 // pred_check_branch
    %15 = sbr.rel (0) target = $region5
  $region4: #{tpu_custom_call.1} parent=0 // pred_region
    _
  $region5: #{tpu_custom_call.1} parent=0 // pred_fallthru
    _
  // Predicated region
  $region6: #{tpu_custom_call.1} parent=0 // pred_check
    _
  $region7: #{tpu_custom_call.1} parent=0 // pred_check_branch
    %17 = sbr.rel (0) target = $region9
  $region8: #{tpu_custom_call.1} parent=0 // pred_region
    _
  $region9: #{tpu_custom_call.1} parent=0 // pred_fallthru
    _
  // Predicated region
  $region10: #{tpu_custom_call.1} parent=0 // pred_check
    _
  $region11: #{tpu_custom_call.1} parent=0 // pred_check_branch
    %19 = sbr.rel (0) target = $region13
  $region12: #{tpu_custom_call.1} parent=0 // pred_region
    _
  $region13: #{tpu_custom_call.1} parent=0 // pred_fallthru
    _
  // Predicated region
  $region14: #{tpu_custom_call.1} parent=0 // pred_check
    _
  $region15: #{tpu_custom_call.1} parent=0 // pred_check_branch
    %21 = sbr.rel (0) target = $region17
  $region16: #{tpu_custom_call.1} parent=0 // pred_region
    _
  $region17: #{tpu_custom_call.1} parent=0 // pred_fallthru
    _
  // Predicated region
  $region18: #{tpu_custom_call.1} parent=0 // pred_check
    _
  $region19: #{tpu_custom_call.1} parent=0 // pred_check_branch
    %23 = sbr.rel (0) target = $region21
  $region20: #{tpu_custom_call.1} parent=0 // pred_region
    _
  $region21: #{tpu_custom_call.1} parent=0 // pred_fallthru
    _
  // Predicated region
  $region22: #{tpu_custom_call.1} parent=0 // pred_check
    _
  $region23: #{tpu_custom_call.1} parent=0 // pred_check_branch
    %25 = sbr.rel (0) target = $region25
  $region24: #{tpu_custom_call.1} parent=0 // pred_region
    _
  $region25: #{tpu_custom_call.1} parent=0 // pred_fallthru
    _
  // Predicated region
  $region26: #{tpu_custom_call.1} parent=0 // pred_check
    _
  $region27: #{tpu_custom_call.1} parent=0 // pred_check_branch
    %27 = sbr.rel (0) target = $region29
  $region28: #{tpu_custom_call.1} parent=0 // pred_region
    _
  $region29: #{tpu_custom_call.1} parent=0 // pred_fallthru
    _
  %v28 = vld [vmem:[%s0] sm:$0xff]
  %v29 = vld [vmem:[%s0 + $0x8] sm:$0xff]
  %v30 = vld [vmem:[%s0 + $0x10] sm:$0xff]
  %v31 = vld [vmem:[%s0 + $0x18] sm:$0xff]
  %v32 = vld [vmem:[%s0 + $0x20] sm:$0xff]
  %v33 = vld [vmem:[%s0 + $0x28] sm:$0xff]
  %v34 = vld [vmem:[%s0 + $0x30] sm:$0xff]
  %v35 = vld [vmem:[%s0 + $0x38] sm:$0xff]
  %v36 = vld [vmem:[%s0 + $0x40] sm:$0xff]
  %v37 = vld [vmem:[%s0 + $0x48] sm:$0xff]
  %v38 = vld [vmem:[%s0 + $0x50] sm:$0xff]
  %v39 = vld [vmem:[%s0 + $0x58] sm:$0xff]
  %v40 = vld [vmem:[%s0 + $0x60] sm:$0xff]
  %v41 = vld [vmem:[%s0 + $0x68] sm:$0xff]
  %v42 = vld [vmem:[%s0 + $0x70] sm:$0xff]
  %v43 = vld [vmem:[%s0 + $0x78] sm:$0xff]
  %v44 = vld [vmem:[%s0 + $0x80] sm:$0xff]
  %v45 = vld [vmem:[%s0 + $0x88] sm:$0xff]
  %v46 = vld [vmem:[%s0 + $0x90] sm:$0xff]
  %v47 = vld [vmem:[%s0 + $0x98] sm:$0xff]
  %v48 = vld [vmem:[%s0 + $0xa0] sm:$0xff]
  %v49 = vld [vmem:[%s0 + $0xa8] sm:$0xff]
  %v50 = vld [vmem:[%s0 + $0xb0] sm:$0xff]
  %v51 = vld [vmem:[%s0 + $0xb8] sm:$0xff]
  %v52 = vld [vmem:[%s0 + $0xc0] sm:$0xff]
  %v53 = vld [vmem:[%s0 + $0xc8] sm:$0xff]
  %v54 = vld [vmem:[%s0 + $0xd0] sm:$0xff]
  %v55 = vld [vmem:[%s0 + $0xd8] sm:$0xff]
  %v56 = vld [vmem:[%s0 + $0xe0] sm:$0xff]
  %v57 = vld [vmem:[%s0 + $0xe8] sm:$0xff]
  %v58 = vld [vmem:[%s0 + $0xf0] sm:$0xff]
  %v59 = vld [vmem:[%s0 + $0xf8] sm:$0xff]
  %v60 = vld [vmem:[%s0 + $0x100] sm:$0xff]
  %v61 = vld [vmem:[%s0 + $0x108] sm:$0xff]
  %v62 = vld [vmem:[%s0 + $0x110] sm:$0xff]
  %v63 = vld [vmem:[%s0 + $0x118] sm:$0xff]
  %v64 = vld [vmem:[%s0 + $0x120] sm:$0xff]
  %v65 = vld [vmem:[%s0 + $0x128] sm:$0xff]
  %v66 = vld [vmem:[%s0 + $0x130] sm:$0xff]
  %v67 = vld [vmem:[%s0 + $0x138] sm:$0xff]
  %v68 = vld [vmem:[%s0 + $0x140] sm:$0xff]
  %v69 = vld [vmem:[%s0 + $0x148] sm:$0xff]
  %v70 = vld [vmem:[%s0 + $0x150] sm:$0xff]
  %v71 = vld [vmem:[%s0 + $0x158] sm:$0xff]
  %v72 = vld [vmem:[%s0 + $0x160] sm:$0xff]
  %v73 = vld [vmem:[%s0 + $0x168] sm:$0xff]
  %v74 = vld [vmem:[%s0 + $0x170] sm:$0xff]
  %v75 = vld [vmem:[%s0 + $0x178] sm:$0xff]
  %v76 = vld [vmem:[%s0 + $0x180] sm:$0xff]
  %v77 = vld [vmem:[%s0 + $0x188] sm:$0xff]
  %v78 = vld [vmem:[%s0 + $0x190] sm:$0xff]
  %v79 = vld [vmem:[%s0 + $0x198] sm:$0xff]
  %v80 = vld [vmem:[%s0 + $0x1a0] sm:$0xff]
  %v81 = vld [vmem:[%s0 + $0x1a8] sm:$0xff]
  %v82 = vld [vmem:[%s0 + $0x1b0] sm:$0xff]
  %v83 = vld [vmem:[%s0 + $0x1b8] sm:$0xff]
  %v84 = vld [vmem:[%s0 + $0x1c0] sm:$0xff]
  %v85 = vld [vmem:[%s0 + $0x1c8] sm:$0xff]
  %v86 = vld [vmem:[%s0 + $0x1d0] sm:$0xff]
  %v87 = vld [vmem:[%s0 + $0x1d8] sm:$0xff]
  %v88 = vld [vmem:[%s0 + $0x1e0] sm:$0xff]
  %v89 = vld [vmem:[%s0 + $0x1e8] sm:$0xff]
  %v90 = vld [vmem:[%s0 + $0x1f0] sm:$0xff]
  %v91 = vld [vmem:[%s0 + $0x1f8] sm:$0xff]
  %v92 = vld [vmem:[%s1] sm:$0xff]
  %v93 = vld [vmem:[%s1 + $0x8] sm:$0xff]
  %v94 = vld [vmem:[%s1 + $0x10] sm:$0xff]
  %v95 = vld [vmem:[%s1 + $0x18] sm:$0xff]
  %vm96 = vcmask 261120
  %v98 = vsel %vm96, %v28, 0
  %v101 = vsel %vm96, %v29, 0
  %v104 = vsel %vm96, %v30, 0
  %v107 = vsel %vm96, %v31, 0
  %v110 = vsel %vm96, %v32, 0
  %v113 = vsel %vm96, %v33, 0
  %v116 = vsel %vm96, %v34, 0
  %v119 = vsel %vm96, %v35, 0
  %v122 = vsel %vm96, %v36, 0
  %v125 = vsel %vm96, %v37, 0
  %v128 = vsel %vm96, %v38, 0
  %v131 = vsel %vm96, %v39, 0
  %v134 = vsel %vm96, %v40, 0
  %v137 = vsel %vm96, %v41, 0
  %v140 = vsel %vm96, %v42, 0
  %v143 = vsel %vm96, %v43, 0
  %v146 = vsel %vm96, %v44, 0
  %v149 = vsel %vm96, %v45, 0
  %v152 = vsel %vm96, %v46, 0
  %v155 = vsel %vm96, %v47, 0
  %v158 = vsel %vm96, %v48, 0
  %v161 = vsel %vm96, %v49, 0
  %v164 = vsel %vm96, %v50, 0
  %v167 = vsel %vm96, %v51, 0
  %v170 = vsel %vm96, %v52, 0
  %v173 = vsel %vm96, %v53, 0
  %v176 = vsel %vm96, %v54, 0
  %v179 = vsel %vm96, %v55, 0
  %v182 = vsel %vm96, %v56, 0
  %v185 = vsel %vm96, %v57, 0
  %v188 = vsel %vm96, %v58, 0
  %v191 = vsel %vm96, %v59, 0
  %v194 = vsel %vm96, %v60, 0
  %v197 = vsel %vm96, %v61, 0
  %v200 = vsel %vm96, %v62, 0
  %v203 = vsel %vm96, %v63, 0
  %v206 = vsel %vm96, %v64, 0
  %v209 = vsel %vm96, %v65, 0
  %v212 = vsel %vm96, %v66, 0
  %v215 = vsel %vm96, %v67, 0
  %v218 = vsel %vm96, %v68, 0
  %v221 = vsel %vm96, %v69, 0
  %v224 = vsel %vm96, %v70, 0
  %v227 = vsel %vm96, %v71, 0
  %v230 = vsel %vm96, %v72, 0
  %v233 = vsel %vm96, %v73, 0
  %v236 = vsel %vm96, %v74, 0
  %v239 = vsel %vm96, %v75, 0
  %v242 = vsel %vm96, %v76, 0
  %v245 = vsel %vm96, %v77, 0
  %v248 = vsel %vm96, %v78, 0
  %v251 = vsel %vm96, %v79, 0
  %v254 = vsel %vm96, %v80, 0
  %v257 = vsel %vm96, %v81, 0
  %v260 = vsel %vm96, %v82, 0
  %v263 = vsel %vm96, %v83, 0
  %v266 = vsel %vm96, %v84, 0
  %v269 = vsel %vm96, %v85, 0
  %v272 = vsel %vm96, %v86, 0
  %v275 = vsel %vm96, %v87, 0
  %v278 = vsel %vm96, %v88, 0
  %v281 = vsel %vm96, %v89, 0
  %v284 = vsel %vm96, %v90, 0
  %v287 = vsel %vm96, %v91, 0
  %289 = vmatpush.msra.mxu0 0.0
  %290 = vmatpush.msra.mxu0 0.0
  %291 = vmatpush.msra.mxu0 0.0
  %292 = vmatpush.msra.mxu0 0.0
  %293 = vmatpush.msra.mxu0 0.0
  %294 = vmatpush.msra.mxu0 0.0
  %295 = vmatpush.msra.mxu0 0.0
  %296 = vmatpush.msra.mxu0 0.0
  %297 = vmatpush.msra.mxu0 0.0
  %298 = vmatpush.msra.mxu0 0.0
  %299 = vmatpush.msra.mxu0 0.0
  %300 = vmatpush.msra.mxu0 0.0
  %301 = vmatpush.msra.mxu0 %v95
  %302 = vmatpush.msra.mxu0 %v94
  %303 = vmatpush.msra.mxu0 %v93
  %304 = vmatpush.msra.mxu0 %v92
  %305 = vmatmul.f32.gmra.mxu0 %v98
  %v306 = vpop.f32.mrf.mxu0
  %v307 = vadd.f32 0.0, %v306
  %308 = vmatmul.f32.gmra.mxu0 %v101
  %v309 = vpop.f32.mrf.mxu0
  %v310 = vadd.f32 0.0, %v309
  %311 = vmatmul.f32.gmra.mxu0 %v104
  %v312 = vpop.f32.mrf.mxu0
  %v313 = vadd.f32 0.0, %v312
  %314 = vmatmul.f32.gmra.mxu0 %v107
  %v315 = vpop.f32.mrf.mxu0
  %v316 = vadd.f32 0.0, %v315
  %317 = vmatmul.f32.gmra.mxu0 %v110
  %v318 = vpop.f32.mrf.mxu0
  %v319 = vadd.f32 0.0, %v318
  %320 = vmatmul.f32.gmra.mxu0 %v113
  %v321 = vpop.f32.mrf.mxu0
  %v322 = vadd.f32 0.0, %v321
  %323 = vmatmul.f32.gmra.mxu0 %v116
  %v324 = vpop.f32.mrf.mxu0
  %v325 = vadd.f32 0.0, %v324
  %326 = vmatmul.f32.gmra.mxu0 %v119
  %v327 = vpop.f32.mrf.mxu0
  %v328 = vadd.f32 0.0, %v327
  %329 = vmatmul.f32.gmra.mxu0 %v122
  %v330 = vpop.f32.mrf.mxu0
  %v331 = vadd.f32 0.0, %v330
  %332 = vmatmul.f32.gmra.mxu0 %v125
  %v333 = vpop.f32.mrf.mxu0
  %v334 = vadd.f32 0.0, %v333
  %335 = vmatmul.f32.gmra.mxu0 %v128
  %v336 = vpop.f32.mrf.mxu0
  %v337 = vadd.f32 0.0, %v336
  %338 = vmatmul.f32.gmra.mxu0 %v131
  %v339 = vpop.f32.mrf.mxu0
  %v340 = vadd.f32 0.0, %v339
  %341 = vmatmul.f32.gmra.mxu0 %v134
  %v342 = vpop.f32.mrf.mxu0
  %v343 = vadd.f32 0.0, %v342
  %344 = vmatmul.f32.gmra.mxu0 %v137
  %v345 = vpop.f32.mrf.mxu0
  %v346 = vadd.f32 0.0, %v345
  %347 = vmatmul.f32.gmra.mxu0 %v140
  %v348 = vpop.f32.mrf.mxu0
  %v349 = vadd.f32 0.0, %v348
  %350 = vmatmul.f32.gmra.mxu0 %v143
  %v351 = vpop.f32.mrf.mxu0
  %v352 = vadd.f32 0.0, %v351
  %353 = vmatmul.f32.gmra.mxu0 %v146
  %v354 = vpop.f32.mrf.mxu0
  %v355 = vadd.f32 0.0, %v354
  %356 = vmatmul.f32.gmra.mxu0 %v149
  %v357 = vpop.f32.mrf.mxu0
  %v358 = vadd.f32 0.0, %v357
  %359 = vmatmul.f32.gmra.mxu0 %v152
  %v360 = vpop.f32.mrf.mxu0
  %v361 = vadd.f32 0.0, %v360
  %362 = vmatmul.f32.gmra.mxu0 %v155
  %v363 = vpop.f32.mrf.mxu0
  %v364 = vadd.f32 0.0, %v363
  %365 = vmatmul.f32.gmra.mxu0 %v158
  %v366 = vpop.f32.mrf.mxu0
  %v367 = vadd.f32 0.0, %v366
  %368 = vmatmul.f32.gmra.mxu0 %v161
  %v369 = vpop.f32.mrf.mxu0
  %v370 = vadd.f32 0.0, %v369
  %371 = vmatmul.f32.gmra.mxu0 %v164
  %v372 = vpop.f32.mrf.mxu0
  %v373 = vadd.f32 0.0, %v372
  %374 = vmatmul.f32.gmra.mxu0 %v167
  %v375 = vpop.f32.mrf.mxu0
  %v376 = vadd.f32 0.0, %v375
  %377 = vmatmul.f32.gmra.mxu0 %v170
  %v378 = vpop.f32.mrf.mxu0
  %v379 = vadd.f32 0.0, %v378
  %380 = vmatmul.f32.gmra.mxu0 %v173
  %v381 = vpop.f32.mrf.mxu0
  %v382 = vadd.f32 0.0, %v381
  %383 = vmatmul.f32.gmra.mxu0 %v176
  %v384 = vpop.f32.mrf.mxu0
  %v385 = vadd.f32 0.0, %v384
  %386 = vmatmul.f32.gmra.mxu0 %v179
  %v387 = vpop.f32.mrf.mxu0
  %v388 = vadd.f32 0.0, %v387
  %389 = vmatmul.f32.gmra.mxu0 %v182
  %v390 = vpop.f32.mrf.mxu0
  %v391 = vadd.f32 0.0, %v390
  %392 = vmatmul.f32.gmra.mxu0 %v185
  %v393 = vpop.f32.mrf.mxu0
  %v394 = vadd.f32 0.0, %v393
  %395 = vmatmul.f32.gmra.mxu0 %v188
  %v396 = vpop.f32.mrf.mxu0
  %v397 = vadd.f32 0.0, %v396
  %398 = vmatmul.f32.gmra.mxu0 %v191
  %v399 = vpop.f32.mrf.mxu0
  %v400 = vadd.f32 0.0, %v399
  %401 = vmatmul.f32.gmra.mxu0 %v194
  %v402 = vpop.f32.mrf.mxu0
  %v403 = vadd.f32 0.0, %v402
  %404 = vmatmul.f32.gmra.mxu0 %v197
  %v405 = vpop.f32.mrf.mxu0
  %v406 = vadd.f32 0.0, %v405
  %407 = vmatmul.f32.gmra.mxu0 %v200
  %v408 = vpop.f32.mrf.mxu0
  %v409 = vadd.f32 0.0, %v408
  %410 = vmatmul.f32.gmra.mxu0 %v203
  %v411 = vpop.f32.mrf.mxu0
  %v412 = vadd.f32 0.0, %v411
  %413 = vmatmul.f32.gmra.mxu0 %v206
  %v414 = vpop.f32.mrf.mxu0
  %v415 = vadd.f32 0.0, %v414
  %416 = vmatmul.f32.gmra.mxu0 %v209
  %v417 = vpop.f32.mrf.mxu0
  %v418 = vadd.f32 0.0, %v417
  %419 = vmatmul.f32.gmra.mxu0 %v212
  %v420 = vpop.f32.mrf.mxu0
  %v421 = vadd.f32 0.0, %v420
  %422 = vmatmul.f32.gmra.mxu0 %v215
  %v423 = vpop.f32.mrf.mxu0
  %v424 = vadd.f32 0.0, %v423
  %425 = vmatmul.f32.gmra.mxu0 %v218
  %v426 = vpop.f32.mrf.mxu0
  %v427 = vadd.f32 0.0, %v426
  %428 = vmatmul.f32.gmra.mxu0 %v221
  %v429 = vpop.f32.mrf.mxu0
  %v430 = vadd.f32 0.0, %v429
  %431 = vmatmul.f32.gmra.mxu0 %v224
  %v432 = vpop.f32.mrf.mxu0
  %v433 = vadd.f32 0.0, %v432
  %434 = vmatmul.f32.gmra.mxu0 %v227
  %v435 = vpop.f32.mrf.mxu0
  %v436 = vadd.f32 0.0, %v435
  %437 = vmatmul.f32.gmra.mxu0 %v230
  %v438 = vpop.f32.mrf.mxu0
  %v439 = vadd.f32 0.0, %v438
  %440 = vmatmul.f32.gmra.mxu0 %v233
  %v441 = vpop.f32.mrf.mxu0
  %v442 = vadd.f32 0.0, %v441
  %443 = vmatmul.f32.gmra.mxu0 %v236
  %v444 = vpop.f32.mrf.mxu0
  %v445 = vadd.f32 0.0, %v444
  %446 = vmatmul.f32.gmra.mxu0 %v239
  %v447 = vpop.f32.mrf.mxu0
  %v448 = vadd.f32 0.0, %v447
  %449 = vmatmul.f32.gmra.mxu0 %v242
  %v450 = vpop.f32.mrf.mxu0
  %v451 = vadd.f32 0.0, %v450
  %452 = vmatmul.f32.gmra.mxu0 %v245
  %v453 = vpop.f32.mrf.mxu0
  %v454 = vadd.f32 0.0, %v453
  %455 = vmatmul.f32.gmra.mxu0 %v248
  %v456 = vpop.f32.mrf.mxu0
  %v457 = vadd.f32 0.0, %v456
  %458 = vmatmul.f32.gmra.mxu0 %v251
  %v459 = vpop.f32.mrf.mxu0
  %v460 = vadd.f32 0.0, %v459
  %461 = vmatmul.f32.gmra.mxu0 %v254
  %v462 = vpop.f32.mrf.mxu0
  %v463 = vadd.f32 0.0, %v462
  %464 = vmatmul.f32.gmra.mxu0 %v257
  %v465 = vpop.f32.mrf.mxu0
  %v466 = vadd.f32 0.0, %v465
  %467 = vmatmul.f32.gmra.mxu0 %v260
  %v468 = vpop.f32.mrf.mxu0
  %v469 = vadd.f32 0.0, %v468
  %470 = vmatmul.f32.gmra.mxu0 %v263
  %v471 = vpop.f32.mrf.mxu0
  %v472 = vadd.f32 0.0, %v471
  %473 = vmatmul.f32.gmra.mxu0 %v266
  %v474 = vpop.f32.mrf.mxu0
  %v475 = vadd.f32 0.0, %v474
  %476 = vmatmul.f32.gmra.mxu0 %v269
  %v477 = vpop.f32.mrf.mxu0
  %v478 = vadd.f32 0.0, %v477
  %479 = vmatmul.f32.gmra.mxu0 %v272
  %v480 = vpop.f32.mrf.mxu0
  %v481 = vadd.f32 0.0, %v480
  %482 = vmatmul.f32.gmra.mxu0 %v275
  %v483 = vpop.f32.mrf.mxu0
  %v484 = vadd.f32 0.0, %v483
  %485 = vmatmul.f32.gmra.mxu0 %v278
  %v486 = vpop.f32.mrf.mxu0
  %v487 = vadd.f32 0.0, %v486
  %488 = vmatmul.f32.gmra.mxu0 %v281
  %v489 = vpop.f32.mrf.mxu0
  %v490 = vadd.f32 0.0, %v489
  %491 = vmatmul.f32.gmra.mxu0 %v284
  %v492 = vpop.f32.mrf.mxu0
  %v493 = vadd.f32 0.0, %v492
  %494 = vmatmul.f32.gmra.mxu0 %v287
  %v495 = vpop.f32.mrf.mxu0
  %v496 = vadd.f32 0.0, %v495
  %497 = vdwg.mxu0
  %v498 = vld [vmem:[%s2] sm:$0x1]
  %v500 = vperm.slane %v498, 0
  %v502 = vmul.f32 %v307, %v500
  %v503 = vmul.f32 %v310, %v500
  %v504 = vmul.f32 %v313, %v500
  %v505 = vmul.f32 %v316, %v500
  %v506 = vmul.f32 %v319, %v500
  %v507 = vmul.f32 %v322, %v500
  %v508 = vmul.f32 %v325, %v500
  %v509 = vmul.f32 %v328, %v500
  %v510 = vmul.f32 %v331, %v500
  %v511 = vmul.f32 %v334, %v500
  %v512 = vmul.f32 %v337, %v500
  %v513 = vmul.f32 %v340, %v500
  %v514 = vmul.f32 %v343, %v500
  %v515 = vmul.f32 %v346, %v500
  %v516 = vmul.f32 %v349, %v500
  %v517 = vmul.f32 %v352, %v500
  %v518 = vmul.f32 %v355, %v500
  %v519 = vmul.f32 %v358, %v500
  %v520 = vmul.f32 %v361, %v500
  %v521 = vmul.f32 %v364, %v500
  %v522 = vmul.f32 %v367, %v500
  %v523 = vmul.f32 %v370, %v500
  %v524 = vmul.f32 %v373, %v500
  %v525 = vmul.f32 %v376, %v500
  %v526 = vmul.f32 %v379, %v500
  %v527 = vmul.f32 %v382, %v500
  %v528 = vmul.f32 %v385, %v500
  %v529 = vmul.f32 %v388, %v500
  %v530 = vmul.f32 %v391, %v500
  %v531 = vmul.f32 %v394, %v500
  %v532 = vmul.f32 %v397, %v500
  %v533 = vmul.f32 %v400, %v500
  %v534 = vmul.f32 %v403, %v500
  %v535 = vmul.f32 %v406, %v500
  %v536 = vmul.f32 %v409, %v500
  %v537 = vmul.f32 %v412, %v500
  %v538 = vmul.f32 %v415, %v500
  %v539 = vmul.f32 %v418, %v500
  %v540 = vmul.f32 %v421, %v500
  %v541 = vmul.f32 %v424, %v500
  %v542 = vmul.f32 %v427, %v500
  %v543 = vmul.f32 %v430, %v500
  %v544 = vmul.f32 %v433, %v500
  %v545 = vmul.f32 %v436, %v500
  %v546 = vmul.f32 %v439, %v500
  %v547 = vmul.f32 %v442, %v500
  %v548 = vmul.f32 %v445, %v500
  %v549 = vmul.f32 %v448, %v500
  %v550 = vmul.f32 %v451, %v500
  %v551 = vmul.f32 %v454, %v500
  %v552 = vmul.f32 %v457, %v500
  %v553 = vmul.f32 %v460, %v500
  %v554 = vmul.f32 %v463, %v500
  %v555 = vmul.f32 %v466, %v500
  %v556 = vmul.f32 %v469, %v500
  %v557 = vmul.f32 %v472, %v500
  %v558 = vmul.f32 %v475, %v500
  %v559 = vmul.f32 %v478, %v500
  %v560 = vmul.f32 %v481, %v500
  %v561 = vmul.f32 %v484, %v500
  %v562 = vmul.f32 %v487, %v500
  %v563 = vmul.f32 %v490, %v500
  %v564 = vmul.f32 %v493, %v500
  %v565 = vmul.f32 %v496, %v500
  %v566 = vld [vmem:[%s3] sm:$0x1]
  %v568 = vperm.slane %v566, 0
  %v570 = vadd.f32 %v502, %v568
  %v571 = vadd.f32 %v503, %v568
  %v572 = vadd.f32 %v504, %v568
  %v573 = vadd.f32 %v505, %v568
  %v574 = vadd.f32 %v506, %v568
  %v575 = vadd.f32 %v507, %v568
  %v576 = vadd.f32 %v508, %v568
  %v577 = vadd.f32 %v509, %v568
  %v578 = vadd.f32 %v510, %v568
  %v579 = vadd.f32 %v511, %v568
  %v580 = vadd.f32 %v512, %v568
  %v581 = vadd.f32 %v513, %v568
  %v582 = vadd.f32 %v514, %v568
  %v583 = vadd.f32 %v515, %v568
  %v584 = vadd.f32 %v516, %v568
  %v585 = vadd.f32 %v517, %v568
  %v586 = vadd.f32 %v518, %v568
  %v587 = vadd.f32 %v519, %v568
  %v588 = vadd.f32 %v520, %v568
  %v589 = vadd.f32 %v521, %v568
  %v590 = vadd.f32 %v522, %v568
  %v591 = vadd.f32 %v523, %v568
  %v592 = vadd.f32 %v524, %v568
  %v593 = vadd.f32 %v525, %v568
  %v594 = vadd.f32 %v526, %v568
  %v595 = vadd.f32 %v527, %v568
  %v596 = vadd.f32 %v528, %v568
  %v597 = vadd.f32 %v529, %v568
  %v598 = vadd.f32 %v530, %v568
  %v599 = vadd.f32 %v531, %v568
  %v600 = vadd.f32 %v532, %v568
  %v601 = vadd.f32 %v533, %v568
  %v602 = vadd.f32 %v534, %v568
  %v603 = vadd.f32 %v535, %v568
  %v604 = vadd.f32 %v536, %v568
  %v605 = vadd.f32 %v537, %v568
  %v606 = vadd.f32 %v538, %v568
  %v607 = vadd.f32 %v539, %v568
  %v608 = vadd.f32 %v540, %v568
  %v609 = vadd.f32 %v541, %v568
  %v610 = vadd.f32 %v542, %v568
  %v611 = vadd.f32 %v543, %v568
  %v612 = vadd.f32 %v544, %v568
  %v613 = vadd.f32 %v545, %v568
  %v614 = vadd.f32 %v546, %v568
  %v615 = vadd.f32 %v547, %v568
  %v616 = vadd.f32 %v548, %v568
  %v617 = vadd.f32 %v549, %v568
  %v618 = vadd.f32 %v550, %v568
  %v619 = vadd.f32 %v551, %v568
  %v620 = vadd.f32 %v552, %v568
  %v621 = vadd.f32 %v553, %v568
  %v622 = vadd.f32 %v554, %v568
  %v623 = vadd.f32 %v555, %v568
  %v624 = vadd.f32 %v556, %v568
  %v625 = vadd.f32 %v557, %v568
  %v626 = vadd.f32 %v558, %v568
  %v627 = vadd.f32 %v559, %v568
  %v628 = vadd.f32 %v560, %v568
  %v629 = vadd.f32 %v561, %v568
  %v630 = vadd.f32 %v562, %v568
  %v631 = vadd.f32 %v563, %v568
  %v632 = vadd.f32 %v564, %v568
  %v633 = vadd.f32 %v565, %v568
  %v634 = vxor.u32 %v570, 2147483648
  %v635 = vxor.u32 %v571, 2147483648
  %v636 = vxor.u32 %v572, 2147483648
  %v637 = vxor.u32 %v573, 2147483648
  %v638 = vxor.u32 %v574, 2147483648
  %v639 = vxor.u32 %v575, 2147483648
  %v640 = vxor.u32 %v576, 2147483648
  %v641 = vxor.u32 %v577, 2147483648
  %v642 = vxor.u32 %v578, 2147483648
  %v643 = vxor.u32 %v579, 2147483648
  %v644 = vxor.u32 %v580, 2147483648
  %v645 = vxor.u32 %v581, 2147483648
  %v646 = vxor.u32 %v582, 2147483648
  %v647 = vxor.u32 %v583, 2147483648
  %v648 = vxor.u32 %v584, 2147483648
  %v649 = vxor.u32 %v585, 2147483648
  %v650 = vxor.u32 %v586, 2147483648
  %v651 = vxor.u32 %v587, 2147483648
  %v652 = vxor.u32 %v588, 2147483648
  %v653 = vxor.u32 %v589, 2147483648
  %v654 = vxor.u32 %v590, 2147483648
  %v655 = vxor.u32 %v591, 2147483648
  %v656 = vxor.u32 %v592, 2147483648
  %v657 = vxor.u32 %v593, 2147483648
  %v658 = vxor.u32 %v594, 2147483648
  %v659 = vxor.u32 %v595, 2147483648
  %v660 = vxor.u32 %v596, 2147483648
  %v661 = vxor.u32 %v597, 2147483648
  %v662 = vxor.u32 %v598, 2147483648
  %v663 = vxor.u32 %v599, 2147483648
  %v664 = vxor.u32 %v600, 2147483648
  %v665 = vxor.u32 %v601, 2147483648
  %v666 = vxor.u32 %v602, 2147483648
  %v667 = vxor.u32 %v603, 2147483648
  %v668 = vxor.u32 %v604, 2147483648
  %v669 = vxor.u32 %v605, 2147483648
  %v670 = vxor.u32 %v606, 2147483648
  %v671 = vxor.u32 %v607, 2147483648
  %v672 = vxor.u32 %v608, 2147483648
  %v673 = vxor.u32 %v609, 2147483648
  %v674 = vxor.u32 %v610, 2147483648
  %v675 = vxor.u32 %v611, 2147483648
  %v676 = vxor.u32 %v612, 2147483648
  %v677 = vxor.u32 %v613, 2147483648
  %v678 = vxor.u32 %v614, 2147483648
  %v679 = vxor.u32 %v615, 2147483648
  %v680 = vxor.u32 %v616, 2147483648
  %v681 = vxor.u32 %v617, 2147483648
  %v682 = vxor.u32 %v618, 2147483648
  %v683 = vxor.u32 %v619, 2147483648
  %v684 = vxor.u32 %v620, 2147483648
  %v685 = vxor.u32 %v621, 2147483648
  %v686 = vxor.u32 %v622, 2147483648
  %v687 = vxor.u32 %v623, 2147483648
  %v688 = vxor.u32 %v624, 2147483648
  %v689 = vxor.u32 %v625, 2147483648
  %v690 = vxor.u32 %v626, 2147483648
  %v691 = vxor.u32 %v627, 2147483648
  %v692 = vxor.u32 %v628, 2147483648
  %v693 = vxor.u32 %v629, 2147483648
  %v694 = vxor.u32 %v630, 2147483648
  %v695 = vxor.u32 %v631, 2147483648
  %v696 = vxor.u32 %v632, 2147483648
  %v697 = vxor.u32 %v633, 2147483648
  %v698 = vmul.f32 %v634, 1.442695
  %v699 = vpow.pop %v698
  %v700 = vmul.f32 %v635, 1.442695
  %v701 = vpow.pop %v700
  %v702 = vmul.f32 %v636, 1.442695
  %v703 = vpow.pop %v702
  %v704 = vmul.f32 %v637, 1.442695
  %v705 = vpow.pop %v704
  %v706 = vmul.f32 %v638, 1.442695
  %v707 = vpow.pop %v706
  %v708 = vmul.f32 %v639, 1.442695
  %v709 = vpow.pop %v708
  %v710 = vmul.f32 %v640, 1.442695
  %v711 = vpow.pop %v710
  %v712 = vmul.f32 %v641, 1.442695
  %v713 = vpow.pop %v712
  %v714 = vmul.f32 %v642, 1.442695
  %v715 = vpow.pop %v714
  %v716 = vmul.f32 %v643, 1.442695
  %v717 = vpow.pop %v716
  %v718 = vmul.f32 %v644, 1.442695
  %v719 = vpow.pop %v718
  %v720 = vmul.f32 %v645, 1.442695
  %v721 = vpow.pop %v720
  %v722 = vmul.f32 %v646, 1.442695
  %v723 = vpow.pop %v722
  %v724 = vmul.f32 %v647, 1.442695
  %v725 = vpow.pop %v724
  %v726 = vmul.f32 %v648, 1.442695
  %v727 = vpow.pop %v726
  %v728 = vmul.f32 %v649, 1.442695
  %v729 = vpow.pop %v728
  %v730 = vmul.f32 %v650, 1.442695
  %v731 = vpow.pop %v730
  %v732 = vmul.f32 %v651, 1.442695
  %v733 = vpow.pop %v732
  %v734 = vmul.f32 %v652, 1.442695
  %v735 = vpow.pop %v734
  %v736 = vmul.f32 %v653, 1.442695
  %v737 = vpow.pop %v736
  %v738 = vmul.f32 %v654, 1.442695
  %v739 = vpow.pop %v738
  %v740 = vmul.f32 %v655, 1.442695
  %v741 = vpow.pop %v740
  %v742 = vmul.f32 %v656, 1.442695
  %v743 = vpow.pop %v742
  %v744 = vmul.f32 %v657, 1.442695
  %v745 = vpow.pop %v744
  %v746 = vmul.f32 %v658, 1.442695
  %v747 = vpow.pop %v746
  %v748 = vmul.f32 %v659, 1.442695
  %v749 = vpow.pop %v748
  %v750 = vmul.f32 %v660, 1.442695
  %v751 = vpow.pop %v750
  %v752 = vmul.f32 %v661, 1.442695
  %v753 = vpow.pop %v752
  %v754 = vmul.f32 %v662, 1.442695
  %v755 = vpow.pop %v754
  %v756 = vmul.f32 %v663, 1.442695
  %v757 = vpow.pop %v756
  %v758 = vmul.f32 %v664, 1.442695
  %v759 = vpow.pop %v758
  %v760 = vmul.f32 %v665, 1.442695
  %v761 = vpow.pop %v760
  %v762 = vmul.f32 %v666, 1.442695
  %v763 = vpow.pop %v762
  %v764 = vmul.f32 %v667, 1.442695
  %v765 = vpow.pop %v764
  %v766 = vmul.f32 %v668, 1.442695
  %v767 = vpow.pop %v766
  %v768 = vmul.f32 %v669, 1.442695
  %v769 = vpow.pop %v768
  %v770 = vmul.f32 %v670, 1.442695
  %v771 = vpow.pop %v770
  %v772 = vmul.f32 %v671, 1.442695
  %v773 = vpow.pop %v772
  %v774 = vmul.f32 %v672, 1.442695
  %v775 = vpow.pop %v774
  %v776 = vmul.f32 %v673, 1.442695
  %v777 = vpow.pop %v776
  %v778 = vmul.f32 %v674, 1.442695
  %v779 = vpow.pop %v778
  %v780 = vmul.f32 %v675, 1.442695
  %v781 = vpow.pop %v780
  %v782 = vmul.f32 %v676, 1.442695
  %v783 = vpow.pop %v782
  %v784 = vmul.f32 %v677, 1.442695
  %v785 = vpow.pop %v784
  %v786 = vmul.f32 %v678, 1.442695
  %v787 = vpow.pop %v786
  %v788 = vmul.f32 %v679, 1.442695
  %v789 = vpow.pop %v788
  %v790 = vmul.f32 %v680, 1.442695
  %v791 = vpow.pop %v790
  %v792 = vmul.f32 %v681, 1.442695
  %v793 = vpow.pop %v792
  %v794 = vmul.f32 %v682, 1.442695
  %v795 = vpow.pop %v794
  %v796 = vmul.f32 %v683, 1.442695
  %v797 = vpow.pop %v796
  %v798 = vmul.f32 %v684, 1.442695
  %v799 = vpow.pop %v798
  %v800 = vmul.f32 %v685, 1.442695
  %v801 = vpow.pop %v800
  %v802 = vmul.f32 %v686, 1.442695
  %v803 = vpow.pop %v802
  %v804 = vmul.f32 %v687, 1.442695
  %v805 = vpow.pop %v804
  %v806 = vmul.f32 %v688, 1.442695
  %v807 = vpow.pop %v806
  %v808 = vmul.f32 %v689, 1.442695
  %v809 = vpow.pop %v808
  %v810 = vmul.f32 %v690, 1.442695
  %v811 = vpow.pop %v810
  %v812 = vmul.f32 %v691, 1.442695
  %v813 = vpow.pop %v812
  %v814 = vmul.f32 %v692, 1.442695
  %v815 = vpow.pop %v814
  %v816 = vmul.f32 %v693, 1.442695
  %v817 = vpow.pop %v816
  %v818 = vmul.f32 %v694, 1.442695
  %v819 = vpow.pop %v818
  %v820 = vmul.f32 %v695, 1.442695
  %v821 = vpow.pop %v820
  %v822 = vmul.f32 %v696, 1.442695
  %v823 = vpow.pop %v822
  %v824 = vmul.f32 %v697, 1.442695
  %v825 = vpow.pop %v824
  %v826 = vadd.f32 %v699, 1.0
  %v827 = vadd.f32 %v701, 1.0
  %v828 = vadd.f32 %v703, 1.0
  %v829 = vadd.f32 %v705, 1.0
  %v830 = vadd.f32 %v707, 1.0
  %v831 = vadd.f32 %v709, 1.0
  %v832 = vadd.f32 %v711, 1.0
  %v833 = vadd.f32 %v713, 1.0
  %v834 = vadd.f32 %v715, 1.0
  %v835 = vadd.f32 %v717, 1.0
  %v836 = vadd.f32 %v719, 1.0
  %v837 = vadd.f32 %v721, 1.0
  %v838 = vadd.f32 %v723, 1.0
  %v839 = vadd.f32 %v725, 1.0
  %v840 = vadd.f32 %v727, 1.0
  %v841 = vadd.f32 %v729, 1.0
  %v842 = vadd.f32 %v731, 1.0
  %v843 = vadd.f32 %v733, 1.0
  %v844 = vadd.f32 %v735, 1.0
  %v845 = vadd.f32 %v737, 1.0
  %v846 = vadd.f32 %v739, 1.0
  %v847 = vadd.f32 %v741, 1.0
  %v848 = vadd.f32 %v743, 1.0
  %v849 = vadd.f32 %v745, 1.0
  %v850 = vadd.f32 %v747, 1.0
  %v851 = vadd.f32 %v749, 1.0
  %v852 = vadd.f32 %v751, 1.0
  %v853 = vadd.f32 %v753, 1.0
  %v854 = vadd.f32 %v755, 1.0
  %v855 = vadd.f32 %v757, 1.0
  %v856 = vadd.f32 %v759, 1.0
  %v857 = vadd.f32 %v761, 1.0
  %v858 = vadd.f32 %v763, 1.0
  %v859 = vadd.f32 %v765, 1.0
  %v860 = vadd.f32 %v767, 1.0
  %v861 = vadd.f32 %v769, 1.0
  %v862 = vadd.f32 %v771, 1.0
  %v863 = vadd.f32 %v773, 1.0
  %v864 = vadd.f32 %v775, 1.0
  %v865 = vadd.f32 %v777, 1.0
  %v866 = vadd.f32 %v779, 1.0
  %v867 = vadd.f32 %v781, 1.0
  %v868 = vadd.f32 %v783, 1.0
  %v869 = vadd.f32 %v785, 1.0
  %v870 = vadd.f32 %v787, 1.0
  %v871 = vadd.f32 %v789, 1.0
  %v872 = vadd.f32 %v791, 1.0
  %v873 = vadd.f32 %v793, 1.0
  %v874 = vadd.f32 %v795, 1.0
  %v875 = vadd.f32 %v797, 1.0
  %v876 = vadd.f32 %v799, 1.0
  %v877 = vadd.f32 %v801, 1.0
  %v878 = vadd.f32 %v803, 1.0
  %v879 = vadd.f32 %v805, 1.0
  %v880 = vadd.f32 %v807, 1.0
  %v881 = vadd.f32 %v809, 1.0
  %v882 = vadd.f32 %v811, 1.0
  %v883 = vadd.f32 %v813, 1.0
  %v884 = vadd.f32 %v815, 1.0
  %v885 = vadd.f32 %v817, 1.0
  %v886 = vadd.f32 %v819, 1.0
  %v887 = vadd.f32 %v821, 1.0
  %v888 = vadd.f32 %v823, 1.0
  %v889 = vadd.f32 %v825, 1.0
  %v890 = vrcp.pop %v826
  %v891 = vmul.f32 %v826, %v890
  %v892 = vsub.f32 1.0, %v891
  %v893 = vmul.f32 %v890, %v892
  %v894 = vadd.f32 %v890, %v893
  %vm895 = vweird.f32 %v826
  %vm896 = vweird.f32 %v890
  %vm897 = vmor %vm895, %vm896
  %v898 = vsel %vm897, %v890, %v894
  %v899 = vand.u32 2147483647, %v826
  %vm900 = vcmp.eq.f32.partialorder %v899, 8.507059e+37
  %v901 = vand.u32 %v826, 2147483648
  %v902 = vor.u32 1.1754944e-38, %v901
  %v903 = vsel %vm900, %v902, %v898
  %v904 = vmul.f32 1.0, %v903
  %v905 = vrcp.pop %v827
  %v906 = vmul.f32 %v827, %v905
  %v907 = vsub.f32 1.0, %v906
  %v908 = vmul.f32 %v905, %v907
  %v909 = vadd.f32 %v905, %v908
  %vm910 = vweird.f32 %v827
  %vm911 = vweird.f32 %v905
  %vm912 = vmor %vm910, %vm911
  %v913 = vsel %vm912, %v905, %v909
  %v914 = vand.u32 2147483647, %v827
  %vm915 = vcmp.eq.f32.partialorder %v914, 8.507059e+37
  %v916 = vand.u32 %v827, 2147483648
  %v917 = vor.u32 1.1754944e-38, %v916
  %v918 = vsel %vm915, %v917, %v913
  %v919 = vmul.f32 1.0, %v918
  %v920 = vrcp.pop %v828
  %v921 = vmul.f32 %v828, %v920
  %v922 = vsub.f32 1.0, %v921
  %v923 = vmul.f32 %v920, %v922
  %v924 = vadd.f32 %v920, %v923
  %vm925 = vweird.f32 %v828
  %vm926 = vweird.f32 %v920
  %vm927 = vmor %vm925, %vm926
  %v928 = vsel %vm927, %v920, %v924
  %v929 = vand.u32 2147483647, %v828
  %vm930 = vcmp.eq.f32.partialorder %v929, 8.507059e+37
  %v931 = vand.u32 %v828, 2147483648
  %v932 = vor.u32 1.1754944e-38, %v931
  %v933 = vsel %vm930, %v932, %v928
  %v934 = vmul.f32 1.0, %v933
  %v935 = vrcp.pop %v829
  %v936 = vmul.f32 %v829, %v935
  %v937 = vsub.f32 1.0, %v936
  %v938 = vmul.f32 %v935, %v937
  %v939 = vadd.f32 %v935, %v938
  %vm940 = vweird.f32 %v829
  %vm941 = vweird.f32 %v935
  %vm942 = vmor %vm940, %vm941
  %v943 = vsel %vm942, %v935, %v939
  %v944 = vand.u32 2147483647, %v829
  %vm945 = vcmp.eq.f32.partialorder %v944, 8.507059e+37
  %v946 = vand.u32 %v829, 2147483648
  %v947 = vor.u32 1.1754944e-38, %v946
  %v948 = vsel %vm945, %v947, %v943
  %v949 = vmul.f32 1.0, %v948
  %v950 = vrcp.pop %v830
  %v951 = vmul.f32 %v830, %v950
  %v952 = vsub.f32 1.0, %v951
  %v953 = vmul.f32 %v950, %v952
  %v954 = vadd.f32 %v950, %v953
  %vm955 = vweird.f32 %v830
  %vm956 = vweird.f32 %v950
  %vm957 = vmor %vm955, %vm956
  %v958 = vsel %vm957, %v950, %v954
  %v959 = vand.u32 2147483647, %v830
  %vm960 = vcmp.eq.f32.partialorder %v959, 8.507059e+37
  %v961 = vand.u32 %v830, 2147483648
  %v962 = vor.u32 1.1754944e-38, %v961
  %v963 = vsel %vm960, %v962, %v958
  %v964 = vmul.f32 1.0, %v963
  %v965 = vrcp.pop %v831
  %v966 = vmul.f32 %v831, %v965
  %v967 = vsub.f32 1.0, %v966
  %v968 = vmul.f32 %v965, %v967
  %v969 = vadd.f32 %v965, %v968
  %vm970 = vweird.f32 %v831
  %vm971 = vweird.f32 %v965
  %vm972 = vmor %vm970, %vm971
  %v973 = vsel %vm972, %v965, %v969
  %v974 = vand.u32 2147483647, %v831
  %vm975 = vcmp.eq.f32.partialorder %v974, 8.507059e+37
  %v976 = vand.u32 %v831, 2147483648
  %v977 = vor.u32 1.1754944e-38, %v976
  %v978 = vsel %vm975, %v977, %v973
  %v979 = vmul.f32 1.0, %v978
  %v980 = vrcp.pop %v832
  %v981 = vmul.f32 %v832, %v980
  %v982 = vsub.f32 1.0, %v981
  %v983 = vmul.f32 %v980, %v982
  %v984 = vadd.f32 %v980, %v983
  %vm985 = vweird.f32 %v832
  %vm986 = vweird.f32 %v980
  %vm987 = vmor %vm985, %vm986
  %v988 = vsel %vm987, %v980, %v984
  %v989 = vand.u32 2147483647, %v832
  %vm990 = vcmp.eq.f32.partialorder %v989, 8.507059e+37
  %v991 = vand.u32 %v832, 2147483648
  %v992 = vor.u32 1.1754944e-38, %v991
  %v993 = vsel %vm990, %v992, %v988
  %v994 = vmul.f32 1.0, %v993
  %v995 = vrcp.pop %v833
  %v996 = vmul.f32 %v833, %v995
  %v997 = vsub.f32 1.0, %v996
  %v998 = vmul.f32 %v995, %v997
  %v999 = vadd.f32 %v995, %v998
  %vm1000 = vweird.f32 %v833
  %vm1001 = vweird.f32 %v995
  %vm1002 = vmor %vm1000, %vm1001
  %v1003 = vsel %vm1002, %v995, %v999
  %v1004 = vand.u32 2147483647, %v833
  %vm1005 = vcmp.eq.f32.partialorder %v1004, 8.507059e+37
  %v1006 = vand.u32 %v833, 2147483648
  %v1007 = vor.u32 1.1754944e-38, %v1006
  %v1008 = vsel %vm1005, %v1007, %v1003
  %v1009 = vmul.f32 1.0, %v1008
  %v1010 = vrcp.pop %v834
  %v1011 = vmul.f32 %v834, %v1010
  %v1012 = vsub.f32 1.0, %v1011
  %v1013 = vmul.f32 %v1010, %v1012
  %v1014 = vadd.f32 %v1010, %v1013
  %vm1015 = vweird.f32 %v834
  %vm1016 = vweird.f32 %v1010
  %vm1017 = vmor %vm1015, %vm1016
  %v1018 = vsel %vm1017, %v1010, %v1014
  %v1019 = vand.u32 2147483647, %v834
  %vm1020 = vcmp.eq.f32.partialorder %v1019, 8.507059e+37
  %v1021 = vand.u32 %v834, 2147483648
  %v1022 = vor.u32 1.1754944e-38, %v1021
  %v1023 = vsel %vm1020, %v1022, %v1018
  %v1024 = vmul.f32 1.0, %v1023
  %v1025 = vrcp.pop %v835
  %v1026 = vmul.f32 %v835, %v1025
  %v1027 = vsub.f32 1.0, %v1026
  %v1028 = vmul.f32 %v1025, %v1027
  %v1029 = vadd.f32 %v1025, %v1028
  %vm1030 = vweird.f32 %v835
  %vm1031 = vweird.f32 %v1025
  %vm1032 = vmor %vm1030, %vm1031
  %v1033 = vsel %vm1032, %v1025, %v1029
  %v1034 = vand.u32 2147483647, %v835
  %vm1035 = vcmp.eq.f32.partialorder %v1034, 8.507059e+37
  %v1036 = vand.u32 %v835, 2147483648
  %v1037 = vor.u32 1.1754944e-38, %v1036
  %v1038 = vsel %vm1035, %v1037, %v1033
  %v1039 = vmul.f32 1.0, %v1038
  %v1040 = vrcp.pop %v836
  %v1041 = vmul.f32 %v836, %v1040
  %v1042 = vsub.f32 1.0, %v1041
  %v1043 = vmul.f32 %v1040, %v1042
  %v1044 = vadd.f32 %v1040, %v1043
  %vm1045 = vweird.f32 %v836
  %vm1046 = vweird.f32 %v1040
  %vm1047 = vmor %vm1045, %vm1046
  %v1048 = vsel %vm1047, %v1040, %v1044
  %v1049 = vand.u32 2147483647, %v836
  %vm1050 = vcmp.eq.f32.partialorder %v1049, 8.507059e+37
  %v1051 = vand.u32 %v836, 2147483648
  %v1052 = vor.u32 1.1754944e-38, %v1051
  %v1053 = vsel %vm1050, %v1052, %v1048
  %v1054 = vmul.f32 1.0, %v1053
  %v1055 = vrcp.pop %v837
  %v1056 = vmul.f32 %v837, %v1055
  %v1057 = vsub.f32 1.0, %v1056
  %v1058 = vmul.f32 %v1055, %v1057
  %v1059 = vadd.f32 %v1055, %v1058
  %vm1060 = vweird.f32 %v837
  %vm1061 = vweird.f32 %v1055
  %vm1062 = vmor %vm1060, %vm1061
  %v1063 = vsel %vm1062, %v1055, %v1059
  %v1064 = vand.u32 2147483647, %v837
  %vm1065 = vcmp.eq.f32.partialorder %v1064, 8.507059e+37
  %v1066 = vand.u32 %v837, 2147483648
  %v1067 = vor.u32 1.1754944e-38, %v1066
  %v1068 = vsel %vm1065, %v1067, %v1063
  %v1069 = vmul.f32 1.0, %v1068
  %v1070 = vrcp.pop %v838
  %v1071 = vmul.f32 %v838, %v1070
  %v1072 = vsub.f32 1.0, %v1071
  %v1073 = vmul.f32 %v1070, %v1072
  %v1074 = vadd.f32 %v1070, %v1073
  %vm1075 = vweird.f32 %v838
  %vm1076 = vweird.f32 %v1070
  %vm1077 = vmor %vm1075, %vm1076
  %v1078 = vsel %vm1077, %v1070, %v1074
  %v1079 = vand.u32 2147483647, %v838
  %vm1080 = vcmp.eq.f32.partialorder %v1079, 8.507059e+37
  %v1081 = vand.u32 %v838, 2147483648
  %v1082 = vor.u32 1.1754944e-38, %v1081
  %v1083 = vsel %vm1080, %v1082, %v1078
  %v1084 = vmul.f32 1.0, %v1083
  %v1085 = vrcp.pop %v839
  %v1086 = vmul.f32 %v839, %v1085
  %v1087 = vsub.f32 1.0, %v1086
  %v1088 = vmul.f32 %v1085, %v1087
  %v1089 = vadd.f32 %v1085, %v1088
  %vm1090 = vweird.f32 %v839
  %vm1091 = vweird.f32 %v1085
  %vm1092 = vmor %vm1090, %vm1091
  %v1093 = vsel %vm1092, %v1085, %v1089
  %v1094 = vand.u32 2147483647, %v839
  %vm1095 = vcmp.eq.f32.partialorder %v1094, 8.507059e+37
  %v1096 = vand.u32 %v839, 2147483648
  %v1097 = vor.u32 1.1754944e-38, %v1096
  %v1098 = vsel %vm1095, %v1097, %v1093
  %v1099 = vmul.f32 1.0, %v1098
  %v1100 = vrcp.pop %v840
  %v1101 = vmul.f32 %v840, %v1100
  %v1102 = vsub.f32 1.0, %v1101
  %v1103 = vmul.f32 %v1100, %v1102
  %v1104 = vadd.f32 %v1100, %v1103
  %vm1105 = vweird.f32 %v840
  %vm1106 = vweird.f32 %v1100
  %vm1107 = vmor %vm1105, %vm1106
  %v1108 = vsel %vm1107, %v1100, %v1104
  %v1109 = vand.u32 2147483647, %v840
  %vm1110 = vcmp.eq.f32.partialorder %v1109, 8.507059e+37
  %v1111 = vand.u32 %v840, 2147483648
  %v1112 = vor.u32 1.1754944e-38, %v1111
  %v1113 = vsel %vm1110, %v1112, %v1108
  %v1114 = vmul.f32 1.0, %v1113
  %v1115 = vrcp.pop %v841
  %v1116 = vmul.f32 %v841, %v1115
  %v1117 = vsub.f32 1.0, %v1116
  %v1118 = vmul.f32 %v1115, %v1117
  %v1119 = vadd.f32 %v1115, %v1118
  %vm1120 = vweird.f32 %v841
  %vm1121 = vweird.f32 %v1115
  %vm1122 = vmor %vm1120, %vm1121
  %v1123 = vsel %vm1122, %v1115, %v1119
  %v1124 = vand.u32 2147483647, %v841
  %vm1125 = vcmp.eq.f32.partialorder %v1124, 8.507059e+37
  %v1126 = vand.u32 %v841, 2147483648
  %v1127 = vor.u32 1.1754944e-38, %v1126
  %v1128 = vsel %vm1125, %v1127, %v1123
  %v1129 = vmul.f32 1.0, %v1128
  %v1130 = vrcp.pop %v842
  %v1131 = vmul.f32 %v842, %v1130
  %v1132 = vsub.f32 1.0, %v1131
  %v1133 = vmul.f32 %v1130, %v1132
  %v1134 = vadd.f32 %v1130, %v1133
  %vm1135 = vweird.f32 %v842
  %vm1136 = vweird.f32 %v1130
  %vm1137 = vmor %vm1135, %vm1136
  %v1138 = vsel %vm1137, %v1130, %v1134
  %v1139 = vand.u32 2147483647, %v842
  %vm1140 = vcmp.eq.f32.partialorder %v1139, 8.507059e+37
  %v1141 = vand.u32 %v842, 2147483648
  %v1142 = vor.u32 1.1754944e-38, %v1141
  %v1143 = vsel %vm1140, %v1142, %v1138
  %v1144 = vmul.f32 1.0, %v1143
  %v1145 = vrcp.pop %v843
  %v1146 = vmul.f32 %v843, %v1145
  %v1147 = vsub.f32 1.0, %v1146
  %v1148 = vmul.f32 %v1145, %v1147
  %v1149 = vadd.f32 %v1145, %v1148
  %vm1150 = vweird.f32 %v843
  %vm1151 = vweird.f32 %v1145
  %vm1152 = vmor %vm1150, %vm1151
  %v1153 = vsel %vm1152, %v1145, %v1149
  %v1154 = vand.u32 2147483647, %v843
  %vm1155 = vcmp.eq.f32.partialorder %v1154, 8.507059e+37
  %v1156 = vand.u32 %v843, 2147483648
  %v1157 = vor.u32 1.1754944e-38, %v1156
  %v1158 = vsel %vm1155, %v1157, %v1153
  %v1159 = vmul.f32 1.0, %v1158
  %v1160 = vrcp.pop %v844
  %v1161 = vmul.f32 %v844, %v1160
  %v1162 = vsub.f32 1.0, %v1161
  %v1163 = vmul.f32 %v1160, %v1162
  %v1164 = vadd.f32 %v1160, %v1163
  %vm1165 = vweird.f32 %v844
  %vm1166 = vweird.f32 %v1160
  %vm1167 = vmor %vm1165, %vm1166
  %v1168 = vsel %vm1167, %v1160, %v1164
  %v1169 = vand.u32 2147483647, %v844
  %vm1170 = vcmp.eq.f32.partialorder %v1169, 8.507059e+37
  %v1171 = vand.u32 %v844, 2147483648
  %v1172 = vor.u32 1.1754944e-38, %v1171
  %v1173 = vsel %vm1170, %v1172, %v1168
  %v1174 = vmul.f32 1.0, %v1173
  %v1175 = vrcp.pop %v845
  %v1176 = vmul.f32 %v845, %v1175
  %v1177 = vsub.f32 1.0, %v1176
  %v1178 = vmul.f32 %v1175, %v1177
  %v1179 = vadd.f32 %v1175, %v1178
  %vm1180 = vweird.f32 %v845
  %vm1181 = vweird.f32 %v1175
  %vm1182 = vmor %vm1180, %vm1181
  %v1183 = vsel %vm1182, %v1175, %v1179
  %v1184 = vand.u32 2147483647, %v845
  %vm1185 = vcmp.eq.f32.partialorder %v1184, 8.507059e+37
  %v1186 = vand.u32 %v845, 2147483648
  %v1187 = vor.u32 1.1754944e-38, %v1186
  %v1188 = vsel %vm1185, %v1187, %v1183
  %v1189 = vmul.f32 1.0, %v1188
  %v1190 = vrcp.pop %v846
  %v1191 = vmul.f32 %v846, %v1190
  %v1192 = vsub.f32 1.0, %v1191
  %v1193 = vmul.f32 %v1190, %v1192
  %v1194 = vadd.f32 %v1190, %v1193
  %vm1195 = vweird.f32 %v846
  %vm1196 = vweird.f32 %v1190
  %vm1197 = vmor %vm1195, %vm1196
  %v1198 = vsel %vm1197, %v1190, %v1194
  %v1199 = vand.u32 2147483647, %v846
  %vm1200 = vcmp.eq.f32.partialorder %v1199, 8.507059e+37
  %v1201 = vand.u32 %v846, 2147483648
  %v1202 = vor.u32 1.1754944e-38, %v1201
  %v1203 = vsel %vm1200, %v1202, %v1198
  %v1204 = vmul.f32 1.0, %v1203
  %v1205 = vrcp.pop %v847
  %v1206 = vmul.f32 %v847, %v1205
  %v1207 = vsub.f32 1.0, %v1206
  %v1208 = vmul.f32 %v1205, %v1207
  %v1209 = vadd.f32 %v1205, %v1208
  %vm1210 = vweird.f32 %v847
  %vm1211 = vweird.f32 %v1205
  %vm1212 = vmor %vm1210, %vm1211
  %v1213 = vsel %vm1212, %v1205, %v1209
  %v1214 = vand.u32 2147483647, %v847
  %vm1215 = vcmp.eq.f32.partialorder %v1214, 8.507059e+37
  %v1216 = vand.u32 %v847, 2147483648
  %v1217 = vor.u32 1.1754944e-38, %v1216
  %v1218 = vsel %vm1215, %v1217, %v1213
  %v1219 = vmul.f32 1.0, %v1218
  %v1220 = vrcp.pop %v848
  %v1221 = vmul.f32 %v848, %v1220
  %v1222 = vsub.f32 1.0, %v1221
  %v1223 = vmul.f32 %v1220, %v1222
  %v1224 = vadd.f32 %v1220, %v1223
  %vm1225 = vweird.f32 %v848
  %vm1226 = vweird.f32 %v1220
  %vm1227 = vmor %vm1225, %vm1226
  %v1228 = vsel %vm1227, %v1220, %v1224
  %v1229 = vand.u32 2147483647, %v848
  %vm1230 = vcmp.eq.f32.partialorder %v1229, 8.507059e+37
  %v1231 = vand.u32 %v848, 2147483648
  %v1232 = vor.u32 1.1754944e-38, %v1231
  %v1233 = vsel %vm1230, %v1232, %v1228
  %v1234 = vmul.f32 1.0, %v1233
  %v1235 = vrcp.pop %v849
  %v1236 = vmul.f32 %v849, %v1235
  %v1237 = vsub.f32 1.0, %v1236
  %v1238 = vmul.f32 %v1235, %v1237
  %v1239 = vadd.f32 %v1235, %v1238
  %vm1240 = vweird.f32 %v849
  %vm1241 = vweird.f32 %v1235
  %vm1242 = vmor %vm1240, %vm1241
  %v1243 = vsel %vm1242, %v1235, %v1239
  %v1244 = vand.u32 2147483647, %v849
  %vm1245 = vcmp.eq.f32.partialorder %v1244, 8.507059e+37
  %v1246 = vand.u32 %v849, 2147483648
  %v1247 = vor.u32 1.1754944e-38, %v1246
  %v1248 = vsel %vm1245, %v1247, %v1243
  %v1249 = vmul.f32 1.0, %v1248
  %v1250 = vrcp.pop %v850
  %v1251 = vmul.f32 %v850, %v1250
  %v1252 = vsub.f32 1.0, %v1251
  %v1253 = vmul.f32 %v1250, %v1252
  %v1254 = vadd.f32 %v1250, %v1253
  %vm1255 = vweird.f32 %v850
  %vm1256 = vweird.f32 %v1250
  %vm1257 = vmor %vm1255, %vm1256
  %v1258 = vsel %vm1257, %v1250, %v1254
  %v1259 = vand.u32 2147483647, %v850
  %vm1260 = vcmp.eq.f32.partialorder %v1259, 8.507059e+37
  %v1261 = vand.u32 %v850, 2147483648
  %v1262 = vor.u32 1.1754944e-38, %v1261
  %v1263 = vsel %vm1260, %v1262, %v1258
  %v1264 = vmul.f32 1.0, %v1263
  %v1265 = vrcp.pop %v851
  %v1266 = vmul.f32 %v851, %v1265
  %v1267 = vsub.f32 1.0, %v1266
  %v1268 = vmul.f32 %v1265, %v1267
  %v1269 = vadd.f32 %v1265, %v1268
  %vm1270 = vweird.f32 %v851
  %vm1271 = vweird.f32 %v1265
  %vm1272 = vmor %vm1270, %vm1271
  %v1273 = vsel %vm1272, %v1265, %v1269
  %v1274 = vand.u32 2147483647, %v851
  %vm1275 = vcmp.eq.f32.partialorder %v1274, 8.507059e+37
  %v1276 = vand.u32 %v851, 2147483648
  %v1277 = vor.u32 1.1754944e-38, %v1276
  %v1278 = vsel %vm1275, %v1277, %v1273
  %v1279 = vmul.f32 1.0, %v1278
  %v1280 = vrcp.pop %v852
  %v1281 = vmul.f32 %v852, %v1280
  %v1282 = vsub.f32 1.0, %v1281
  %v1283 = vmul.f32 %v1280, %v1282
  %v1284 = vadd.f32 %v1280, %v1283
  %vm1285 = vweird.f32 %v852
  %vm1286 = vweird.f32 %v1280
  %vm1287 = vmor %vm1285, %vm1286
  %v1288 = vsel %vm1287, %v1280, %v1284
  %v1289 = vand.u32 2147483647, %v852
  %vm1290 = vcmp.eq.f32.partialorder %v1289, 8.507059e+37
  %v1291 = vand.u32 %v852, 2147483648
  %v1292 = vor.u32 1.1754944e-38, %v1291
  %v1293 = vsel %vm1290, %v1292, %v1288
  %v1294 = vmul.f32 1.0, %v1293
  %v1295 = vrcp.pop %v853
  %v1296 = vmul.f32 %v853, %v1295
  %v1297 = vsub.f32 1.0, %v1296
  %v1298 = vmul.f32 %v1295, %v1297
  %v1299 = vadd.f32 %v1295, %v1298
  %vm1300 = vweird.f32 %v853
  %vm1301 = vweird.f32 %v1295
  %vm1302 = vmor %vm1300, %vm1301
  %v1303 = vsel %vm1302, %v1295, %v1299
  %v1304 = vand.u32 2147483647, %v853
  %vm1305 = vcmp.eq.f32.partialorder %v1304, 8.507059e+37
  %v1306 = vand.u32 %v853, 2147483648
  %v1307 = vor.u32 1.1754944e-38, %v1306
  %v1308 = vsel %vm1305, %v1307, %v1303
  %v1309 = vmul.f32 1.0, %v1308
  %v1310 = vrcp.pop %v854
  %v1311 = vmul.f32 %v854, %v1310
  %v1312 = vsub.f32 1.0, %v1311
  %v1313 = vmul.f32 %v1310, %v1312
  %v1314 = vadd.f32 %v1310, %v1313
  %vm1315 = vweird.f32 %v854
  %vm1316 = vweird.f32 %v1310
  %vm1317 = vmor %vm1315, %vm1316
  %v1318 = vsel %vm1317, %v1310, %v1314
  %v1319 = vand.u32 2147483647, %v854
  %vm1320 = vcmp.eq.f32.partialorder %v1319, 8.507059e+37
  %v1321 = vand.u32 %v854, 2147483648
  %v1322 = vor.u32 1.1754944e-38, %v1321
  %v1323 = vsel %vm1320, %v1322, %v1318
  %v1324 = vmul.f32 1.0, %v1323
  %v1325 = vrcp.pop %v855
  %v1326 = vmul.f32 %v855, %v1325
  %v1327 = vsub.f32 1.0, %v1326
  %v1328 = vmul.f32 %v1325, %v1327
  %v1329 = vadd.f32 %v1325, %v1328
  %vm1330 = vweird.f32 %v855
  %vm1331 = vweird.f32 %v1325
  %vm1332 = vmor %vm1330, %vm1331
  %v1333 = vsel %vm1332, %v1325, %v1329
  %v1334 = vand.u32 2147483647, %v855
  %vm1335 = vcmp.eq.f32.partialorder %v1334, 8.507059e+37
  %v1336 = vand.u32 %v855, 2147483648
  %v1337 = vor.u32 1.1754944e-38, %v1336
  %v1338 = vsel %vm1335, %v1337, %v1333
  %v1339 = vmul.f32 1.0, %v1338
  %v1340 = vrcp.pop %v856
  %v1341 = vmul.f32 %v856, %v1340
  %v1342 = vsub.f32 1.0, %v1341
  %v1343 = vmul.f32 %v1340, %v1342
  %v1344 = vadd.f32 %v1340, %v1343
  %vm1345 = vweird.f32 %v856
  %vm1346 = vweird.f32 %v1340
  %vm1347 = vmor %vm1345, %vm1346
  %v1348 = vsel %vm1347, %v1340, %v1344
  %v1349 = vand.u32 2147483647, %v856
  %vm1350 = vcmp.eq.f32.partialorder %v1349, 8.507059e+37
  %v1351 = vand.u32 %v856, 2147483648
  %v1352 = vor.u32 1.1754944e-38, %v1351
  %v1353 = vsel %vm1350, %v1352, %v1348
  %v1354 = vmul.f32 1.0, %v1353
  %v1355 = vrcp.pop %v857
  %v1356 = vmul.f32 %v857, %v1355
  %v1357 = vsub.f32 1.0, %v1356
  %v1358 = vmul.f32 %v1355, %v1357
  %v1359 = vadd.f32 %v1355, %v1358
  %vm1360 = vweird.f32 %v857
  %vm1361 = vweird.f32 %v1355
  %vm1362 = vmor %vm1360, %vm1361
  %v1363 = vsel %vm1362, %v1355, %v1359
  %v1364 = vand.u32 2147483647, %v857
  %vm1365 = vcmp.eq.f32.partialorder %v1364, 8.507059e+37
  %v1366 = vand.u32 %v857, 2147483648
  %v1367 = vor.u32 1.1754944e-38, %v1366
  %v1368 = vsel %vm1365, %v1367, %v1363
  %v1369 = vmul.f32 1.0, %v1368
  %v1370 = vrcp.pop %v858
  %v1371 = vmul.f32 %v858, %v1370
  %v1372 = vsub.f32 1.0, %v1371
  %v1373 = vmul.f32 %v1370, %v1372
  %v1374 = vadd.f32 %v1370, %v1373
  %vm1375 = vweird.f32 %v858
  %vm1376 = vweird.f32 %v1370
  %vm1377 = vmor %vm1375, %vm1376
  %v1378 = vsel %vm1377, %v1370, %v1374
  %v1379 = vand.u32 2147483647, %v858
  %vm1380 = vcmp.eq.f32.partialorder %v1379, 8.507059e+37
  %v1381 = vand.u32 %v858, 2147483648
  %v1382 = vor.u32 1.1754944e-38, %v1381
  %v1383 = vsel %vm1380, %v1382, %v1378
  %v1384 = vmul.f32 1.0, %v1383
  %v1385 = vrcp.pop %v859
  %v1386 = vmul.f32 %v859, %v1385
  %v1387 = vsub.f32 1.0, %v1386
  %v1388 = vmul.f32 %v1385, %v1387
  %v1389 = vadd.f32 %v1385, %v1388
  %vm1390 = vweird.f32 %v859
  %vm1391 = vweird.f32 %v1385
  %vm1392 = vmor %vm1390, %vm1391
  %v1393 = vsel %vm1392, %v1385, %v1389
  %v1394 = vand.u32 2147483647, %v859
  %vm1395 = vcmp.eq.f32.partialorder %v1394, 8.507059e+37
  %v1396 = vand.u32 %v859, 2147483648
  %v1397 = vor.u32 1.1754944e-38, %v1396
  %v1398 = vsel %vm1395, %v1397, %v1393
  %v1399 = vmul.f32 1.0, %v1398
  %v1400 = vrcp.pop %v860
  %v1401 = vmul.f32 %v860, %v1400
  %v1402 = vsub.f32 1.0, %v1401
  %v1403 = vmul.f32 %v1400, %v1402
  %v1404 = vadd.f32 %v1400, %v1403
  %vm1405 = vweird.f32 %v860
  %vm1406 = vweird.f32 %v1400
  %vm1407 = vmor %vm1405, %vm1406
  %v1408 = vsel %vm1407, %v1400, %v1404
  %v1409 = vand.u32 2147483647, %v860
  %vm1410 = vcmp.eq.f32.partialorder %v1409, 8.507059e+37
  %v1411 = vand.u32 %v860, 2147483648
  %v1412 = vor.u32 1.1754944e-38, %v1411
  %v1413 = vsel %vm1410, %v1412, %v1408
  %v1414 = vmul.f32 1.0, %v1413
  %v1415 = vrcp.pop %v861
  %v1416 = vmul.f32 %v861, %v1415
  %v1417 = vsub.f32 1.0, %v1416
  %v1418 = vmul.f32 %v1415, %v1417
  %v1419 = vadd.f32 %v1415, %v1418
  %vm1420 = vweird.f32 %v861
  %vm1421 = vweird.f32 %v1415
  %vm1422 = vmor %vm1420, %vm1421
  %v1423 = vsel %vm1422, %v1415, %v1419
  %v1424 = vand.u32 2147483647, %v861
  %vm1425 = vcmp.eq.f32.partialorder %v1424, 8.507059e+37
  %v1426 = vand.u32 %v861, 2147483648
  %v1427 = vor.u32 1.1754944e-38, %v1426
  %v1428 = vsel %vm1425, %v1427, %v1423
  %v1429 = vmul.f32 1.0, %v1428
  %v1430 = vrcp.pop %v862
  %v1431 = vmul.f32 %v862, %v1430
  %v1432 = vsub.f32 1.0, %v1431
  %v1433 = vmul.f32 %v1430, %v1432
  %v1434 = vadd.f32 %v1430, %v1433
  %vm1435 = vweird.f32 %v862
  %vm1436 = vweird.f32 %v1430
  %vm1437 = vmor %vm1435, %vm1436
  %v1438 = vsel %vm1437, %v1430, %v1434
  %v1439 = vand.u32 2147483647, %v862
  %vm1440 = vcmp.eq.f32.partialorder %v1439, 8.507059e+37
  %v1441 = vand.u32 %v862, 2147483648
  %v1442 = vor.u32 1.1754944e-38, %v1441
  %v1443 = vsel %vm1440, %v1442, %v1438
  %v1444 = vmul.f32 1.0, %v1443
  %v1445 = vrcp.pop %v863
  %v1446 = vmul.f32 %v863, %v1445
  %v1447 = vsub.f32 1.0, %v1446
  %v1448 = vmul.f32 %v1445, %v1447
  %v1449 = vadd.f32 %v1445, %v1448
  %vm1450 = vweird.f32 %v863
  %vm1451 = vweird.f32 %v1445
  %vm1452 = vmor %vm1450, %vm1451
  %v1453 = vsel %vm1452, %v1445, %v1449
  %v1454 = vand.u32 2147483647, %v863
  %vm1455 = vcmp.eq.f32.partialorder %v1454, 8.507059e+37
  %v1456 = vand.u32 %v863, 2147483648
  %v1457 = vor.u32 1.1754944e-38, %v1456
  %v1458 = vsel %vm1455, %v1457, %v1453
  %v1459 = vmul.f32 1.0, %v1458
  %v1460 = vrcp.pop %v864
  %v1461 = vmul.f32 %v864, %v1460
  %v1462 = vsub.f32 1.0, %v1461
  %v1463 = vmul.f32 %v1460, %v1462
  %v1464 = vadd.f32 %v1460, %v1463
  %vm1465 = vweird.f32 %v864
  %vm1466 = vweird.f32 %v1460
  %vm1467 = vmor %vm1465, %vm1466
  %v1468 = vsel %vm1467, %v1460, %v1464
  %v1469 = vand.u32 2147483647, %v864
  %vm1470 = vcmp.eq.f32.partialorder %v1469, 8.507059e+37
  %v1471 = vand.u32 %v864, 2147483648
  %v1472 = vor.u32 1.1754944e-38, %v1471
  %v1473 = vsel %vm1470, %v1472, %v1468
  %v1474 = vmul.f32 1.0, %v1473
  %v1475 = vrcp.pop %v865
  %v1476 = vmul.f32 %v865, %v1475
  %v1477 = vsub.f32 1.0, %v1476
  %v1478 = vmul.f32 %v1475, %v1477
  %v1479 = vadd.f32 %v1475, %v1478
  %vm1480 = vweird.f32 %v865
  %vm1481 = vweird.f32 %v1475
  %vm1482 = vmor %vm1480, %vm1481
  %v1483 = vsel %vm1482, %v1475, %v1479
  %v1484 = vand.u32 2147483647, %v865
  %vm1485 = vcmp.eq.f32.partialorder %v1484, 8.507059e+37
  %v1486 = vand.u32 %v865, 2147483648
  %v1487 = vor.u32 1.1754944e-38, %v1486
  %v1488 = vsel %vm1485, %v1487, %v1483
  %v1489 = vmul.f32 1.0, %v1488
  %v1490 = vrcp.pop %v866
  %v1491 = vmul.f32 %v866, %v1490
  %v1492 = vsub.f32 1.0, %v1491
  %v1493 = vmul.f32 %v1490, %v1492
  %v1494 = vadd.f32 %v1490, %v1493
  %vm1495 = vweird.f32 %v866
  %vm1496 = vweird.f32 %v1490
  %vm1497 = vmor %vm1495, %vm1496
  %v1498 = vsel %vm1497, %v1490, %v1494
  %v1499 = vand.u32 2147483647, %v866
  %vm1500 = vcmp.eq.f32.partialorder %v1499, 8.507059e+37
  %v1501 = vand.u32 %v866, 2147483648
  %v1502 = vor.u32 1.1754944e-38, %v1501
  %v1503 = vsel %vm1500, %v1502, %v1498
  %v1504 = vmul.f32 1.0, %v1503
  %v1505 = vrcp.pop %v867
  %v1506 = vmul.f32 %v867, %v1505
  %v1507 = vsub.f32 1.0, %v1506
  %v1508 = vmul.f32 %v1505, %v1507
  %v1509 = vadd.f32 %v1505, %v1508
  %vm1510 = vweird.f32 %v867
  %vm1511 = vweird.f32 %v1505
  %vm1512 = vmor %vm1510, %vm1511
  %v1513 = vsel %vm1512, %v1505, %v1509
  %v1514 = vand.u32 2147483647, %v867
  %vm1515 = vcmp.eq.f32.partialorder %v1514, 8.507059e+37
  %v1516 = vand.u32 %v867, 2147483648
  %v1517 = vor.u32 1.1754944e-38, %v1516
  %v1518 = vsel %vm1515, %v1517, %v1513
  %v1519 = vmul.f32 1.0, %v1518
  %v1520 = vrcp.pop %v868
  %v1521 = vmul.f32 %v868, %v1520
  %v1522 = vsub.f32 1.0, %v1521
  %v1523 = vmul.f32 %v1520, %v1522
  %v1524 = vadd.f32 %v1520, %v1523
  %vm1525 = vweird.f32 %v868
  %vm1526 = vweird.f32 %v1520
  %vm1527 = vmor %vm1525, %vm1526
  %v1528 = vsel %vm1527, %v1520, %v1524
  %v1529 = vand.u32 2147483647, %v868
  %vm1530 = vcmp.eq.f32.partialorder %v1529, 8.507059e+37
  %v1531 = vand.u32 %v868, 2147483648
  %v1532 = vor.u32 1.1754944e-38, %v1531
  %v1533 = vsel %vm1530, %v1532, %v1528
  %v1534 = vmul.f32 1.0, %v1533
  %v1535 = vrcp.pop %v869
  %v1536 = vmul.f32 %v869, %v1535
  %v1537 = vsub.f32 1.0, %v1536
  %v1538 = vmul.f32 %v1535, %v1537
  %v1539 = vadd.f32 %v1535, %v1538
  %vm1540 = vweird.f32 %v869
  %vm1541 = vweird.f32 %v1535
  %vm1542 = vmor %vm1540, %vm1541
  %v1543 = vsel %vm1542, %v1535, %v1539
  %v1544 = vand.u32 2147483647, %v869
  %vm1545 = vcmp.eq.f32.partialorder %v1544, 8.507059e+37
  %v1546 = vand.u32 %v869, 2147483648
  %v1547 = vor.u32 1.1754944e-38, %v1546
  %v1548 = vsel %vm1545, %v1547, %v1543
  %v1549 = vmul.f32 1.0, %v1548
  %v1550 = vrcp.pop %v870
  %v1551 = vmul.f32 %v870, %v1550
  %v1552 = vsub.f32 1.0, %v1551
  %v1553 = vmul.f32 %v1550, %v1552
  %v1554 = vadd.f32 %v1550, %v1553
  %vm1555 = vweird.f32 %v870
  %vm1556 = vweird.f32 %v1550
  %vm1557 = vmor %vm1555, %vm1556
  %v1558 = vsel %vm1557, %v1550, %v1554
  %v1559 = vand.u32 2147483647, %v870
  %vm1560 = vcmp.eq.f32.partialorder %v1559, 8.507059e+37
  %v1561 = vand.u32 %v870, 2147483648
  %v1562 = vor.u32 1.1754944e-38, %v1561
  %v1563 = vsel %vm1560, %v1562, %v1558
  %v1564 = vmul.f32 1.0, %v1563
  %v1565 = vrcp.pop %v871
  %v1566 = vmul.f32 %v871, %v1565
  %v1567 = vsub.f32 1.0, %v1566
  %v1568 = vmul.f32 %v1565, %v1567
  %v1569 = vadd.f32 %v1565, %v1568
  %vm1570 = vweird.f32 %v871
  %vm1571 = vweird.f32 %v1565
  %vm1572 = vmor %vm1570, %vm1571
  %v1573 = vsel %vm1572, %v1565, %v1569
  %v1574 = vand.u32 2147483647, %v871
  %vm1575 = vcmp.eq.f32.partialorder %v1574, 8.507059e+37
  %v1576 = vand.u32 %v871, 2147483648
  %v1577 = vor.u32 1.1754944e-38, %v1576
  %v1578 = vsel %vm1575, %v1577, %v1573
  %v1579 = vmul.f32 1.0, %v1578
  %v1580 = vrcp.pop %v872
  %v1581 = vmul.f32 %v872, %v1580
  %v1582 = vsub.f32 1.0, %v1581
  %v1583 = vmul.f32 %v1580, %v1582
  %v1584 = vadd.f32 %v1580, %v1583
  %vm1585 = vweird.f32 %v872
  %vm1586 = vweird.f32 %v1580
  %vm1587 = vmor %vm1585, %vm1586
  %v1588 = vsel %vm1587, %v1580, %v1584
  %v1589 = vand.u32 2147483647, %v872
  %vm1590 = vcmp.eq.f32.partialorder %v1589, 8.507059e+37
  %v1591 = vand.u32 %v872, 2147483648
  %v1592 = vor.u32 1.1754944e-38, %v1591
  %v1593 = vsel %vm1590, %v1592, %v1588
  %v1594 = vmul.f32 1.0, %v1593
  %v1595 = vrcp.pop %v873
  %v1596 = vmul.f32 %v873, %v1595
  %v1597 = vsub.f32 1.0, %v1596
  %v1598 = vmul.f32 %v1595, %v1597
  %v1599 = vadd.f32 %v1595, %v1598
  %vm1600 = vweird.f32 %v873
  %vm1601 = vweird.f32 %v1595
  %vm1602 = vmor %vm1600, %vm1601
  %v1603 = vsel %vm1602, %v1595, %v1599
  %v1604 = vand.u32 2147483647, %v873
  %vm1605 = vcmp.eq.f32.partialorder %v1604, 8.507059e+37
  %v1606 = vand.u32 %v873, 2147483648
  %v1607 = vor.u32 1.1754944e-38, %v1606
  %v1608 = vsel %vm1605, %v1607, %v1603
  %v1609 = vmul.f32 1.0, %v1608
  %v1610 = vrcp.pop %v874
  %v1611 = vmul.f32 %v874, %v1610
  %v1612 = vsub.f32 1.0, %v1611
  %v1613 = vmul.f32 %v1610, %v1612
  %v1614 = vadd.f32 %v1610, %v1613
  %vm1615 = vweird.f32 %v874
  %vm1616 = vweird.f32 %v1610
  %vm1617 = vmor %vm1615, %vm1616
  %v1618 = vsel %vm1617, %v1610, %v1614
  %v1619 = vand.u32 2147483647, %v874
  %vm1620 = vcmp.eq.f32.partialorder %v1619, 8.507059e+37
  %v1621 = vand.u32 %v874, 2147483648
  %v1622 = vor.u32 1.1754944e-38, %v1621
  %v1623 = vsel %vm1620, %v1622, %v1618
  %v1624 = vmul.f32 1.0, %v1623
  %v1625 = vrcp.pop %v875
  %v1626 = vmul.f32 %v875, %v1625
  %v1627 = vsub.f32 1.0, %v1626
  %v1628 = vmul.f32 %v1625, %v1627
  %v1629 = vadd.f32 %v1625, %v1628
  %vm1630 = vweird.f32 %v875
  %vm1631 = vweird.f32 %v1625
  %vm1632 = vmor %vm1630, %vm1631
  %v1633 = vsel %vm1632, %v1625, %v1629
  %v1634 = vand.u32 2147483647, %v875
  %vm1635 = vcmp.eq.f32.partialorder %v1634, 8.507059e+37
  %v1636 = vand.u32 %v875, 2147483648
  %v1637 = vor.u32 1.1754944e-38, %v1636
  %v1638 = vsel %vm1635, %v1637, %v1633
  %v1639 = vmul.f32 1.0, %v1638
  %v1640 = vrcp.pop %v876
  %v1641 = vmul.f32 %v876, %v1640
  %v1642 = vsub.f32 1.0, %v1641
  %v1643 = vmul.f32 %v1640, %v1642
  %v1644 = vadd.f32 %v1640, %v1643
  %vm1645 = vweird.f32 %v876
  %vm1646 = vweird.f32 %v1640
  %vm1647 = vmor %vm1645, %vm1646
  %v1648 = vsel %vm1647, %v1640, %v1644
  %v1649 = vand.u32 2147483647, %v876
  %vm1650 = vcmp.eq.f32.partialorder %v1649, 8.507059e+37
  %v1651 = vand.u32 %v876, 2147483648
  %v1652 = vor.u32 1.1754944e-38, %v1651
  %v1653 = vsel %vm1650, %v1652, %v1648
  %v1654 = vmul.f32 1.0, %v1653
  %v1655 = vrcp.pop %v877
  %v1656 = vmul.f32 %v877, %v1655
  %v1657 = vsub.f32 1.0, %v1656
  %v1658 = vmul.f32 %v1655, %v1657
  %v1659 = vadd.f32 %v1655, %v1658
  %vm1660 = vweird.f32 %v877
  %vm1661 = vweird.f32 %v1655
  %vm1662 = vmor %vm1660, %vm1661
  %v1663 = vsel %vm1662, %v1655, %v1659
  %v1664 = vand.u32 2147483647, %v877
  %vm1665 = vcmp.eq.f32.partialorder %v1664, 8.507059e+37
  %v1666 = vand.u32 %v877, 2147483648
  %v1667 = vor.u32 1.1754944e-38, %v1666
  %v1668 = vsel %vm1665, %v1667, %v1663
  %v1669 = vmul.f32 1.0, %v1668
  %v1670 = vrcp.pop %v878
  %v1671 = vmul.f32 %v878, %v1670
  %v1672 = vsub.f32 1.0, %v1671
  %v1673 = vmul.f32 %v1670, %v1672
  %v1674 = vadd.f32 %v1670, %v1673
  %vm1675 = vweird.f32 %v878
  %vm1676 = vweird.f32 %v1670
  %vm1677 = vmor %vm1675, %vm1676
  %v1678 = vsel %vm1677, %v1670, %v1674
  %v1679 = vand.u32 2147483647, %v878
  %vm1680 = vcmp.eq.f32.partialorder %v1679, 8.507059e+37
  %v1681 = vand.u32 %v878, 2147483648
  %v1682 = vor.u32 1.1754944e-38, %v1681
  %v1683 = vsel %vm1680, %v1682, %v1678
  %v1684 = vmul.f32 1.0, %v1683
  %v1685 = vrcp.pop %v879
  %v1686 = vmul.f32 %v879, %v1685
  %v1687 = vsub.f32 1.0, %v1686
  %v1688 = vmul.f32 %v1685, %v1687
  %v1689 = vadd.f32 %v1685, %v1688
  %vm1690 = vweird.f32 %v879
  %vm1691 = vweird.f32 %v1685
  %vm1692 = vmor %vm1690, %vm1691
  %v1693 = vsel %vm1692, %v1685, %v1689
  %v1694 = vand.u32 2147483647, %v879
  %vm1695 = vcmp.eq.f32.partialorder %v1694, 8.507059e+37
  %v1696 = vand.u32 %v879, 2147483648
  %v1697 = vor.u32 1.1754944e-38, %v1696
  %v1698 = vsel %vm1695, %v1697, %v1693
  %v1699 = vmul.f32 1.0, %v1698
  %v1700 = vrcp.pop %v880
  %v1701 = vmul.f32 %v880, %v1700
  %v1702 = vsub.f32 1.0, %v1701
  %v1703 = vmul.f32 %v1700, %v1702
  %v1704 = vadd.f32 %v1700, %v1703
  %vm1705 = vweird.f32 %v880
  %vm1706 = vweird.f32 %v1700
  %vm1707 = vmor %vm1705, %vm1706
  %v1708 = vsel %vm1707, %v1700, %v1704
  %v1709 = vand.u32 2147483647, %v880
  %vm1710 = vcmp.eq.f32.partialorder %v1709, 8.507059e+37
  %v1711 = vand.u32 %v880, 2147483648
  %v1712 = vor.u32 1.1754944e-38, %v1711
  %v1713 = vsel %vm1710, %v1712, %v1708
  %v1714 = vmul.f32 1.0, %v1713
  %v1715 = vrcp.pop %v881
  %v1716 = vmul.f32 %v881, %v1715
  %v1717 = vsub.f32 1.0, %v1716
  %v1718 = vmul.f32 %v1715, %v1717
  %v1719 = vadd.f32 %v1715, %v1718
  %vm1720 = vweird.f32 %v881
  %vm1721 = vweird.f32 %v1715
  %vm1722 = vmor %vm1720, %vm1721
  %v1723 = vsel %vm1722, %v1715, %v1719
  %v1724 = vand.u32 2147483647, %v881
  %vm1725 = vcmp.eq.f32.partialorder %v1724, 8.507059e+37
  %v1726 = vand.u32 %v881, 2147483648
  %v1727 = vor.u32 1.1754944e-38, %v1726
  %v1728 = vsel %vm1725, %v1727, %v1723
  %v1729 = vmul.f32 1.0, %v1728
  %v1730 = vrcp.pop %v882
  %v1731 = vmul.f32 %v882, %v1730
  %v1732 = vsub.f32 1.0, %v1731
  %v1733 = vmul.f32 %v1730, %v1732
  %v1734 = vadd.f32 %v1730, %v1733
  %vm1735 = vweird.f32 %v882
  %vm1736 = vweird.f32 %v1730
  %vm1737 = vmor %vm1735, %vm1736
  %v1738 = vsel %vm1737, %v1730, %v1734
  %v1739 = vand.u32 2147483647, %v882
  %vm1740 = vcmp.eq.f32.partialorder %v1739, 8.507059e+37
  %v1741 = vand.u32 %v882, 2147483648
  %v1742 = vor.u32 1.1754944e-38, %v1741
  %v1743 = vsel %vm1740, %v1742, %v1738
  %v1744 = vmul.f32 1.0, %v1743
  %v1745 = vrcp.pop %v883
  %v1746 = vmul.f32 %v883, %v1745
  %v1747 = vsub.f32 1.0, %v1746
  %v1748 = vmul.f32 %v1745, %v1747
  %v1749 = vadd.f32 %v1745, %v1748
  %vm1750 = vweird.f32 %v883
  %vm1751 = vweird.f32 %v1745
  %vm1752 = vmor %vm1750, %vm1751
  %v1753 = vsel %vm1752, %v1745, %v1749
  %v1754 = vand.u32 2147483647, %v883
  %vm1755 = vcmp.eq.f32.partialorder %v1754, 8.507059e+37
  %v1756 = vand.u32 %v883, 2147483648
  %v1757 = vor.u32 1.1754944e-38, %v1756
  %v1758 = vsel %vm1755, %v1757, %v1753
  %v1759 = vmul.f32 1.0, %v1758
  %v1760 = vrcp.pop %v884
  %v1761 = vmul.f32 %v884, %v1760
  %v1762 = vsub.f32 1.0, %v1761
  %v1763 = vmul.f32 %v1760, %v1762
  %v1764 = vadd.f32 %v1760, %v1763
  %vm1765 = vweird.f32 %v884
  %vm1766 = vweird.f32 %v1760
  %vm1767 = vmor %vm1765, %vm1766
  %v1768 = vsel %vm1767, %v1760, %v1764
  %v1769 = vand.u32 2147483647, %v884
  %vm1770 = vcmp.eq.f32.partialorder %v1769, 8.507059e+37
  %v1771 = vand.u32 %v884, 2147483648
  %v1772 = vor.u32 1.1754944e-38, %v1771
  %v1773 = vsel %vm1770, %v1772, %v1768
  %v1774 = vmul.f32 1.0, %v1773
  %v1775 = vrcp.pop %v885
  %v1776 = vmul.f32 %v885, %v1775
  %v1777 = vsub.f32 1.0, %v1776
  %v1778 = vmul.f32 %v1775, %v1777
  %v1779 = vadd.f32 %v1775, %v1778
  %vm1780 = vweird.f32 %v885
  %vm1781 = vweird.f32 %v1775
  %vm1782 = vmor %vm1780, %vm1781
  %v1783 = vsel %vm1782, %v1775, %v1779
  %v1784 = vand.u32 2147483647, %v885
  %vm1785 = vcmp.eq.f32.partialorder %v1784, 8.507059e+37
  %v1786 = vand.u32 %v885, 2147483648
  %v1787 = vor.u32 1.1754944e-38, %v1786
  %v1788 = vsel %vm1785, %v1787, %v1783
  %v1789 = vmul.f32 1.0, %v1788
  %v1790 = vrcp.pop %v886
  %v1791 = vmul.f32 %v886, %v1790
  %v1792 = vsub.f32 1.0, %v1791
  %v1793 = vmul.f32 %v1790, %v1792
  %v1794 = vadd.f32 %v1790, %v1793
  %vm1795 = vweird.f32 %v886
  %vm1796 = vweird.f32 %v1790
  %vm1797 = vmor %vm1795, %vm1796
  %v1798 = vsel %vm1797, %v1790, %v1794
  %v1799 = vand.u32 2147483647, %v886
  %vm1800 = vcmp.eq.f32.partialorder %v1799, 8.507059e+37
  %v1801 = vand.u32 %v886, 2147483648
  %v1802 = vor.u32 1.1754944e-38, %v1801
  %v1803 = vsel %vm1800, %v1802, %v1798
  %v1804 = vmul.f32 1.0, %v1803
  %v1805 = vrcp.pop %v887
  %v1806 = vmul.f32 %v887, %v1805
  %v1807 = vsub.f32 1.0, %v1806
  %v1808 = vmul.f32 %v1805, %v1807
  %v1809 = vadd.f32 %v1805, %v1808
  %vm1810 = vweird.f32 %v887
  %vm1811 = vweird.f32 %v1805
  %vm1812 = vmor %vm1810, %vm1811
  %v1813 = vsel %vm1812, %v1805, %v1809
  %v1814 = vand.u32 2147483647, %v887
  %vm1815 = vcmp.eq.f32.partialorder %v1814, 8.507059e+37
  %v1816 = vand.u32 %v887, 2147483648
  %v1817 = vor.u32 1.1754944e-38, %v1816
  %v1818 = vsel %vm1815, %v1817, %v1813
  %v1819 = vmul.f32 1.0, %v1818
  %v1820 = vrcp.pop %v888
  %v1821 = vmul.f32 %v888, %v1820
  %v1822 = vsub.f32 1.0, %v1821
  %v1823 = vmul.f32 %v1820, %v1822
  %v1824 = vadd.f32 %v1820, %v1823
  %vm1825 = vweird.f32 %v888
  %vm1826 = vweird.f32 %v1820
  %vm1827 = vmor %vm1825, %vm1826
  %v1828 = vsel %vm1827, %v1820, %v1824
  %v1829 = vand.u32 2147483647, %v888
  %vm1830 = vcmp.eq.f32.partialorder %v1829, 8.507059e+37
  %v1831 = vand.u32 %v888, 2147483648
  %v1832 = vor.u32 1.1754944e-38, %v1831
  %v1833 = vsel %vm1830, %v1832, %v1828
  %v1834 = vmul.f32 1.0, %v1833
  %v1835 = vrcp.pop %v889
  %v1836 = vmul.f32 %v889, %v1835
  %v1837 = vsub.f32 1.0, %v1836
  %v1838 = vmul.f32 %v1835, %v1837
  %v1839 = vadd.f32 %v1835, %v1838
  %vm1840 = vweird.f32 %v889
  %vm1841 = vweird.f32 %v1835
  %vm1842 = vmor %vm1840, %vm1841
  %v1843 = vsel %vm1842, %v1835, %v1839
  %v1844 = vand.u32 2147483647, %v889
  %vm1845 = vcmp.eq.f32.partialorder %v1844, 8.507059e+37
  %v1846 = vand.u32 %v889, 2147483648
  %v1847 = vor.u32 1.1754944e-38, %v1846
  %v1848 = vsel %vm1845, %v1847, %v1843
  %v1849 = vmul.f32 1.0, %v1848
  %v1850 = vmul.f32 %v570, %v904
  %v1851 = vmul.f32 %v571, %v919
  %v1852 = vmul.f32 %v572, %v934
  %v1853 = vmul.f32 %v573, %v949
  %v1854 = vmul.f32 %v574, %v964
  %v1855 = vmul.f32 %v575, %v979
  %v1856 = vmul.f32 %v576, %v994
  %v1857 = vmul.f32 %v577, %v1009
  %v1858 = vmul.f32 %v578, %v1024
  %v1859 = vmul.f32 %v579, %v1039
  %v1860 = vmul.f32 %v580, %v1054
  %v1861 = vmul.f32 %v581, %v1069
  %v1862 = vmul.f32 %v582, %v1084
  %v1863 = vmul.f32 %v583, %v1099
  %v1864 = vmul.f32 %v584, %v1114
  %v1865 = vmul.f32 %v585, %v1129
  %v1866 = vmul.f32 %v586, %v1144
  %v1867 = vmul.f32 %v587, %v1159
  %v1868 = vmul.f32 %v588, %v1174
  %v1869 = vmul.f32 %v589, %v1189
  %v1870 = vmul.f32 %v590, %v1204
  %v1871 = vmul.f32 %v591, %v1219
  %v1872 = vmul.f32 %v592, %v1234
  %v1873 = vmul.f32 %v593, %v1249
  %v1874 = vmul.f32 %v594, %v1264
  %v1875 = vmul.f32 %v595, %v1279
  %v1876 = vmul.f32 %v596, %v1294
  %v1877 = vmul.f32 %v597, %v1309
  %v1878 = vmul.f32 %v598, %v1324
  %v1879 = vmul.f32 %v599, %v1339
  %v1880 = vmul.f32 %v600, %v1354
  %v1881 = vmul.f32 %v601, %v1369
  %v1882 = vmul.f32 %v602, %v1384
  %v1883 = vmul.f32 %v603, %v1399
  %v1884 = vmul.f32 %v604, %v1414
  %v1885 = vmul.f32 %v605, %v1429
  %v1886 = vmul.f32 %v606, %v1444
  %v1887 = vmul.f32 %v607, %v1459
  %v1888 = vmul.f32 %v608, %v1474
  %v1889 = vmul.f32 %v609, %v1489
  %v1890 = vmul.f32 %v610, %v1504
  %v1891 = vmul.f32 %v611, %v1519
  %v1892 = vmul.f32 %v612, %v1534
  %v1893 = vmul.f32 %v613, %v1549
  %v1894 = vmul.f32 %v614, %v1564
  %v1895 = vmul.f32 %v615, %v1579
  %v1896 = vmul.f32 %v616, %v1594
  %v1897 = vmul.f32 %v617, %v1609
  %v1898 = vmul.f32 %v618, %v1624
  %v1899 = vmul.f32 %v619, %v1639
  %v1900 = vmul.f32 %v620, %v1654
  %v1901 = vmul.f32 %v621, %v1669
  %v1902 = vmul.f32 %v622, %v1684
  %v1903 = vmul.f32 %v623, %v1699
  %v1904 = vmul.f32 %v624, %v1714
  %v1905 = vmul.f32 %v625, %v1729
  %v1906 = vmul.f32 %v626, %v1744
  %v1907 = vmul.f32 %v627, %v1759
  %v1908 = vmul.f32 %v628, %v1774
  %v1909 = vmul.f32 %v629, %v1789
  %v1910 = vmul.f32 %v630, %v1804
  %v1911 = vmul.f32 %v631, %v1819
  %v1912 = vmul.f32 %v632, %v1834
  %v1913 = vmul.f32 %v633, %v1849
  %vm1914 = vcmask 130048
  %1915 = vst.msk [vmem:[%s7] sm:$0xff] %vm1914, %v1850
  %1916 = vst.msk [vmem:[%s7 + $0x8] sm:$0xff] %vm1914, %v1851
  %1917 = vst.msk [vmem:[%s7 + $0x10] sm:$0xff] %vm1914, %v1852
  %1918 = vst.msk [vmem:[%s7 + $0x18] sm:$0xff] %vm1914, %v1853
  %1919 = vst.msk [vmem:[%s7 + $0x20] sm:$0xff] %vm1914, %v1854
  %1920 = vst.msk [vmem:[%s7 + $0x28] sm:$0xff] %vm1914, %v1855
  %1921 = vst.msk [vmem:[%s7 + $0x30] sm:$0xff] %vm1914, %v1856
  %1922 = vst.msk [vmem:[%s7 + $0x38] sm:$0xff] %vm1914, %v1857
  %1923 = vst.msk [vmem:[%s7 + $0x40] sm:$0xff] %vm1914, %v1858
  %1924 = vst.msk [vmem:[%s7 + $0x48] sm:$0xff] %vm1914, %v1859
  %1925 = vst.msk [vmem:[%s7 + $0x50] sm:$0xff] %vm1914, %v1860
  %1926 = vst.msk [vmem:[%s7 + $0x58] sm:$0xff] %vm1914, %v1861
  %1927 = vst.msk [vmem:[%s7 + $0x60] sm:$0xff] %vm1914, %v1862
  %1928 = vst.msk [vmem:[%s7 + $0x68] sm:$0xff] %vm1914, %v1863
  %1929 = vst.msk [vmem:[%s7 + $0x70] sm:$0xff] %vm1914, %v1864
  %1930 = vst.msk [vmem:[%s7 + $0x78] sm:$0xff] %vm1914, %v1865
  %1931 = vst.msk [vmem:[%s7 + $0x80] sm:$0xff] %vm1914, %v1866
  %1932 = vst.msk [vmem:[%s7 + $0x88] sm:$0xff] %vm1914, %v1867
  %1933 = vst.msk [vmem:[%s7 + $0x90] sm:$0xff] %vm1914, %v1868
  %1934 = vst.msk [vmem:[%s7 + $0x98] sm:$0xff] %vm1914, %v1869
  %1935 = vst.msk [vmem:[%s7 + $0xa0] sm:$0xff] %vm1914, %v1870
  %1936 = vst.msk [vmem:[%s7 + $0xa8] sm:$0xff] %vm1914, %v1871
  %1937 = vst.msk [vmem:[%s7 + $0xb0] sm:$0xff] %vm1914, %v1872
  %1938 = vst.msk [vmem:[%s7 + $0xb8] sm:$0xff] %vm1914, %v1873
  %1939 = vst.msk [vmem:[%s7 + $0xc0] sm:$0xff] %vm1914, %v1874
  %1940 = vst.msk [vmem:[%s7 + $0xc8] sm:$0xff] %vm1914, %v1875
  %1941 = vst.msk [vmem:[%s7 + $0xd0] sm:$0xff] %vm1914, %v1876
  %1942 = vst.msk [vmem:[%s7 + $0xd8] sm:$0xff] %vm1914, %v1877
  %1943 = vst.msk [vmem:[%s7 + $0xe0] sm:$0xff] %vm1914, %v1878
  %1944 = vst.msk [vmem:[%s7 + $0xe8] sm:$0xff] %vm1914, %v1879
  %1945 = vst.msk [vmem:[%s7 + $0xf0] sm:$0xff] %vm1914, %v1880
  %1946 = vst.msk [vmem:[%s7 + $0xf8] sm:$0xff] %vm1914, %v1881
  %1947 = vst.msk [vmem:[%s7 + $0x100] sm:$0xff] %vm1914, %v1882
  %1948 = vst.msk [vmem:[%s7 + $0x108] sm:$0xff] %vm1914, %v1883
  %1949 = vst.msk [vmem:[%s7 + $0x110] sm:$0xff] %vm1914, %v1884
  %1950 = vst.msk [vmem:[%s7 + $0x118] sm:$0xff] %vm1914, %v1885
  %1951 = vst.msk [vmem:[%s7 + $0x120] sm:$0xff] %vm1914, %v1886
  %1952 = vst.msk [vmem:[%s7 + $0x128] sm:$0xff] %vm1914, %v1887
  %1953 = vst.msk [vmem:[%s7 + $0x130] sm:$0xff] %vm1914, %v1888
  %1954 = vst.msk [vmem:[%s7 + $0x138] sm:$0xff] %vm1914, %v1889
  %1955 = vst.msk [vmem:[%s7 + $0x140] sm:$0xff] %vm1914, %v1890
  %1956 = vst.msk [vmem:[%s7 + $0x148] sm:$0xff] %vm1914, %v1891
  %1957 = vst.msk [vmem:[%s7 + $0x150] sm:$0xff] %vm1914, %v1892
  %1958 = vst.msk [vmem:[%s7 + $0x158] sm:$0xff] %vm1914, %v1893
  %1959 = vst.msk [vmem:[%s7 + $0x160] sm:$0xff] %vm1914, %v1894
  %1960 = vst.msk [vmem:[%s7 + $0x168] sm:$0xff] %vm1914, %v1895
  %1961 = vst.msk [vmem:[%s7 + $0x170] sm:$0xff] %vm1914, %v1896
  %1962 = vst.msk [vmem:[%s7 + $0x178] sm:$0xff] %vm1914, %v1897
  %1963 = vst.msk [vmem:[%s7 + $0x180] sm:$0xff] %vm1914, %v1898
  %1964 = vst.msk [vmem:[%s7 + $0x188] sm:$0xff] %vm1914, %v1899
  %1965 = vst.msk [vmem:[%s7 + $0x190] sm:$0xff] %vm1914, %v1900
  %1966 = vst.msk [vmem:[%s7 + $0x198] sm:$0xff] %vm1914, %v1901
  %1967 = vst.msk [vmem:[%s7 + $0x1a0] sm:$0xff] %vm1914, %v1902
  %1968 = vst.msk [vmem:[%s7 + $0x1a8] sm:$0xff] %vm1914, %v1903
  %1969 = vst.msk [vmem:[%s7 + $0x1b0] sm:$0xff] %vm1914, %v1904
  %1970 = vst.msk [vmem:[%s7 + $0x1b8] sm:$0xff] %vm1914, %v1905
  %1971 = vst.msk [vmem:[%s7 + $0x1c0] sm:$0xff] %vm1914, %v1906
  %1972 = vst.msk [vmem:[%s7 + $0x1c8] sm:$0xff] %vm1914, %v1907
  %1973 = vst.msk [vmem:[%s7 + $0x1d0] sm:$0xff] %vm1914, %v1908
  %1974 = vst.msk [vmem:[%s7 + $0x1d8] sm:$0xff] %vm1914, %v1909
  %1975 = vst.msk [vmem:[%s7 + $0x1e0] sm:$0xff] %vm1914, %v1910
  %1976 = vst.msk [vmem:[%s7 + $0x1e8] sm:$0xff] %vm1914, %v1911
  %1977 = vst.msk [vmem:[%s7 + $0x1f0] sm:$0xff] %vm1914, %v1912
  %1978 = vst.msk [vmem:[%s7 + $0x1f8] sm:$0xff] %vm1914, %v1913
  %v1979 = vld [vmem:[%s4] sm:$0xff]
  %v1980 = vld [vmem:[%s4 + $0x8] sm:$0xff]
  %v1981 = vld [vmem:[%s4 + $0x10] sm:$0xff]
  %v1982 = vld [vmem:[%s4 + $0x18] sm:$0xff]
  %1983 = vmatpush.msra.mxu0 0.0
  %1984 = vmatpush.msra.mxu0 0.0
  %1985 = vmatpush.msra.mxu0 0.0
  %1986 = vmatpush.msra.mxu0 0.0
  %1987 = vmatpush.msra.mxu0 0.0
  %1988 = vmatpush.msra.mxu0 0.0
  %1989 = vmatpush.msra.mxu0 0.0
  %1990 = vmatpush.msra.mxu0 0.0
  %1991 = vmatpush.msra.mxu0 0.0
  %1992 = vmatpush.msra.mxu0 0.0
  %1993 = vmatpush.msra.mxu0 0.0
  %1994 = vmatpush.msra.mxu0 0.0
  %1995 = vmatpush.msra.mxu0 %v1982
  %1996 = vmatpush.msra.mxu0 %v1981
  %1997 = vmatpush.msra.mxu0 %v1980
  %1998 = vmatpush.msra.mxu0 %v1979
  %1999 = vmatmul.f32.gmra.mxu0 %v98
  %v2000 = vpop.f32.mrf.mxu0
  %v2001 = vadd.f32 0.0, %v2000
  %2002 = vmatmul.f32.gmra.mxu0 %v101
  %v2003 = vpop.f32.mrf.mxu0
  %v2004 = vadd.f32 0.0, %v2003
  %2005 = vmatmul.f32.gmra.mxu0 %v104
  %v2006 = vpop.f32.mrf.mxu0
  %v2007 = vadd.f32 0.0, %v2006
  %2008 = vmatmul.f32.gmra.mxu0 %v107
  %v2009 = vpop.f32.mrf.mxu0
  %v2010 = vadd.f32 0.0, %v2009
  %2011 = vmatmul.f32.gmra.mxu0 %v110
  %v2012 = vpop.f32.mrf.mxu0
  %v2013 = vadd.f32 0.0, %v2012
  %2014 = vmatmul.f32.gmra.mxu0 %v113
  %v2015 = vpop.f32.mrf.mxu0
  %v2016 = vadd.f32 0.0, %v2015
  %2017 = vmatmul.f32.gmra.mxu0 %v116
  %v2018 = vpop.f32.mrf.mxu0
  %v2019 = vadd.f32 0.0, %v2018
  %2020 = vmatmul.f32.gmra.mxu0 %v119
  %v2021 = vpop.f32.mrf.mxu0
  %v2022 = vadd.f32 0.0, %v2021
  %2023 = vmatmul.f32.gmra.mxu0 %v122
  %v2024 = vpop.f32.mrf.mxu0
  %v2025 = vadd.f32 0.0, %v2024
  %2026 = vmatmul.f32.gmra.mxu0 %v125
  %v2027 = vpop.f32.mrf.mxu0
  %v2028 = vadd.f32 0.0, %v2027
  %2029 = vmatmul.f32.gmra.mxu0 %v128
  %v2030 = vpop.f32.mrf.mxu0
  %v2031 = vadd.f32 0.0, %v2030
  %2032 = vmatmul.f32.gmra.mxu0 %v131
  %v2033 = vpop.f32.mrf.mxu0
  %v2034 = vadd.f32 0.0, %v2033
  %2035 = vmatmul.f32.gmra.mxu0 %v134
  %v2036 = vpop.f32.mrf.mxu0
  %v2037 = vadd.f32 0.0, %v2036
  %2038 = vmatmul.f32.gmra.mxu0 %v137
  %v2039 = vpop.f32.mrf.mxu0
  %v2040 = vadd.f32 0.0, %v2039
  %2041 = vmatmul.f32.gmra.mxu0 %v140
  %v2042 = vpop.f32.mrf.mxu0
  %v2043 = vadd.f32 0.0, %v2042
  %2044 = vmatmul.f32.gmra.mxu0 %v143
  %v2045 = vpop.f32.mrf.mxu0
  %v2046 = vadd.f32 0.0, %v2045
  %2047 = vmatmul.f32.gmra.mxu0 %v146
  %v2048 = vpop.f32.mrf.mxu0
  %v2049 = vadd.f32 0.0, %v2048
  %2050 = vmatmul.f32.gmra.mxu0 %v149
  %v2051 = vpop.f32.mrf.mxu0
  %v2052 = vadd.f32 0.0, %v2051
  %2053 = vmatmul.f32.gmra.mxu0 %v152
  %v2054 = vpop.f32.mrf.mxu0
  %v2055 = vadd.f32 0.0, %v2054
  %2056 = vmatmul.f32.gmra.mxu0 %v155
  %v2057 = vpop.f32.mrf.mxu0
  %v2058 = vadd.f32 0.0, %v2057
  %2059 = vmatmul.f32.gmra.mxu0 %v158
  %v2060 = vpop.f32.mrf.mxu0
  %v2061 = vadd.f32 0.0, %v2060
  %2062 = vmatmul.f32.gmra.mxu0 %v161
  %v2063 = vpop.f32.mrf.mxu0
  %v2064 = vadd.f32 0.0, %v2063
  %2065 = vmatmul.f32.gmra.mxu0 %v164
  %v2066 = vpop.f32.mrf.mxu0
  %v2067 = vadd.f32 0.0, %v2066
  %2068 = vmatmul.f32.gmra.mxu0 %v167
  %v2069 = vpop.f32.mrf.mxu0
  %v2070 = vadd.f32 0.0, %v2069
  %2071 = vmatmul.f32.gmra.mxu0 %v170
  %v2072 = vpop.f32.mrf.mxu0
  %v2073 = vadd.f32 0.0, %v2072
  %2074 = vmatmul.f32.gmra.mxu0 %v173
  %v2075 = vpop.f32.mrf.mxu0
  %v2076 = vadd.f32 0.0, %v2075
  %2077 = vmatmul.f32.gmra.mxu0 %v176
  %v2078 = vpop.f32.mrf.mxu0
  %v2079 = vadd.f32 0.0, %v2078
  %2080 = vmatmul.f32.gmra.mxu0 %v179
  %v2081 = vpop.f32.mrf.mxu0
  %v2082 = vadd.f32 0.0, %v2081
  %2083 = vmatmul.f32.gmra.mxu0 %v182
  %v2084 = vpop.f32.mrf.mxu0
  %v2085 = vadd.f32 0.0, %v2084
  %2086 = vmatmul.f32.gmra.mxu0 %v185
  %v2087 = vpop.f32.mrf.mxu0
  %v2088 = vadd.f32 0.0, %v2087
  %2089 = vmatmul.f32.gmra.mxu0 %v188
  %v2090 = vpop.f32.mrf.mxu0
  %v2091 = vadd.f32 0.0, %v2090
  %2092 = vmatmul.f32.gmra.mxu0 %v191
  %v2093 = vpop.f32.mrf.mxu0
  %v2094 = vadd.f32 0.0, %v2093
  %2095 = vmatmul.f32.gmra.mxu0 %v194
  %v2096 = vpop.f32.mrf.mxu0
  %v2097 = vadd.f32 0.0, %v2096
  %2098 = vmatmul.f32.gmra.mxu0 %v197
  %v2099 = vpop.f32.mrf.mxu0
  %v2100 = vadd.f32 0.0, %v2099
  %2101 = vmatmul.f32.gmra.mxu0 %v200
  %v2102 = vpop.f32.mrf.mxu0
  %v2103 = vadd.f32 0.0, %v2102
  %2104 = vmatmul.f32.gmra.mxu0 %v203
  %v2105 = vpop.f32.mrf.mxu0
  %v2106 = vadd.f32 0.0, %v2105
  %2107 = vmatmul.f32.gmra.mxu0 %v206
  %v2108 = vpop.f32.mrf.mxu0
  %v2109 = vadd.f32 0.0, %v2108
  %2110 = vmatmul.f32.gmra.mxu0 %v209
  %v2111 = vpop.f32.mrf.mxu0
  %v2112 = vadd.f32 0.0, %v2111
  %2113 = vmatmul.f32.gmra.mxu0 %v212
  %v2114 = vpop.f32.mrf.mxu0
  %v2115 = vadd.f32 0.0, %v2114
  %2116 = vmatmul.f32.gmra.mxu0 %v215
  %v2117 = vpop.f32.mrf.mxu0
  %v2118 = vadd.f32 0.0, %v2117
  %2119 = vmatmul.f32.gmra.mxu0 %v218
  %v2120 = vpop.f32.mrf.mxu0
  %v2121 = vadd.f32 0.0, %v2120
  %2122 = vmatmul.f32.gmra.mxu0 %v221
  %v2123 = vpop.f32.mrf.mxu0
  %v2124 = vadd.f32 0.0, %v2123
  %2125 = vmatmul.f32.gmra.mxu0 %v224
  %v2126 = vpop.f32.mrf.mxu0
  %v2127 = vadd.f32 0.0, %v2126
  %2128 = vmatmul.f32.gmra.mxu0 %v227
  %v2129 = vpop.f32.mrf.mxu0
  %v2130 = vadd.f32 0.0, %v2129
  %2131 = vmatmul.f32.gmra.mxu0 %v230
  %v2132 = vpop.f32.mrf.mxu0
  %v2133 = vadd.f32 0.0, %v2132
  %2134 = vmatmul.f32.gmra.mxu0 %v233
  %v2135 = vpop.f32.mrf.mxu0
  %v2136 = vadd.f32 0.0, %v2135
  %2137 = vmatmul.f32.gmra.mxu0 %v236
  %v2138 = vpop.f32.mrf.mxu0
  %v2139 = vadd.f32 0.0, %v2138
  %2140 = vmatmul.f32.gmra.mxu0 %v239
  %v2141 = vpop.f32.mrf.mxu0
  %v2142 = vadd.f32 0.0, %v2141
  %2143 = vmatmul.f32.gmra.mxu0 %v242
  %v2144 = vpop.f32.mrf.mxu0
  %v2145 = vadd.f32 0.0, %v2144
  %2146 = vmatmul.f32.gmra.mxu0 %v245
  %v2147 = vpop.f32.mrf.mxu0
  %v2148 = vadd.f32 0.0, %v2147
  %2149 = vmatmul.f32.gmra.mxu0 %v248
  %v2150 = vpop.f32.mrf.mxu0
  %v2151 = vadd.f32 0.0, %v2150
  %2152 = vmatmul.f32.gmra.mxu0 %v251
  %v2153 = vpop.f32.mrf.mxu0
  %v2154 = vadd.f32 0.0, %v2153
  %2155 = vmatmul.f32.gmra.mxu0 %v254
  %v2156 = vpop.f32.mrf.mxu0
  %v2157 = vadd.f32 0.0, %v2156
  %2158 = vmatmul.f32.gmra.mxu0 %v257
  %v2159 = vpop.f32.mrf.mxu0
  %v2160 = vadd.f32 0.0, %v2159
  %2161 = vmatmul.f32.gmra.mxu0 %v260
  %v2162 = vpop.f32.mrf.mxu0
  %v2163 = vadd.f32 0.0, %v2162
  %2164 = vmatmul.f32.gmra.mxu0 %v263
  %v2165 = vpop.f32.mrf.mxu0
  %v2166 = vadd.f32 0.0, %v2165
  %2167 = vmatmul.f32.gmra.mxu0 %v266
  %v2168 = vpop.f32.mrf.mxu0
  %v2169 = vadd.f32 0.0, %v2168
  %2170 = vmatmul.f32.gmra.mxu0 %v269
  %v2171 = vpop.f32.mrf.mxu0
  %v2172 = vadd.f32 0.0, %v2171
  %2173 = vmatmul.f32.gmra.mxu0 %v272
  %v2174 = vpop.f32.mrf.mxu0
  %v2175 = vadd.f32 0.0, %v2174
  %2176 = vmatmul.f32.gmra.mxu0 %v275
  %v2177 = vpop.f32.mrf.mxu0
  %v2178 = vadd.f32 0.0, %v2177
  %2179 = vmatmul.f32.gmra.mxu0 %v278
  %v2180 = vpop.f32.mrf.mxu0
  %v2181 = vadd.f32 0.0, %v2180
  %2182 = vmatmul.f32.gmra.mxu0 %v281
  %v2183 = vpop.f32.mrf.mxu0
  %v2184 = vadd.f32 0.0, %v2183
  %2185 = vmatmul.f32.gmra.mxu0 %v284
  %v2186 = vpop.f32.mrf.mxu0
  %v2187 = vadd.f32 0.0, %v2186
  %2188 = vmatmul.f32.gmra.mxu0 %v287
  %v2189 = vpop.f32.mrf.mxu0
  %v2190 = vadd.f32 0.0, %v2189
  %2191 = vdwg.mxu0
  %v2192 = vld [vmem:[%s5] sm:$0x1]
  %v2194 = vperm.slane %v2192, 0
  %v2196 = vmul.f32 %v2001, %v2194
  %v2197 = vmul.f32 %v2004, %v2194
  %v2198 = vmul.f32 %v2007, %v2194
  %v2199 = vmul.f32 %v2010, %v2194
  %v2200 = vmul.f32 %v2013, %v2194
  %v2201 = vmul.f32 %v2016, %v2194
  %v2202 = vmul.f32 %v2019, %v2194
  %v2203 = vmul.f32 %v2022, %v2194
  %v2204 = vmul.f32 %v2025, %v2194
  %v2205 = vmul.f32 %v2028, %v2194
  %v2206 = vmul.f32 %v2031, %v2194
  %v2207 = vmul.f32 %v2034, %v2194
  %v2208 = vmul.f32 %v2037, %v2194
  %v2209 = vmul.f32 %v2040, %v2194
  %v2210 = vmul.f32 %v2043, %v2194
  %v2211 = vmul.f32 %v2046, %v2194
  %v2212 = vmul.f32 %v2049, %v2194
  %v2213 = vmul.f32 %v2052, %v2194
  %v2214 = vmul.f32 %v2055, %v2194
  %v2215 = vmul.f32 %v2058, %v2194
  %v2216 = vmul.f32 %v2061, %v2194
  %v2217 = vmul.f32 %v2064, %v2194
  %v2218 = vmul.f32 %v2067, %v2194
  %v2219 = vmul.f32 %v2070, %v2194
  %v2220 = vmul.f32 %v2073, %v2194
  %v2221 = vmul.f32 %v2076, %v2194
  %v2222 = vmul.f32 %v2079, %v2194
  %v2223 = vmul.f32 %v2082, %v2194
  %v2224 = vmul.f32 %v2085, %v2194
  %v2225 = vmul.f32 %v2088, %v2194
  %v2226 = vmul.f32 %v2091, %v2194
  %v2227 = vmul.f32 %v2094, %v2194
  %v2228 = vmul.f32 %v2097, %v2194
  %v2229 = vmul.f32 %v2100, %v2194
  %v2230 = vmul.f32 %v2103, %v2194
  %v2231 = vmul.f32 %v2106, %v2194
  %v2232 = vmul.f32 %v2109, %v2194
  %v2233 = vmul.f32 %v2112, %v2194
  %v2234 = vmul.f32 %v2115, %v2194
  %v2235 = vmul.f32 %v2118, %v2194
  %v2236 = vmul.f32 %v2121, %v2194
  %v2237 = vmul.f32 %v2124, %v2194
  %v2238 = vmul.f32 %v2127, %v2194
  %v2239 = vmul.f32 %v2130, %v2194
  %v2240 = vmul.f32 %v2133, %v2194
  %v2241 = vmul.f32 %v2136, %v2194
  %v2242 = vmul.f32 %v2139, %v2194
  %v2243 = vmul.f32 %v2142, %v2194
  %v2244 = vmul.f32 %v2145, %v2194
  %v2245 = vmul.f32 %v2148, %v2194
  %v2246 = vmul.f32 %v2151, %v2194
  %v2247 = vmul.f32 %v2154, %v2194
  %v2248 = vmul.f32 %v2157, %v2194
  %v2249 = vmul.f32 %v2160, %v2194
  %v2250 = vmul.f32 %v2163, %v2194
  %v2251 = vmul.f32 %v2166, %v2194
  %v2252 = vmul.f32 %v2169, %v2194
  %v2253 = vmul.f32 %v2172, %v2194
  %v2254 = vmul.f32 %v2175, %v2194
  %v2255 = vmul.f32 %v2178, %v2194
  %v2256 = vmul.f32 %v2181, %v2194
  %v2257 = vmul.f32 %v2184, %v2194
  %v2258 = vmul.f32 %v2187, %v2194
  %v2259 = vmul.f32 %v2190, %v2194
  %v2260 = vld [vmem:[%s6] sm:$0x1]
  %v2262 = vperm.slane %v2260, 0
  %v2264 = vadd.f32 %v2196, %v2262
  %v2265 = vadd.f32 %v2197, %v2262
  %v2266 = vadd.f32 %v2198, %v2262
  %v2267 = vadd.f32 %v2199, %v2262
  %v2268 = vadd.f32 %v2200, %v2262
  %v2269 = vadd.f32 %v2201, %v2262
  %v2270 = vadd.f32 %v2202, %v2262
  %v2271 = vadd.f32 %v2203, %v2262
  %v2272 = vadd.f32 %v2204, %v2262
  %v2273 = vadd.f32 %v2205, %v2262
  %v2274 = vadd.f32 %v2206, %v2262
  %v2275 = vadd.f32 %v2207, %v2262
  %v2276 = vadd.f32 %v2208, %v2262
  %v2277 = vadd.f32 %v2209, %v2262
  %v2278 = vadd.f32 %v2210, %v2262
  %v2279 = vadd.f32 %v2211, %v2262
  %v2280 = vadd.f32 %v2212, %v2262
  %v2281 = vadd.f32 %v2213, %v2262
  %v2282 = vadd.f32 %v2214, %v2262
  %v2283 = vadd.f32 %v2215, %v2262
  %v2284 = vadd.f32 %v2216, %v2262
  %v2285 = vadd.f32 %v2217, %v2262
  %v2286 = vadd.f32 %v2218, %v2262
  %v2287 = vadd.f32 %v2219, %v2262
  %v2288 = vadd.f32 %v2220, %v2262
  %v2289 = vadd.f32 %v2221, %v2262
  %v2290 = vadd.f32 %v2222, %v2262
  %v2291 = vadd.f32 %v2223, %v2262
  %v2292 = vadd.f32 %v2224, %v2262
  %v2293 = vadd.f32 %v2225, %v2262
  %v2294 = vadd.f32 %v2226, %v2262
  %v2295 = vadd.f32 %v2227, %v2262
  %v2296 = vadd.f32 %v2228, %v2262
  %v2297 = vadd.f32 %v2229, %v2262
  %v2298 = vadd.f32 %v2230, %v2262
  %v2299 = vadd.f32 %v2231, %v2262
  %v2300 = vadd.f32 %v2232, %v2262
  %v2301 = vadd.f32 %v2233, %v2262
  %v2302 = vadd.f32 %v2234, %v2262
  %v2303 = vadd.f32 %v2235, %v2262
  %v2304 = vadd.f32 %v2236, %v2262
  %v2305 = vadd.f32 %v2237, %v2262
  %v2306 = vadd.f32 %v2238, %v2262
  %v2307 = vadd.f32 %v2239, %v2262
  %v2308 = vadd.f32 %v2240, %v2262
  %v2309 = vadd.f32 %v2241, %v2262
  %v2310 = vadd.f32 %v2242, %v2262
  %v2311 = vadd.f32 %v2243, %v2262
  %v2312 = vadd.f32 %v2244, %v2262
  %v2313 = vadd.f32 %v2245, %v2262
  %v2314 = vadd.f32 %v2246, %v2262
  %v2315 = vadd.f32 %v2247, %v2262
  %v2316 = vadd.f32 %v2248, %v2262
  %v2317 = vadd.f32 %v2249, %v2262
  %v2318 = vadd.f32 %v2250, %v2262
  %v2319 = vadd.f32 %v2251, %v2262
  %v2320 = vadd.f32 %v2252, %v2262
  %v2321 = vadd.f32 %v2253, %v2262
  %v2322 = vadd.f32 %v2254, %v2262
  %v2323 = vadd.f32 %v2255, %v2262
  %v2324 = vadd.f32 %v2256, %v2262
  %v2325 = vadd.f32 %v2257, %v2262
  %v2326 = vadd.f32 %v2258, %v2262
  %v2327 = vadd.f32 %v2259, %v2262
  %v2328 = vxor.u32 %v2264, 2147483648
  %v2329 = vxor.u32 %v2265, 2147483648
  %v2330 = vxor.u32 %v2266, 2147483648
  %v2331 = vxor.u32 %v2267, 2147483648
  %v2332 = vxor.u32 %v2268, 2147483648
  %v2333 = vxor.u32 %v2269, 2147483648
  %v2334 = vxor.u32 %v2270, 2147483648
  %v2335 = vxor.u32 %v2271, 2147483648
  %v2336 = vxor.u32 %v2272, 2147483648
  %v2337 = vxor.u32 %v2273, 2147483648
  %v2338 = vxor.u32 %v2274, 2147483648
  %v2339 = vxor.u32 %v2275, 2147483648
  %v2340 = vxor.u32 %v2276, 2147483648
  %v2341 = vxor.u32 %v2277, 2147483648
  %v2342 = vxor.u32 %v2278, 2147483648
  %v2343 = vxor.u32 %v2279, 2147483648
  %v2344 = vxor.u32 %v2280, 2147483648
  %v2345 = vxor.u32 %v2281, 2147483648
  %v2346 = vxor.u32 %v2282, 2147483648
  %v2347 = vxor.u32 %v2283, 2147483648
  %v2348 = vxor.u32 %v2284, 2147483648
  %v2349 = vxor.u32 %v2285, 2147483648
  %v2350 = vxor.u32 %v2286, 2147483648
  %v2351 = vxor.u32 %v2287, 2147483648
  %v2352 = vxor.u32 %v2288, 2147483648
  %v2353 = vxor.u32 %v2289, 2147483648
  %v2354 = vxor.u32 %v2290, 2147483648
  %v2355 = vxor.u32 %v2291, 2147483648
  %v2356 = vxor.u32 %v2292, 2147483648
  %v2357 = vxor.u32 %v2293, 2147483648
  %v2358 = vxor.u32 %v2294, 2147483648
  %v2359 = vxor.u32 %v2295, 2147483648
  %v2360 = vxor.u32 %v2296, 2147483648
  %v2361 = vxor.u32 %v2297, 2147483648
  %v2362 = vxor.u32 %v2298, 2147483648
  %v2363 = vxor.u32 %v2299, 2147483648
  %v2364 = vxor.u32 %v2300, 2147483648
  %v2365 = vxor.u32 %v2301, 2147483648
  %v2366 = vxor.u32 %v2302, 2147483648
  %v2367 = vxor.u32 %v2303, 2147483648
  %v2368 = vxor.u32 %v2304, 2147483648
  %v2369 = vxor.u32 %v2305, 2147483648
  %v2370 = vxor.u32 %v2306, 2147483648
  %v2371 = vxor.u32 %v2307, 2147483648
  %v2372 = vxor.u32 %v2308, 2147483648
  %v2373 = vxor.u32 %v2309, 2147483648
  %v2374 = vxor.u32 %v2310, 2147483648
  %v2375 = vxor.u32 %v2311, 2147483648
  %v2376 = vxor.u32 %v2312, 2147483648
  %v2377 = vxor.u32 %v2313, 2147483648
  %v2378 = vxor.u32 %v2314, 2147483648
  %v2379 = vxor.u32 %v2315, 2147483648
  %v2380 = vxor.u32 %v2316, 2147483648
  %v2381 = vxor.u32 %v2317, 2147483648
  %v2382 = vxor.u32 %v2318, 2147483648
  %v2383 = vxor.u32 %v2319, 2147483648
  %v2384 = vxor.u32 %v2320, 2147483648
  %v2385 = vxor.u32 %v2321, 2147483648
  %v2386 = vxor.u32 %v2322, 2147483648
  %v2387 = vxor.u32 %v2323, 2147483648
  %v2388 = vxor.u32 %v2324, 2147483648
  %v2389 = vxor.u32 %v2325, 2147483648
  %v2390 = vxor.u32 %v2326, 2147483648
  %v2391 = vxor.u32 %v2327, 2147483648
  %v2392 = vmul.f32 %v2328, 1.442695
  %v2393 = vpow.pop %v2392
  %v2394 = vmul.f32 %v2329, 1.442695
  %v2395 = vpow.pop %v2394
  %v2396 = vmul.f32 %v2330, 1.442695
  %v2397 = vpow.pop %v2396
  %v2398 = vmul.f32 %v2331, 1.442695
  %v2399 = vpow.pop %v2398
  %v2400 = vmul.f32 %v2332, 1.442695
  %v2401 = vpow.pop %v2400
  %v2402 = vmul.f32 %v2333, 1.442695
  %v2403 = vpow.pop %v2402
  %v2404 = vmul.f32 %v2334, 1.442695
  %v2405 = vpow.pop %v2404
  %v2406 = vmul.f32 %v2335, 1.442695
  %v2407 = vpow.pop %v2406
  %v2408 = vmul.f32 %v2336, 1.442695
  %v2409 = vpow.pop %v2408
  %v2410 = vmul.f32 %v2337, 1.442695
  %v2411 = vpow.pop %v2410
  %v2412 = vmul.f32 %v2338, 1.442695
  %v2413 = vpow.pop %v2412
  %v2414 = vmul.f32 %v2339, 1.442695
  %v2415 = vpow.pop %v2414
  %v2416 = vmul.f32 %v2340, 1.442695
  %v2417 = vpow.pop %v2416
  %v2418 = vmul.f32 %v2341, 1.442695
  %v2419 = vpow.pop %v2418
  %v2420 = vmul.f32 %v2342, 1.442695
  %v2421 = vpow.pop %v2420
  %v2422 = vmul.f32 %v2343, 1.442695
  %v2423 = vpow.pop %v2422
  %v2424 = vmul.f32 %v2344, 1.442695
  %v2425 = vpow.pop %v2424
  %v2426 = vmul.f32 %v2345, 1.442695
  %v2427 = vpow.pop %v2426
  %v2428 = vmul.f32 %v2346, 1.442695
  %v2429 = vpow.pop %v2428
  %v2430 = vmul.f32 %v2347, 1.442695
  %v2431 = vpow.pop %v2430
  %v2432 = vmul.f32 %v2348, 1.442695
  %v2433 = vpow.pop %v2432
  %v2434 = vmul.f32 %v2349, 1.442695
  %v2435 = vpow.pop %v2434
  %v2436 = vmul.f32 %v2350, 1.442695
  %v2437 = vpow.pop %v2436
  %v2438 = vmul.f32 %v2351, 1.442695
  %v2439 = vpow.pop %v2438
  %v2440 = vmul.f32 %v2352, 1.442695
  %v2441 = vpow.pop %v2440
  %v2442 = vmul.f32 %v2353, 1.442695
  %v2443 = vpow.pop %v2442
  %v2444 = vmul.f32 %v2354, 1.442695
  %v2445 = vpow.pop %v2444
  %v2446 = vmul.f32 %v2355, 1.442695
  %v2447 = vpow.pop %v2446
  %v2448 = vmul.f32 %v2356, 1.442695
  %v2449 = vpow.pop %v2448
  %v2450 = vmul.f32 %v2357, 1.442695
  %v2451 = vpow.pop %v2450
  %v2452 = vmul.f32 %v2358, 1.442695
  %v2453 = vpow.pop %v2452
  %v2454 = vmul.f32 %v2359, 1.442695
  %v2455 = vpow.pop %v2454
  %v2456 = vmul.f32 %v2360, 1.442695
  %v2457 = vpow.pop %v2456
  %v2458 = vmul.f32 %v2361, 1.442695
  %v2459 = vpow.pop %v2458
  %v2460 = vmul.f32 %v2362, 1.442695
  %v2461 = vpow.pop %v2460
  %v2462 = vmul.f32 %v2363, 1.442695
  %v2463 = vpow.pop %v2462
  %v2464 = vmul.f32 %v2364, 1.442695
  %v2465 = vpow.pop %v2464
  %v2466 = vmul.f32 %v2365, 1.442695
  %v2467 = vpow.pop %v2466
  %v2468 = vmul.f32 %v2366, 1.442695
  %v2469 = vpow.pop %v2468
  %v2470 = vmul.f32 %v2367, 1.442695
  %v2471 = vpow.pop %v2470
  %v2472 = vmul.f32 %v2368, 1.442695
  %v2473 = vpow.pop %v2472
  %v2474 = vmul.f32 %v2369, 1.442695
  %v2475 = vpow.pop %v2474
  %v2476 = vmul.f32 %v2370, 1.442695
  %v2477 = vpow.pop %v2476
  %v2478 = vmul.f32 %v2371, 1.442695
  %v2479 = vpow.pop %v2478
  %v2480 = vmul.f32 %v2372, 1.442695
  %v2481 = vpow.pop %v2480
  %v2482 = vmul.f32 %v2373, 1.442695
  %v2483 = vpow.pop %v2482
  %v2484 = vmul.f32 %v2374, 1.442695
  %v2485 = vpow.pop %v2484
  %v2486 = vmul.f32 %v2375, 1.442695
  %v2487 = vpow.pop %v2486
  %v2488 = vmul.f32 %v2376, 1.442695
  %v2489 = vpow.pop %v2488
  %v2490 = vmul.f32 %v2377, 1.442695
  %v2491 = vpow.pop %v2490
  %v2492 = vmul.f32 %v2378, 1.442695
  %v2493 = vpow.pop %v2492
  %v2494 = vmul.f32 %v2379, 1.442695
  %v2495 = vpow.pop %v2494
  %v2496 = vmul.f32 %v2380, 1.442695
  %v2497 = vpow.pop %v2496
  %v2498 = vmul.f32 %v2381, 1.442695
  %v2499 = vpow.pop %v2498
  %v2500 = vmul.f32 %v2382, 1.442695
  %v2501 = vpow.pop %v2500
  %v2502 = vmul.f32 %v2383, 1.442695
  %v2503 = vpow.pop %v2502
  %v2504 = vmul.f32 %v2384, 1.442695
  %v2505 = vpow.pop %v2504
  %v2506 = vmul.f32 %v2385, 1.442695
  %v2507 = vpow.pop %v2506
  %v2508 = vmul.f32 %v2386, 1.442695
  %v2509 = vpow.pop %v2508
  %v2510 = vmul.f32 %v2387, 1.442695
  %v2511 = vpow.pop %v2510
  %v2512 = vmul.f32 %v2388, 1.442695
  %v2513 = vpow.pop %v2512
  %v2514 = vmul.f32 %v2389, 1.442695
  %v2515 = vpow.pop %v2514
  %v2516 = vmul.f32 %v2390, 1.442695
  %v2517 = vpow.pop %v2516
  %v2518 = vmul.f32 %v2391, 1.442695
  %v2519 = vpow.pop %v2518
  %v2520 = vadd.f32 %v2393, 1.0
  %v2521 = vadd.f32 %v2395, 1.0
  %v2522 = vadd.f32 %v2397, 1.0
  %v2523 = vadd.f32 %v2399, 1.0
  %v2524 = vadd.f32 %v2401, 1.0
  %v2525 = vadd.f32 %v2403, 1.0
  %v2526 = vadd.f32 %v2405, 1.0
  %v2527 = vadd.f32 %v2407, 1.0
  %v2528 = vadd.f32 %v2409, 1.0
  %v2529 = vadd.f32 %v2411, 1.0
  %v2530 = vadd.f32 %v2413, 1.0
  %v2531 = vadd.f32 %v2415, 1.0
  %v2532 = vadd.f32 %v2417, 1.0
  %v2533 = vadd.f32 %v2419, 1.0
  %v2534 = vadd.f32 %v2421, 1.0
  %v2535 = vadd.f32 %v2423, 1.0
  %v2536 = vadd.f32 %v2425, 1.0
  %v2537 = vadd.f32 %v2427, 1.0
  %v2538 = vadd.f32 %v2429, 1.0
  %v2539 = vadd.f32 %v2431, 1.0
  %v2540 = vadd.f32 %v2433, 1.0
  %v2541 = vadd.f32 %v2435, 1.0
  %v2542 = vadd.f32 %v2437, 1.0
  %v2543 = vadd.f32 %v2439, 1.0
  %v2544 = vadd.f32 %v2441, 1.0
  %v2545 = vadd.f32 %v2443, 1.0
  %v2546 = vadd.f32 %v2445, 1.0
  %v2547 = vadd.f32 %v2447, 1.0
  %v2548 = vadd.f32 %v2449, 1.0
  %v2549 = vadd.f32 %v2451, 1.0
  %v2550 = vadd.f32 %v2453, 1.0
  %v2551 = vadd.f32 %v2455, 1.0
  %v2552 = vadd.f32 %v2457, 1.0
  %v2553 = vadd.f32 %v2459, 1.0
  %v2554 = vadd.f32 %v2461, 1.0
  %v2555 = vadd.f32 %v2463, 1.0
  %v2556 = vadd.f32 %v2465, 1.0
  %v2557 = vadd.f32 %v2467, 1.0
  %v2558 = vadd.f32 %v2469, 1.0
  %v2559 = vadd.f32 %v2471, 1.0
  %v2560 = vadd.f32 %v2473, 1.0
  %v2561 = vadd.f32 %v2475, 1.0
  %v2562 = vadd.f32 %v2477, 1.0
  %v2563 = vadd.f32 %v2479, 1.0
  %v2564 = vadd.f32 %v2481, 1.0
  %v2565 = vadd.f32 %v2483, 1.0
  %v2566 = vadd.f32 %v2485, 1.0
  %v2567 = vadd.f32 %v2487, 1.0
  %v2568 = vadd.f32 %v2489, 1.0
  %v2569 = vadd.f32 %v2491, 1.0
  %v2570 = vadd.f32 %v2493, 1.0
  %v2571 = vadd.f32 %v2495, 1.0
  %v2572 = vadd.f32 %v2497, 1.0
  %v2573 = vadd.f32 %v2499, 1.0
  %v2574 = vadd.f32 %v2501, 1.0
  %v2575 = vadd.f32 %v2503, 1.0
  %v2576 = vadd.f32 %v2505, 1.0
  %v2577 = vadd.f32 %v2507, 1.0
  %v2578 = vadd.f32 %v2509, 1.0
  %v2579 = vadd.f32 %v2511, 1.0
  %v2580 = vadd.f32 %v2513, 1.0
  %v2581 = vadd.f32 %v2515, 1.0
  %v2582 = vadd.f32 %v2517, 1.0
  %v2583 = vadd.f32 %v2519, 1.0
  %v2584 = vrcp.pop %v2520
  %v2585 = vmul.f32 %v2520, %v2584
  %v2586 = vsub.f32 1.0, %v2585
  %v2587 = vmul.f32 %v2584, %v2586
  %v2588 = vadd.f32 %v2584, %v2587
  %vm2589 = vweird.f32 %v2520
  %vm2590 = vweird.f32 %v2584
  %vm2591 = vmor %vm2589, %vm2590
  %v2592 = vsel %vm2591, %v2584, %v2588
  %v2593 = vand.u32 2147483647, %v2520
  %vm2594 = vcmp.eq.f32.partialorder %v2593, 8.507059e+37
  %v2595 = vand.u32 %v2520, 2147483648
  %v2596 = vor.u32 1.1754944e-38, %v2595
  %v2597 = vsel %vm2594, %v2596, %v2592
  %v2598 = vmul.f32 1.0, %v2597
  %v2599 = vrcp.pop %v2521
  %v2600 = vmul.f32 %v2521, %v2599
  %v2601 = vsub.f32 1.0, %v2600
  %v2602 = vmul.f32 %v2599, %v2601
  %v2603 = vadd.f32 %v2599, %v2602
  %vm2604 = vweird.f32 %v2521
  %vm2605 = vweird.f32 %v2599
  %vm2606 = vmor %vm2604, %vm2605
  %v2607 = vsel %vm2606, %v2599, %v2603
  %v2608 = vand.u32 2147483647, %v2521
  %vm2609 = vcmp.eq.f32.partialorder %v2608, 8.507059e+37
  %v2610 = vand.u32 %v2521, 2147483648
  %v2611 = vor.u32 1.1754944e-38, %v2610
  %v2612 = vsel %vm2609, %v2611, %v2607
  %v2613 = vmul.f32 1.0, %v2612
  %v2614 = vrcp.pop %v2522
  %v2615 = vmul.f32 %v2522, %v2614
  %v2616 = vsub.f32 1.0, %v2615
  %v2617 = vmul.f32 %v2614, %v2616
  %v2618 = vadd.f32 %v2614, %v2617
  %vm2619 = vweird.f32 %v2522
  %vm2620 = vweird.f32 %v2614
  %vm2621 = vmor %vm2619, %vm2620
  %v2622 = vsel %vm2621, %v2614, %v2618
  %v2623 = vand.u32 2147483647, %v2522
  %vm2624 = vcmp.eq.f32.partialorder %v2623, 8.507059e+37
  %v2625 = vand.u32 %v2522, 2147483648
  %v2626 = vor.u32 1.1754944e-38, %v2625
  %v2627 = vsel %vm2624, %v2626, %v2622
  %v2628 = vmul.f32 1.0, %v2627
  %v2629 = vrcp.pop %v2523
  %v2630 = vmul.f32 %v2523, %v2629
  %v2631 = vsub.f32 1.0, %v2630
  %v2632 = vmul.f32 %v2629, %v2631
  %v2633 = vadd.f32 %v2629, %v2632
  %vm2634 = vweird.f32 %v2523
  %vm2635 = vweird.f32 %v2629
  %vm2636 = vmor %vm2634, %vm2635
  %v2637 = vsel %vm2636, %v2629, %v2633
  %v2638 = vand.u32 2147483647, %v2523
  %vm2639 = vcmp.eq.f32.partialorder %v2638, 8.507059e+37
  %v2640 = vand.u32 %v2523, 2147483648
  %v2641 = vor.u32 1.1754944e-38, %v2640
  %v2642 = vsel %vm2639, %v2641, %v2637
  %v2643 = vmul.f32 1.0, %v2642
  %v2644 = vrcp.pop %v2524
  %v2645 = vmul.f32 %v2524, %v2644
  %v2646 = vsub.f32 1.0, %v2645
  %v2647 = vmul.f32 %v2644, %v2646
  %v2648 = vadd.f32 %v2644, %v2647
  %vm2649 = vweird.f32 %v2524
  %vm2650 = vweird.f32 %v2644
  %vm2651 = vmor %vm2649, %vm2650
  %v2652 = vsel %vm2651, %v2644, %v2648
  %v2653 = vand.u32 2147483647, %v2524
  %vm2654 = vcmp.eq.f32.partialorder %v2653, 8.507059e+37
  %v2655 = vand.u32 %v2524, 2147483648
  %v2656 = vor.u32 1.1754944e-38, %v2655
  %v2657 = vsel %vm2654, %v2656, %v2652
  %v2658 = vmul.f32 1.0, %v2657
  %v2659 = vrcp.pop %v2525
  %v2660 = vmul.f32 %v2525, %v2659
  %v2661 = vsub.f32 1.0, %v2660
  %v2662 = vmul.f32 %v2659, %v2661
  %v2663 = vadd.f32 %v2659, %v2662
  %vm2664 = vweird.f32 %v2525
  %vm2665 = vweird.f32 %v2659
  %vm2666 = vmor %vm2664, %vm2665
  %v2667 = vsel %vm2666, %v2659, %v2663
  %v2668 = vand.u32 2147483647, %v2525
  %vm2669 = vcmp.eq.f32.partialorder %v2668, 8.507059e+37
  %v2670 = vand.u32 %v2525, 2147483648
  %v2671 = vor.u32 1.1754944e-38, %v2670
  %v2672 = vsel %vm2669, %v2671, %v2667
  %v2673 = vmul.f32 1.0, %v2672
  %v2674 = vrcp.pop %v2526
  %v2675 = vmul.f32 %v2526, %v2674
  %v2676 = vsub.f32 1.0, %v2675
  %v2677 = vmul.f32 %v2674, %v2676
  %v2678 = vadd.f32 %v2674, %v2677
  %vm2679 = vweird.f32 %v2526
  %vm2680 = vweird.f32 %v2674
  %vm2681 = vmor %vm2679, %vm2680
  %v2682 = vsel %vm2681, %v2674, %v2678
  %v2683 = vand.u32 2147483647, %v2526
  %vm2684 = vcmp.eq.f32.partialorder %v2683, 8.507059e+37
  %v2685 = vand.u32 %v2526, 2147483648
  %v2686 = vor.u32 1.1754944e-38, %v2685
  %v2687 = vsel %vm2684, %v2686, %v2682
  %v2688 = vmul.f32 1.0, %v2687
  %v2689 = vrcp.pop %v2527
  %v2690 = vmul.f32 %v2527, %v2689
  %v2691 = vsub.f32 1.0, %v2690
  %v2692 = vmul.f32 %v2689, %v2691
  %v2693 = vadd.f32 %v2689, %v2692
  %vm2694 = vweird.f32 %v2527
  %vm2695 = vweird.f32 %v2689
  %vm2696 = vmor %vm2694, %vm2695
  %v2697 = vsel %vm2696, %v2689, %v2693
  %v2698 = vand.u32 2147483647, %v2527
  %vm2699 = vcmp.eq.f32.partialorder %v2698, 8.507059e+37
  %v2700 = vand.u32 %v2527, 2147483648
  %v2701 = vor.u32 1.1754944e-38, %v2700
  %v2702 = vsel %vm2699, %v2701, %v2697
  %v2703 = vmul.f32 1.0, %v2702
  %v2704 = vrcp.pop %v2528
  %v2705 = vmul.f32 %v2528, %v2704
  %v2706 = vsub.f32 1.0, %v2705
  %v2707 = vmul.f32 %v2704, %v2706
  %v2708 = vadd.f32 %v2704, %v2707
  %vm2709 = vweird.f32 %v2528
  %vm2710 = vweird.f32 %v2704
  %vm2711 = vmor %vm2709, %vm2710
  %v2712 = vsel %vm2711, %v2704, %v2708
  %v2713 = vand.u32 2147483647, %v2528
  %vm2714 = vcmp.eq.f32.partialorder %v2713, 8.507059e+37
  %v2715 = vand.u32 %v2528, 2147483648
  %v2716 = vor.u32 1.1754944e-38, %v2715
  %v2717 = vsel %vm2714, %v2716, %v2712
  %v2718 = vmul.f32 1.0, %v2717
  %v2719 = vrcp.pop %v2529
  %v2720 = vmul.f32 %v2529, %v2719
  %v2721 = vsub.f32 1.0, %v2720
  %v2722 = vmul.f32 %v2719, %v2721
  %v2723 = vadd.f32 %v2719, %v2722
  %vm2724 = vweird.f32 %v2529
  %vm2725 = vweird.f32 %v2719
  %vm2726 = vmor %vm2724, %vm2725
  %v2727 = vsel %vm2726, %v2719, %v2723
  %v2728 = vand.u32 2147483647, %v2529
  %vm2729 = vcmp.eq.f32.partialorder %v2728, 8.507059e+37
  %v2730 = vand.u32 %v2529, 2147483648
  %v2731 = vor.u32 1.1754944e-38, %v2730
  %v2732 = vsel %vm2729, %v2731, %v2727
  %v2733 = vmul.f32 1.0, %v2732
  %v2734 = vrcp.pop %v2530
  %v2735 = vmul.f32 %v2530, %v2734
  %v2736 = vsub.f32 1.0, %v2735
  %v2737 = vmul.f32 %v2734, %v2736
  %v2738 = vadd.f32 %v2734, %v2737
  %vm2739 = vweird.f32 %v2530
  %vm2740 = vweird.f32 %v2734
  %vm2741 = vmor %vm2739, %vm2740
  %v2742 = vsel %vm2741, %v2734, %v2738
  %v2743 = vand.u32 2147483647, %v2530
  %vm2744 = vcmp.eq.f32.partialorder %v2743, 8.507059e+37
  %v2745 = vand.u32 %v2530, 2147483648
  %v2746 = vor.u32 1.1754944e-38, %v2745
  %v2747 = vsel %vm2744, %v2746, %v2742
  %v2748 = vmul.f32 1.0, %v2747
  %v2749 = vrcp.pop %v2531
  %v2750 = vmul.f32 %v2531, %v2749
  %v2751 = vsub.f32 1.0, %v2750
  %v2752 = vmul.f32 %v2749, %v2751
  %v2753 = vadd.f32 %v2749, %v2752
  %vm2754 = vweird.f32 %v2531
  %vm2755 = vweird.f32 %v2749
  %vm2756 = vmor %vm2754, %vm2755
  %v2757 = vsel %vm2756, %v2749, %v2753
  %v2758 = vand.u32 2147483647, %v2531
  %vm2759 = vcmp.eq.f32.partialorder %v2758, 8.507059e+37
  %v2760 = vand.u32 %v2531, 2147483648
  %v2761 = vor.u32 1.1754944e-38, %v2760
  %v2762 = vsel %vm2759, %v2761, %v2757
  %v2763 = vmul.f32 1.0, %v2762
  %v2764 = vrcp.pop %v2532
  %v2765 = vmul.f32 %v2532, %v2764
  %v2766 = vsub.f32 1.0, %v2765
  %v2767 = vmul.f32 %v2764, %v2766
  %v2768 = vadd.f32 %v2764, %v2767
  %vm2769 = vweird.f32 %v2532
  %vm2770 = vweird.f32 %v2764
  %vm2771 = vmor %vm2769, %vm2770
  %v2772 = vsel %vm2771, %v2764, %v2768
  %v2773 = vand.u32 2147483647, %v2532
  %vm2774 = vcmp.eq.f32.partialorder %v2773, 8.507059e+37
  %v2775 = vand.u32 %v2532, 2147483648
  %v2776 = vor.u32 1.1754944e-38, %v2775
  %v2777 = vsel %vm2774, %v2776, %v2772
  %v2778 = vmul.f32 1.0, %v2777
  %v2779 = vrcp.pop %v2533
  %v2780 = vmul.f32 %v2533, %v2779
  %v2781 = vsub.f32 1.0, %v2780
  %v2782 = vmul.f32 %v2779, %v2781
  %v2783 = vadd.f32 %v2779, %v2782
  %vm2784 = vweird.f32 %v2533
  %vm2785 = vweird.f32 %v2779
  %vm2786 = vmor %vm2784, %vm2785
  %v2787 = vsel %vm2786, %v2779, %v2783
  %v2788 = vand.u32 2147483647, %v2533
  %vm2789 = vcmp.eq.f32.partialorder %v2788, 8.507059e+37
  %v2790 = vand.u32 %v2533, 2147483648
  %v2791 = vor.u32 1.1754944e-38, %v2790
  %v2792 = vsel %vm2789, %v2791, %v2787
  %v2793 = vmul.f32 1.0, %v2792
  %v2794 = vrcp.pop %v2534
  %v2795 = vmul.f32 %v2534, %v2794
  %v2796 = vsub.f32 1.0, %v2795
  %v2797 = vmul.f32 %v2794, %v2796
  %v2798 = vadd.f32 %v2794, %v2797
  %vm2799 = vweird.f32 %v2534
  %vm2800 = vweird.f32 %v2794
  %vm2801 = vmor %vm2799, %vm2800
  %v2802 = vsel %vm2801, %v2794, %v2798
  %v2803 = vand.u32 2147483647, %v2534
  %vm2804 = vcmp.eq.f32.partialorder %v2803, 8.507059e+37
  %v2805 = vand.u32 %v2534, 2147483648
  %v2806 = vor.u32 1.1754944e-38, %v2805
  %v2807 = vsel %vm2804, %v2806, %v2802
  %v2808 = vmul.f32 1.0, %v2807
  %v2809 = vrcp.pop %v2535
  %v2810 = vmul.f32 %v2535, %v2809
  %v2811 = vsub.f32 1.0, %v2810
  %v2812 = vmul.f32 %v2809, %v2811
  %v2813 = vadd.f32 %v2809, %v2812
  %vm2814 = vweird.f32 %v2535
  %vm2815 = vweird.f32 %v2809
  %vm2816 = vmor %vm2814, %vm2815
  %v2817 = vsel %vm2816, %v2809, %v2813
  %v2818 = vand.u32 2147483647, %v2535
  %vm2819 = vcmp.eq.f32.partialorder %v2818, 8.507059e+37
  %v2820 = vand.u32 %v2535, 2147483648
  %v2821 = vor.u32 1.1754944e-38, %v2820
  %v2822 = vsel %vm2819, %v2821, %v2817
  %v2823 = vmul.f32 1.0, %v2822
  %v2824 = vrcp.pop %v2536
  %v2825 = vmul.f32 %v2536, %v2824
  %v2826 = vsub.f32 1.0, %v2825
  %v2827 = vmul.f32 %v2824, %v2826
  %v2828 = vadd.f32 %v2824, %v2827
  %vm2829 = vweird.f32 %v2536
  %vm2830 = vweird.f32 %v2824
  %vm2831 = vmor %vm2829, %vm2830
  %v2832 = vsel %vm2831, %v2824, %v2828
  %v2833 = vand.u32 2147483647, %v2536
  %vm2834 = vcmp.eq.f32.partialorder %v2833, 8.507059e+37
  %v2835 = vand.u32 %v2536, 2147483648
  %v2836 = vor.u32 1.1754944e-38, %v2835
  %v2837 = vsel %vm2834, %v2836, %v2832
  %v2838 = vmul.f32 1.0, %v2837
  %v2839 = vrcp.pop %v2537
  %v2840 = vmul.f32 %v2537, %v2839
  %v2841 = vsub.f32 1.0, %v2840
  %v2842 = vmul.f32 %v2839, %v2841
  %v2843 = vadd.f32 %v2839, %v2842
  %vm2844 = vweird.f32 %v2537
  %vm2845 = vweird.f32 %v2839
  %vm2846 = vmor %vm2844, %vm2845
  %v2847 = vsel %vm2846, %v2839, %v2843
  %v2848 = vand.u32 2147483647, %v2537
  %vm2849 = vcmp.eq.f32.partialorder %v2848, 8.507059e+37
  %v2850 = vand.u32 %v2537, 2147483648
  %v2851 = vor.u32 1.1754944e-38, %v2850
  %v2852 = vsel %vm2849, %v2851, %v2847
  %v2853 = vmul.f32 1.0, %v2852
  %v2854 = vrcp.pop %v2538
  %v2855 = vmul.f32 %v2538, %v2854
  %v2856 = vsub.f32 1.0, %v2855
  %v2857 = vmul.f32 %v2854, %v2856
  %v2858 = vadd.f32 %v2854, %v2857
  %vm2859 = vweird.f32 %v2538
  %vm2860 = vweird.f32 %v2854
  %vm2861 = vmor %vm2859, %vm2860
  %v2862 = vsel %vm2861, %v2854, %v2858
  %v2863 = vand.u32 2147483647, %v2538
  %vm2864 = vcmp.eq.f32.partialorder %v2863, 8.507059e+37
  %v2865 = vand.u32 %v2538, 2147483648
  %v2866 = vor.u32 1.1754944e-38, %v2865
  %v2867 = vsel %vm2864, %v2866, %v2862
  %v2868 = vmul.f32 1.0, %v2867
  %v2869 = vrcp.pop %v2539
  %v2870 = vmul.f32 %v2539, %v2869
  %v2871 = vsub.f32 1.0, %v2870
  %v2872 = vmul.f32 %v2869, %v2871
  %v2873 = vadd.f32 %v2869, %v2872
  %vm2874 = vweird.f32 %v2539
  %vm2875 = vweird.f32 %v2869
  %vm2876 = vmor %vm2874, %vm2875
  %v2877 = vsel %vm2876, %v2869, %v2873
  %v2878 = vand.u32 2147483647, %v2539
  %vm2879 = vcmp.eq.f32.partialorder %v2878, 8.507059e+37
  %v2880 = vand.u32 %v2539, 2147483648
  %v2881 = vor.u32 1.1754944e-38, %v2880
  %v2882 = vsel %vm2879, %v2881, %v2877
  %v2883 = vmul.f32 1.0, %v2882
  %v2884 = vrcp.pop %v2540
  %v2885 = vmul.f32 %v2540, %v2884
  %v2886 = vsub.f32 1.0, %v2885
  %v2887 = vmul.f32 %v2884, %v2886
  %v2888 = vadd.f32 %v2884, %v2887
  %vm2889 = vweird.f32 %v2540
  %vm2890 = vweird.f32 %v2884
  %vm2891 = vmor %vm2889, %vm2890
  %v2892 = vsel %vm2891, %v2884, %v2888
  %v2893 = vand.u32 2147483647, %v2540
  %vm2894 = vcmp.eq.f32.partialorder %v2893, 8.507059e+37
  %v2895 = vand.u32 %v2540, 2147483648
  %v2896 = vor.u32 1.1754944e-38, %v2895
  %v2897 = vsel %vm2894, %v2896, %v2892
  %v2898 = vmul.f32 1.0, %v2897
  %v2899 = vrcp.pop %v2541
  %v2900 = vmul.f32 %v2541, %v2899
  %v2901 = vsub.f32 1.0, %v2900
  %v2902 = vmul.f32 %v2899, %v2901
  %v2903 = vadd.f32 %v2899, %v2902
  %vm2904 = vweird.f32 %v2541
  %vm2905 = vweird.f32 %v2899
  %vm2906 = vmor %vm2904, %vm2905
  %v2907 = vsel %vm2906, %v2899, %v2903
  %v2908 = vand.u32 2147483647, %v2541
  %vm2909 = vcmp.eq.f32.partialorder %v2908, 8.507059e+37
  %v2910 = vand.u32 %v2541, 2147483648
  %v2911 = vor.u32 1.1754944e-38, %v2910
  %v2912 = vsel %vm2909, %v2911, %v2907
  %v2913 = vmul.f32 1.0, %v2912
  %v2914 = vrcp.pop %v2542
  %v2915 = vmul.f32 %v2542, %v2914
  %v2916 = vsub.f32 1.0, %v2915
  %v2917 = vmul.f32 %v2914, %v2916
  %v2918 = vadd.f32 %v2914, %v2917
  %vm2919 = vweird.f32 %v2542
  %vm2920 = vweird.f32 %v2914
  %vm2921 = vmor %vm2919, %vm2920
  %v2922 = vsel %vm2921, %v2914, %v2918
  %v2923 = vand.u32 2147483647, %v2542
  %vm2924 = vcmp.eq.f32.partialorder %v2923, 8.507059e+37
  %v2925 = vand.u32 %v2542, 2147483648
  %v2926 = vor.u32 1.1754944e-38, %v2925
  %v2927 = vsel %vm2924, %v2926, %v2922
  %v2928 = vmul.f32 1.0, %v2927
  %v2929 = vrcp.pop %v2543
  %v2930 = vmul.f32 %v2543, %v2929
  %v2931 = vsub.f32 1.0, %v2930
  %v2932 = vmul.f32 %v2929, %v2931
  %v2933 = vadd.f32 %v2929, %v2932
  %vm2934 = vweird.f32 %v2543
  %vm2935 = vweird.f32 %v2929
  %vm2936 = vmor %vm2934, %vm2935
  %v2937 = vsel %vm2936, %v2929, %v2933
  %v2938 = vand.u32 2147483647, %v2543
  %vm2939 = vcmp.eq.f32.partialorder %v2938, 8.507059e+37
  %v2940 = vand.u32 %v2543, 2147483648
  %v2941 = vor.u32 1.1754944e-38, %v2940
  %v2942 = vsel %vm2939, %v2941, %v2937
  %v2943 = vmul.f32 1.0, %v2942
  %v2944 = vrcp.pop %v2544
  %v2945 = vmul.f32 %v2544, %v2944
  %v2946 = vsub.f32 1.0, %v2945
  %v2947 = vmul.f32 %v2944, %v2946
  %v2948 = vadd.f32 %v2944, %v2947
  %vm2949 = vweird.f32 %v2544
  %vm2950 = vweird.f32 %v2944
  %vm2951 = vmor %vm2949, %vm2950
  %v2952 = vsel %vm2951, %v2944, %v2948
  %v2953 = vand.u32 2147483647, %v2544
  %vm2954 = vcmp.eq.f32.partialorder %v2953, 8.507059e+37
  %v2955 = vand.u32 %v2544, 2147483648
  %v2956 = vor.u32 1.1754944e-38, %v2955
  %v2957 = vsel %vm2954, %v2956, %v2952
  %v2958 = vmul.f32 1.0, %v2957
  %v2959 = vrcp.pop %v2545
  %v2960 = vmul.f32 %v2545, %v2959
  %v2961 = vsub.f32 1.0, %v2960
  %v2962 = vmul.f32 %v2959, %v2961
  %v2963 = vadd.f32 %v2959, %v2962
  %vm2964 = vweird.f32 %v2545
  %vm2965 = vweird.f32 %v2959
  %vm2966 = vmor %vm2964, %vm2965
  %v2967 = vsel %vm2966, %v2959, %v2963
  %v2968 = vand.u32 2147483647, %v2545
  %vm2969 = vcmp.eq.f32.partialorder %v2968, 8.507059e+37
  %v2970 = vand.u32 %v2545, 2147483648
  %v2971 = vor.u32 1.1754944e-38, %v2970
  %v2972 = vsel %vm2969, %v2971, %v2967
  %v2973 = vmul.f32 1.0, %v2972
  %v2974 = vrcp.pop %v2546
  %v2975 = vmul.f32 %v2546, %v2974
  %v2976 = vsub.f32 1.0, %v2975
  %v2977 = vmul.f32 %v2974, %v2976
  %v2978 = vadd.f32 %v2974, %v2977
  %vm2979 = vweird.f32 %v2546
  %vm2980 = vweird.f32 %v2974
  %vm2981 = vmor %vm2979, %vm2980
  %v2982 = vsel %vm2981, %v2974, %v2978
  %v2983 = vand.u32 2147483647, %v2546
  %vm2984 = vcmp.eq.f32.partialorder %v2983, 8.507059e+37
  %v2985 = vand.u32 %v2546, 2147483648
  %v2986 = vor.u32 1.1754944e-38, %v2985
  %v2987 = vsel %vm2984, %v2986, %v2982
  %v2988 = vmul.f32 1.0, %v2987
  %v2989 = vrcp.pop %v2547
  %v2990 = vmul.f32 %v2547, %v2989
  %v2991 = vsub.f32 1.0, %v2990
  %v2992 = vmul.f32 %v2989, %v2991
  %v2993 = vadd.f32 %v2989, %v2992
  %vm2994 = vweird.f32 %v2547
  %vm2995 = vweird.f32 %v2989
  %vm2996 = vmor %vm2994, %vm2995
  %v2997 = vsel %vm2996, %v2989, %v2993
  %v2998 = vand.u32 2147483647, %v2547
  %vm2999 = vcmp.eq.f32.partialorder %v2998, 8.507059e+37
  %v3000 = vand.u32 %v2547, 2147483648
  %v3001 = vor.u32 1.1754944e-38, %v3000
  %v3002 = vsel %vm2999, %v3001, %v2997
  %v3003 = vmul.f32 1.0, %v3002
  %v3004 = vrcp.pop %v2548
  %v3005 = vmul.f32 %v2548, %v3004
  %v3006 = vsub.f32 1.0, %v3005
  %v3007 = vmul.f32 %v3004, %v3006
  %v3008 = vadd.f32 %v3004, %v3007
  %vm3009 = vweird.f32 %v2548
  %vm3010 = vweird.f32 %v3004
  %vm3011 = vmor %vm3009, %vm3010
  %v3012 = vsel %vm3011, %v3004, %v3008
  %v3013 = vand.u32 2147483647, %v2548
  %vm3014 = vcmp.eq.f32.partialorder %v3013, 8.507059e+37
  %v3015 = vand.u32 %v2548, 2147483648
  %v3016 = vor.u32 1.1754944e-38, %v3015
  %v3017 = vsel %vm3014, %v3016, %v3012
  %v3018 = vmul.f32 1.0, %v3017
  %v3019 = vrcp.pop %v2549
  %v3020 = vmul.f32 %v2549, %v3019
  %v3021 = vsub.f32 1.0, %v3020
  %v3022 = vmul.f32 %v3019, %v3021
  %v3023 = vadd.f32 %v3019, %v3022
  %vm3024 = vweird.f32 %v2549
  %vm3025 = vweird.f32 %v3019
  %vm3026 = vmor %vm3024, %vm3025
  %v3027 = vsel %vm3026, %v3019, %v3023
  %v3028 = vand.u32 2147483647, %v2549
  %vm3029 = vcmp.eq.f32.partialorder %v3028, 8.507059e+37
  %v3030 = vand.u32 %v2549, 2147483648
  %v3031 = vor.u32 1.1754944e-38, %v3030
  %v3032 = vsel %vm3029, %v3031, %v3027
  %v3033 = vmul.f32 1.0, %v3032
  %v3034 = vrcp.pop %v2550
  %v3035 = vmul.f32 %v2550, %v3034
  %v3036 = vsub.f32 1.0, %v3035
  %v3037 = vmul.f32 %v3034, %v3036
  %v3038 = vadd.f32 %v3034, %v3037
  %vm3039 = vweird.f32 %v2550
  %vm3040 = vweird.f32 %v3034
  %vm3041 = vmor %vm3039, %vm3040
  %v3042 = vsel %vm3041, %v3034, %v3038
  %v3043 = vand.u32 2147483647, %v2550
  %vm3044 = vcmp.eq.f32.partialorder %v3043, 8.507059e+37
  %v3045 = vand.u32 %v2550, 2147483648
  %v3046 = vor.u32 1.1754944e-38, %v3045
  %v3047 = vsel %vm3044, %v3046, %v3042
  %v3048 = vmul.f32 1.0, %v3047
  %v3049 = vrcp.pop %v2551
  %v3050 = vmul.f32 %v2551, %v3049
  %v3051 = vsub.f32 1.0, %v3050
  %v3052 = vmul.f32 %v3049, %v3051
  %v3053 = vadd.f32 %v3049, %v3052
  %vm3054 = vweird.f32 %v2551
  %vm3055 = vweird.f32 %v3049
  %vm3056 = vmor %vm3054, %vm3055
  %v3057 = vsel %vm3056, %v3049, %v3053
  %v3058 = vand.u32 2147483647, %v2551
  %vm3059 = vcmp.eq.f32.partialorder %v3058, 8.507059e+37
  %v3060 = vand.u32 %v2551, 2147483648
  %v3061 = vor.u32 1.1754944e-38, %v3060
  %v3062 = vsel %vm3059, %v3061, %v3057
  %v3063 = vmul.f32 1.0, %v3062
  %v3064 = vrcp.pop %v2552
  %v3065 = vmul.f32 %v2552, %v3064
  %v3066 = vsub.f32 1.0, %v3065
  %v3067 = vmul.f32 %v3064, %v3066
  %v3068 = vadd.f32 %v3064, %v3067
  %vm3069 = vweird.f32 %v2552
  %vm3070 = vweird.f32 %v3064
  %vm3071 = vmor %vm3069, %vm3070
  %v3072 = vsel %vm3071, %v3064, %v3068
  %v3073 = vand.u32 2147483647, %v2552
  %vm3074 = vcmp.eq.f32.partialorder %v3073, 8.507059e+37
  %v3075 = vand.u32 %v2552, 2147483648
  %v3076 = vor.u32 1.1754944e-38, %v3075
  %v3077 = vsel %vm3074, %v3076, %v3072
  %v3078 = vmul.f32 1.0, %v3077
  %v3079 = vrcp.pop %v2553
  %v3080 = vmul.f32 %v2553, %v3079
  %v3081 = vsub.f32 1.0, %v3080
  %v3082 = vmul.f32 %v3079, %v3081
  %v3083 = vadd.f32 %v3079, %v3082
  %vm3084 = vweird.f32 %v2553
  %vm3085 = vweird.f32 %v3079
  %vm3086 = vmor %vm3084, %vm3085
  %v3087 = vsel %vm3086, %v3079, %v3083
  %v3088 = vand.u32 2147483647, %v2553
  %vm3089 = vcmp.eq.f32.partialorder %v3088, 8.507059e+37
  %v3090 = vand.u32 %v2553, 2147483648
  %v3091 = vor.u32 1.1754944e-38, %v3090
  %v3092 = vsel %vm3089, %v3091, %v3087
  %v3093 = vmul.f32 1.0, %v3092
  %v3094 = vrcp.pop %v2554
  %v3095 = vmul.f32 %v2554, %v3094
  %v3096 = vsub.f32 1.0, %v3095
  %v3097 = vmul.f32 %v3094, %v3096
  %v3098 = vadd.f32 %v3094, %v3097
  %vm3099 = vweird.f32 %v2554
  %vm3100 = vweird.f32 %v3094
  %vm3101 = vmor %vm3099, %vm3100
  %v3102 = vsel %vm3101, %v3094, %v3098
  %v3103 = vand.u32 2147483647, %v2554
  %vm3104 = vcmp.eq.f32.partialorder %v3103, 8.507059e+37
  %v3105 = vand.u32 %v2554, 2147483648
  %v3106 = vor.u32 1.1754944e-38, %v3105
  %v3107 = vsel %vm3104, %v3106, %v3102
  %v3108 = vmul.f32 1.0, %v3107
  %v3109 = vrcp.pop %v2555
  %v3110 = vmul.f32 %v2555, %v3109
  %v3111 = vsub.f32 1.0, %v3110
  %v3112 = vmul.f32 %v3109, %v3111
  %v3113 = vadd.f32 %v3109, %v3112
  %vm3114 = vweird.f32 %v2555
  %vm3115 = vweird.f32 %v3109
  %vm3116 = vmor %vm3114, %vm3115
  %v3117 = vsel %vm3116, %v3109, %v3113
  %v3118 = vand.u32 2147483647, %v2555
  %vm3119 = vcmp.eq.f32.partialorder %v3118, 8.507059e+37
  %v3120 = vand.u32 %v2555, 2147483648
  %v3121 = vor.u32 1.1754944e-38, %v3120
  %v3122 = vsel %vm3119, %v3121, %v3117
  %v3123 = vmul.f32 1.0, %v3122
  %v3124 = vrcp.pop %v2556
  %v3125 = vmul.f32 %v2556, %v3124
  %v3126 = vsub.f32 1.0, %v3125
  %v3127 = vmul.f32 %v3124, %v3126
  %v3128 = vadd.f32 %v3124, %v3127
  %vm3129 = vweird.f32 %v2556
  %vm3130 = vweird.f32 %v3124
  %vm3131 = vmor %vm3129, %vm3130
  %v3132 = vsel %vm3131, %v3124, %v3128
  %v3133 = vand.u32 2147483647, %v2556
  %vm3134 = vcmp.eq.f32.partialorder %v3133, 8.507059e+37
  %v3135 = vand.u32 %v2556, 2147483648
  %v3136 = vor.u32 1.1754944e-38, %v3135
  %v3137 = vsel %vm3134, %v3136, %v3132
  %v3138 = vmul.f32 1.0, %v3137
  %v3139 = vrcp.pop %v2557
  %v3140 = vmul.f32 %v2557, %v3139
  %v3141 = vsub.f32 1.0, %v3140
  %v3142 = vmul.f32 %v3139, %v3141
  %v3143 = vadd.f32 %v3139, %v3142
  %vm3144 = vweird.f32 %v2557
  %vm3145 = vweird.f32 %v3139
  %vm3146 = vmor %vm3144, %vm3145
  %v3147 = vsel %vm3146, %v3139, %v3143
  %v3148 = vand.u32 2147483647, %v2557
  %vm3149 = vcmp.eq.f32.partialorder %v3148, 8.507059e+37
  %v3150 = vand.u32 %v2557, 2147483648
  %v3151 = vor.u32 1.1754944e-38, %v3150
  %v3152 = vsel %vm3149, %v3151, %v3147
  %v3153 = vmul.f32 1.0, %v3152
  %v3154 = vrcp.pop %v2558
  %v3155 = vmul.f32 %v2558, %v3154
  %v3156 = vsub.f32 1.0, %v3155
  %v3157 = vmul.f32 %v3154, %v3156
  %v3158 = vadd.f32 %v3154, %v3157
  %vm3159 = vweird.f32 %v2558
  %vm3160 = vweird.f32 %v3154
  %vm3161 = vmor %vm3159, %vm3160
  %v3162 = vsel %vm3161, %v3154, %v3158
  %v3163 = vand.u32 2147483647, %v2558
  %vm3164 = vcmp.eq.f32.partialorder %v3163, 8.507059e+37
  %v3165 = vand.u32 %v2558, 2147483648
  %v3166 = vor.u32 1.1754944e-38, %v3165
  %v3167 = vsel %vm3164, %v3166, %v3162
  %v3168 = vmul.f32 1.0, %v3167
  %v3169 = vrcp.pop %v2559
  %v3170 = vmul.f32 %v2559, %v3169
  %v3171 = vsub.f32 1.0, %v3170
  %v3172 = vmul.f32 %v3169, %v3171
  %v3173 = vadd.f32 %v3169, %v3172
  %vm3174 = vweird.f32 %v2559
  %vm3175 = vweird.f32 %v3169
  %vm3176 = vmor %vm3174, %vm3175
  %v3177 = vsel %vm3176, %v3169, %v3173
  %v3178 = vand.u32 2147483647, %v2559
  %vm3179 = vcmp.eq.f32.partialorder %v3178, 8.507059e+37
  %v3180 = vand.u32 %v2559, 2147483648
  %v3181 = vor.u32 1.1754944e-38, %v3180
  %v3182 = vsel %vm3179, %v3181, %v3177
  %v3183 = vmul.f32 1.0, %v3182
  %v3184 = vrcp.pop %v2560
  %v3185 = vmul.f32 %v2560, %v3184
  %v3186 = vsub.f32 1.0, %v3185
  %v3187 = vmul.f32 %v3184, %v3186
  %v3188 = vadd.f32 %v3184, %v3187
  %vm3189 = vweird.f32 %v2560
  %vm3190 = vweird.f32 %v3184
  %vm3191 = vmor %vm3189, %vm3190
  %v3192 = vsel %vm3191, %v3184, %v3188
  %v3193 = vand.u32 2147483647, %v2560
  %vm3194 = vcmp.eq.f32.partialorder %v3193, 8.507059e+37
  %v3195 = vand.u32 %v2560, 2147483648
  %v3196 = vor.u32 1.1754944e-38, %v3195
  %v3197 = vsel %vm3194, %v3196, %v3192
  %v3198 = vmul.f32 1.0, %v3197
  %v3199 = vrcp.pop %v2561
  %v3200 = vmul.f32 %v2561, %v3199
  %v3201 = vsub.f32 1.0, %v3200
  %v3202 = vmul.f32 %v3199, %v3201
  %v3203 = vadd.f32 %v3199, %v3202
  %vm3204 = vweird.f32 %v2561
  %vm3205 = vweird.f32 %v3199
  %vm3206 = vmor %vm3204, %vm3205
  %v3207 = vsel %vm3206, %v3199, %v3203
  %v3208 = vand.u32 2147483647, %v2561
  %vm3209 = vcmp.eq.f32.partialorder %v3208, 8.507059e+37
  %v3210 = vand.u32 %v2561, 2147483648
  %v3211 = vor.u32 1.1754944e-38, %v3210
  %v3212 = vsel %vm3209, %v3211, %v3207
  %v3213 = vmul.f32 1.0, %v3212
  %v3214 = vrcp.pop %v2562
  %v3215 = vmul.f32 %v2562, %v3214
  %v3216 = vsub.f32 1.0, %v3215
  %v3217 = vmul.f32 %v3214, %v3216
  %v3218 = vadd.f32 %v3214, %v3217
  %vm3219 = vweird.f32 %v2562
  %vm3220 = vweird.f32 %v3214
  %vm3221 = vmor %vm3219, %vm3220
  %v3222 = vsel %vm3221, %v3214, %v3218
  %v3223 = vand.u32 2147483647, %v2562
  %vm3224 = vcmp.eq.f32.partialorder %v3223, 8.507059e+37
  %v3225 = vand.u32 %v2562, 2147483648
  %v3226 = vor.u32 1.1754944e-38, %v3225
  %v3227 = vsel %vm3224, %v3226, %v3222
  %v3228 = vmul.f32 1.0, %v3227
  %v3229 = vrcp.pop %v2563
  %v3230 = vmul.f32 %v2563, %v3229
  %v3231 = vsub.f32 1.0, %v3230
  %v3232 = vmul.f32 %v3229, %v3231
  %v3233 = vadd.f32 %v3229, %v3232
  %vm3234 = vweird.f32 %v2563
  %vm3235 = vweird.f32 %v3229
  %vm3236 = vmor %vm3234, %vm3235
  %v3237 = vsel %vm3236, %v3229, %v3233
  %v3238 = vand.u32 2147483647, %v2563
  %vm3239 = vcmp.eq.f32.partialorder %v3238, 8.507059e+37
  %v3240 = vand.u32 %v2563, 2147483648
  %v3241 = vor.u32 1.1754944e-38, %v3240
  %v3242 = vsel %vm3239, %v3241, %v3237
  %v3243 = vmul.f32 1.0, %v3242
  %v3244 = vrcp.pop %v2564
  %v3245 = vmul.f32 %v2564, %v3244
  %v3246 = vsub.f32 1.0, %v3245
  %v3247 = vmul.f32 %v3244, %v3246
  %v3248 = vadd.f32 %v3244, %v3247
  %vm3249 = vweird.f32 %v2564
  %vm3250 = vweird.f32 %v3244
  %vm3251 = vmor %vm3249, %vm3250
  %v3252 = vsel %vm3251, %v3244, %v3248
  %v3253 = vand.u32 2147483647, %v2564
  %vm3254 = vcmp.eq.f32.partialorder %v3253, 8.507059e+37
  %v3255 = vand.u32 %v2564, 2147483648
  %v3256 = vor.u32 1.1754944e-38, %v3255
  %v3257 = vsel %vm3254, %v3256, %v3252
  %v3258 = vmul.f32 1.0, %v3257
  %v3259 = vrcp.pop %v2565
  %v3260 = vmul.f32 %v2565, %v3259
  %v3261 = vsub.f32 1.0, %v3260
  %v3262 = vmul.f32 %v3259, %v3261
  %v3263 = vadd.f32 %v3259, %v3262
  %vm3264 = vweird.f32 %v2565
  %vm3265 = vweird.f32 %v3259
  %vm3266 = vmor %vm3264, %vm3265
  %v3267 = vsel %vm3266, %v3259, %v3263
  %v3268 = vand.u32 2147483647, %v2565
  %vm3269 = vcmp.eq.f32.partialorder %v3268, 8.507059e+37
  %v3270 = vand.u32 %v2565, 2147483648
  %v3271 = vor.u32 1.1754944e-38, %v3270
  %v3272 = vsel %vm3269, %v3271, %v3267
  %v3273 = vmul.f32 1.0, %v3272
  %v3274 = vrcp.pop %v2566
  %v3275 = vmul.f32 %v2566, %v3274
  %v3276 = vsub.f32 1.0, %v3275
  %v3277 = vmul.f32 %v3274, %v3276
  %v3278 = vadd.f32 %v3274, %v3277
  %vm3279 = vweird.f32 %v2566
  %vm3280 = vweird.f32 %v3274
  %vm3281 = vmor %vm3279, %vm3280
  %v3282 = vsel %vm3281, %v3274, %v3278
  %v3283 = vand.u32 2147483647, %v2566
  %vm3284 = vcmp.eq.f32.partialorder %v3283, 8.507059e+37
  %v3285 = vand.u32 %v2566, 2147483648
  %v3286 = vor.u32 1.1754944e-38, %v3285
  %v3287 = vsel %vm3284, %v3286, %v3282
  %v3288 = vmul.f32 1.0, %v3287
  %v3289 = vrcp.pop %v2567
  %v3290 = vmul.f32 %v2567, %v3289
  %v3291 = vsub.f32 1.0, %v3290
  %v3292 = vmul.f32 %v3289, %v3291
  %v3293 = vadd.f32 %v3289, %v3292
  %vm3294 = vweird.f32 %v2567
  %vm3295 = vweird.f32 %v3289
  %vm3296 = vmor %vm3294, %vm3295
  %v3297 = vsel %vm3296, %v3289, %v3293
  %v3298 = vand.u32 2147483647, %v2567
  %vm3299 = vcmp.eq.f32.partialorder %v3298, 8.507059e+37
  %v3300 = vand.u32 %v2567, 2147483648
  %v3301 = vor.u32 1.1754944e-38, %v3300
  %v3302 = vsel %vm3299, %v3301, %v3297
  %v3303 = vmul.f32 1.0, %v3302
  %v3304 = vrcp.pop %v2568
  %v3305 = vmul.f32 %v2568, %v3304
  %v3306 = vsub.f32 1.0, %v3305
  %v3307 = vmul.f32 %v3304, %v3306
  %v3308 = vadd.f32 %v3304, %v3307
  %vm3309 = vweird.f32 %v2568
  %vm3310 = vweird.f32 %v3304
  %vm3311 = vmor %vm3309, %vm3310
  %v3312 = vsel %vm3311, %v3304, %v3308
  %v3313 = vand.u32 2147483647, %v2568
  %vm3314 = vcmp.eq.f32.partialorder %v3313, 8.507059e+37
  %v3315 = vand.u32 %v2568, 2147483648
  %v3316 = vor.u32 1.1754944e-38, %v3315
  %v3317 = vsel %vm3314, %v3316, %v3312
  %v3318 = vmul.f32 1.0, %v3317
  %v3319 = vrcp.pop %v2569
  %v3320 = vmul.f32 %v2569, %v3319
  %v3321 = vsub.f32 1.0, %v3320
  %v3322 = vmul.f32 %v3319, %v3321
  %v3323 = vadd.f32 %v3319, %v3322
  %vm3324 = vweird.f32 %v2569
  %vm3325 = vweird.f32 %v3319
  %vm3326 = vmor %vm3324, %vm3325
  %v3327 = vsel %vm3326, %v3319, %v3323
  %v3328 = vand.u32 2147483647, %v2569
  %vm3329 = vcmp.eq.f32.partialorder %v3328, 8.507059e+37
  %v3330 = vand.u32 %v2569, 2147483648
  %v3331 = vor.u32 1.1754944e-38, %v3330
  %v3332 = vsel %vm3329, %v3331, %v3327
  %v3333 = vmul.f32 1.0, %v3332
  %v3334 = vrcp.pop %v2570
  %v3335 = vmul.f32 %v2570, %v3334
  %v3336 = vsub.f32 1.0, %v3335
  %v3337 = vmul.f32 %v3334, %v3336
  %v3338 = vadd.f32 %v3334, %v3337
  %vm3339 = vweird.f32 %v2570
  %vm3340 = vweird.f32 %v3334
  %vm3341 = vmor %vm3339, %vm3340
  %v3342 = vsel %vm3341, %v3334, %v3338
  %v3343 = vand.u32 2147483647, %v2570
  %vm3344 = vcmp.eq.f32.partialorder %v3343, 8.507059e+37
  %v3345 = vand.u32 %v2570, 2147483648
  %v3346 = vor.u32 1.1754944e-38, %v3345
  %v3347 = vsel %vm3344, %v3346, %v3342
  %v3348 = vmul.f32 1.0, %v3347
  %v3349 = vrcp.pop %v2571
  %v3350 = vmul.f32 %v2571, %v3349
  %v3351 = vsub.f32 1.0, %v3350
  %v3352 = vmul.f32 %v3349, %v3351
  %v3353 = vadd.f32 %v3349, %v3352
  %vm3354 = vweird.f32 %v2571
  %vm3355 = vweird.f32 %v3349
  %vm3356 = vmor %vm3354, %vm3355
  %v3357 = vsel %vm3356, %v3349, %v3353
  %v3358 = vand.u32 2147483647, %v2571
  %vm3359 = vcmp.eq.f32.partialorder %v3358, 8.507059e+37
  %v3360 = vand.u32 %v2571, 2147483648
  %v3361 = vor.u32 1.1754944e-38, %v3360
  %v3362 = vsel %vm3359, %v3361, %v3357
  %v3363 = vmul.f32 1.0, %v3362
  %v3364 = vrcp.pop %v2572
  %v3365 = vmul.f32 %v2572, %v3364
  %v3366 = vsub.f32 1.0, %v3365
  %v3367 = vmul.f32 %v3364, %v3366
  %v3368 = vadd.f32 %v3364, %v3367
  %vm3369 = vweird.f32 %v2572
  %vm3370 = vweird.f32 %v3364
  %vm3371 = vmor %vm3369, %vm3370
  %v3372 = vsel %vm3371, %v3364, %v3368
  %v3373 = vand.u32 2147483647, %v2572
  %vm3374 = vcmp.eq.f32.partialorder %v3373, 8.507059e+37
  %v3375 = vand.u32 %v2572, 2147483648
  %v3376 = vor.u32 1.1754944e-38, %v3375
  %v3377 = vsel %vm3374, %v3376, %v3372
  %v3378 = vmul.f32 1.0, %v3377
  %v3379 = vrcp.pop %v2573
  %v3380 = vmul.f32 %v2573, %v3379
  %v3381 = vsub.f32 1.0, %v3380
  %v3382 = vmul.f32 %v3379, %v3381
  %v3383 = vadd.f32 %v3379, %v3382
  %vm3384 = vweird.f32 %v2573
  %vm3385 = vweird.f32 %v3379
  %vm3386 = vmor %vm3384, %vm3385
  %v3387 = vsel %vm3386, %v3379, %v3383
  %v3388 = vand.u32 2147483647, %v2573
  %vm3389 = vcmp.eq.f32.partialorder %v3388, 8.507059e+37
  %v3390 = vand.u32 %v2573, 2147483648
  %v3391 = vor.u32 1.1754944e-38, %v3390
  %v3392 = vsel %vm3389, %v3391, %v3387
  %v3393 = vmul.f32 1.0, %v3392
  %v3394 = vrcp.pop %v2574
  %v3395 = vmul.f32 %v2574, %v3394
  %v3396 = vsub.f32 1.0, %v3395
  %v3397 = vmul.f32 %v3394, %v3396
  %v3398 = vadd.f32 %v3394, %v3397
  %vm3399 = vweird.f32 %v2574
  %vm3400 = vweird.f32 %v3394
  %vm3401 = vmor %vm3399, %vm3400
  %v3402 = vsel %vm3401, %v3394, %v3398
  %v3403 = vand.u32 2147483647, %v2574
  %vm3404 = vcmp.eq.f32.partialorder %v3403, 8.507059e+37
  %v3405 = vand.u32 %v2574, 2147483648
  %v3406 = vor.u32 1.1754944e-38, %v3405
  %v3407 = vsel %vm3404, %v3406, %v3402
  %v3408 = vmul.f32 1.0, %v3407
  %v3409 = vrcp.pop %v2575
  %v3410 = vmul.f32 %v2575, %v3409
  %v3411 = vsub.f32 1.0, %v3410
  %v3412 = vmul.f32 %v3409, %v3411
  %v3413 = vadd.f32 %v3409, %v3412
  %vm3414 = vweird.f32 %v2575
  %vm3415 = vweird.f32 %v3409
  %vm3416 = vmor %vm3414, %vm3415
  %v3417 = vsel %vm3416, %v3409, %v3413
  %v3418 = vand.u32 2147483647, %v2575
  %vm3419 = vcmp.eq.f32.partialorder %v3418, 8.507059e+37
  %v3420 = vand.u32 %v2575, 2147483648
  %v3421 = vor.u32 1.1754944e-38, %v3420
  %v3422 = vsel %vm3419, %v3421, %v3417
  %v3423 = vmul.f32 1.0, %v3422
  %v3424 = vrcp.pop %v2576
  %v3425 = vmul.f32 %v2576, %v3424
  %v3426 = vsub.f32 1.0, %v3425
  %v3427 = vmul.f32 %v3424, %v3426
  %v3428 = vadd.f32 %v3424, %v3427
  %vm3429 = vweird.f32 %v2576
  %vm3430 = vweird.f32 %v3424
  %vm3431 = vmor %vm3429, %vm3430
  %v3432 = vsel %vm3431, %v3424, %v3428
  %v3433 = vand.u32 2147483647, %v2576
  %vm3434 = vcmp.eq.f32.partialorder %v3433, 8.507059e+37
  %v3435 = vand.u32 %v2576, 2147483648
  %v3436 = vor.u32 1.1754944e-38, %v3435
  %v3437 = vsel %vm3434, %v3436, %v3432
  %v3438 = vmul.f32 1.0, %v3437
  %v3439 = vrcp.pop %v2577
  %v3440 = vmul.f32 %v2577, %v3439
  %v3441 = vsub.f32 1.0, %v3440
  %v3442 = vmul.f32 %v3439, %v3441
  %v3443 = vadd.f32 %v3439, %v3442
  %vm3444 = vweird.f32 %v2577
  %vm3445 = vweird.f32 %v3439
  %vm3446 = vmor %vm3444, %vm3445
  %v3447 = vsel %vm3446, %v3439, %v3443
  %v3448 = vand.u32 2147483647, %v2577
  %vm3449 = vcmp.eq.f32.partialorder %v3448, 8.507059e+37
  %v3450 = vand.u32 %v2577, 2147483648
  %v3451 = vor.u32 1.1754944e-38, %v3450
  %v3452 = vsel %vm3449, %v3451, %v3447
  %v3453 = vmul.f32 1.0, %v3452
  %v3454 = vrcp.pop %v2578
  %v3455 = vmul.f32 %v2578, %v3454
  %v3456 = vsub.f32 1.0, %v3455
  %v3457 = vmul.f32 %v3454, %v3456
  %v3458 = vadd.f32 %v3454, %v3457
  %vm3459 = vweird.f32 %v2578
  %vm3460 = vweird.f32 %v3454
  %vm3461 = vmor %vm3459, %vm3460
  %v3462 = vsel %vm3461, %v3454, %v3458
  %v3463 = vand.u32 2147483647, %v2578
  %vm3464 = vcmp.eq.f32.partialorder %v3463, 8.507059e+37
  %v3465 = vand.u32 %v2578, 2147483648
  %v3466 = vor.u32 1.1754944e-38, %v3465
  %v3467 = vsel %vm3464, %v3466, %v3462
  %v3468 = vmul.f32 1.0, %v3467
  %v3469 = vrcp.pop %v2579
  %v3470 = vmul.f32 %v2579, %v3469
  %v3471 = vsub.f32 1.0, %v3470
  %v3472 = vmul.f32 %v3469, %v3471
  %v3473 = vadd.f32 %v3469, %v3472
  %vm3474 = vweird.f32 %v2579
  %vm3475 = vweird.f32 %v3469
  %vm3476 = vmor %vm3474, %vm3475
  %v3477 = vsel %vm3476, %v3469, %v3473
  %v3478 = vand.u32 2147483647, %v2579
  %vm3479 = vcmp.eq.f32.partialorder %v3478, 8.507059e+37
  %v3480 = vand.u32 %v2579, 2147483648
  %v3481 = vor.u32 1.1754944e-38, %v3480
  %v3482 = vsel %vm3479, %v3481, %v3477
  %v3483 = vmul.f32 1.0, %v3482
  %v3484 = vrcp.pop %v2580
  %v3485 = vmul.f32 %v2580, %v3484
  %v3486 = vsub.f32 1.0, %v3485
  %v3487 = vmul.f32 %v3484, %v3486
  %v3488 = vadd.f32 %v3484, %v3487
  %vm3489 = vweird.f32 %v2580
  %vm3490 = vweird.f32 %v3484
  %vm3491 = vmor %vm3489, %vm3490
  %v3492 = vsel %vm3491, %v3484, %v3488
  %v3493 = vand.u32 2147483647, %v2580
  %vm3494 = vcmp.eq.f32.partialorder %v3493, 8.507059e+37
  %v3495 = vand.u32 %v2580, 2147483648
  %v3496 = vor.u32 1.1754944e-38, %v3495
  %v3497 = vsel %vm3494, %v3496, %v3492
  %v3498 = vmul.f32 1.0, %v3497
  %v3499 = vrcp.pop %v2581
  %v3500 = vmul.f32 %v2581, %v3499
  %v3501 = vsub.f32 1.0, %v3500
  %v3502 = vmul.f32 %v3499, %v3501
  %v3503 = vadd.f32 %v3499, %v3502
  %vm3504 = vweird.f32 %v2581
  %vm3505 = vweird.f32 %v3499
  %vm3506 = vmor %vm3504, %vm3505
  %v3507 = vsel %vm3506, %v3499, %v3503
  %v3508 = vand.u32 2147483647, %v2581
  %vm3509 = vcmp.eq.f32.partialorder %v3508, 8.507059e+37
  %v3510 = vand.u32 %v2581, 2147483648
  %v3511 = vor.u32 1.1754944e-38, %v3510
  %v3512 = vsel %vm3509, %v3511, %v3507
  %v3513 = vmul.f32 1.0, %v3512
  %v3514 = vrcp.pop %v2582
  %v3515 = vmul.f32 %v2582, %v3514
  %v3516 = vsub.f32 1.0, %v3515
  %v3517 = vmul.f32 %v3514, %v3516
  %v3518 = vadd.f32 %v3514, %v3517
  %vm3519 = vweird.f32 %v2582
  %vm3520 = vweird.f32 %v3514
  %vm3521 = vmor %vm3519, %vm3520
  %v3522 = vsel %vm3521, %v3514, %v3518
  %v3523 = vand.u32 2147483647, %v2582
  %vm3524 = vcmp.eq.f32.partialorder %v3523, 8.507059e+37
  %v3525 = vand.u32 %v2582, 2147483648
  %v3526 = vor.u32 1.1754944e-38, %v3525
  %v3527 = vsel %vm3524, %v3526, %v3522
  %v3528 = vmul.f32 1.0, %v3527
  %v3529 = vrcp.pop %v2583
  %v3530 = vmul.f32 %v2583, %v3529
  %v3531 = vsub.f32 1.0, %v3530
  %v3532 = vmul.f32 %v3529, %v3531
  %v3533 = vadd.f32 %v3529, %v3532
  %vm3534 = vweird.f32 %v2583
  %vm3535 = vweird.f32 %v3529
  %vm3536 = vmor %vm3534, %vm3535
  %v3537 = vsel %vm3536, %v3529, %v3533
  %v3538 = vand.u32 2147483647, %v2583
  %vm3539 = vcmp.eq.f32.partialorder %v3538, 8.507059e+37
  %v3540 = vand.u32 %v2583, 2147483648
  %v3541 = vor.u32 1.1754944e-38, %v3540
  %v3542 = vsel %vm3539, %v3541, %v3537
  %v3543 = vmul.f32 1.0, %v3542
  %v3544 = vmul.f32 %v2264, %v2598
  %v3545 = vmul.f32 %v2265, %v2613
  %v3546 = vmul.f32 %v2266, %v2628
  %v3547 = vmul.f32 %v2267, %v2643
  %v3548 = vmul.f32 %v2268, %v2658
  %v3549 = vmul.f32 %v2269, %v2673
  %v3550 = vmul.f32 %v2270, %v2688
  %v3551 = vmul.f32 %v2271, %v2703
  %v3552 = vmul.f32 %v2272, %v2718
  %v3553 = vmul.f32 %v2273, %v2733
  %v3554 = vmul.f32 %v2274, %v2748
  %v3555 = vmul.f32 %v2275, %v2763
  %v3556 = vmul.f32 %v2276, %v2778
  %v3557 = vmul.f32 %v2277, %v2793
  %v3558 = vmul.f32 %v2278, %v2808
  %v3559 = vmul.f32 %v2279, %v2823
  %v3560 = vmul.f32 %v2280, %v2838
  %v3561 = vmul.f32 %v2281, %v2853
  %v3562 = vmul.f32 %v2282, %v2868
  %v3563 = vmul.f32 %v2283, %v2883
  %v3564 = vmul.f32 %v2284, %v2898
  %v3565 = vmul.f32 %v2285, %v2913
  %v3566 = vmul.f32 %v2286, %v2928
  %v3567 = vmul.f32 %v2287, %v2943
  %v3568 = vmul.f32 %v2288, %v2958
  %v3569 = vmul.f32 %v2289, %v2973
  %v3570 = vmul.f32 %v2290, %v2988
  %v3571 = vmul.f32 %v2291, %v3003
  %v3572 = vmul.f32 %v2292, %v3018
  %v3573 = vmul.f32 %v2293, %v3033
  %v3574 = vmul.f32 %v2294, %v3048
  %v3575 = vmul.f32 %v2295, %v3063
  %v3576 = vmul.f32 %v2296, %v3078
  %v3577 = vmul.f32 %v2297, %v3093
  %v3578 = vmul.f32 %v2298, %v3108
  %v3579 = vmul.f32 %v2299, %v3123
  %v3580 = vmul.f32 %v2300, %v3138
  %v3581 = vmul.f32 %v2301, %v3153
  %v3582 = vmul.f32 %v2302, %v3168
  %v3583 = vmul.f32 %v2303, %v3183
  %v3584 = vmul.f32 %v2304, %v3198
  %v3585 = vmul.f32 %v2305, %v3213
  %v3586 = vmul.f32 %v2306, %v3228
  %v3587 = vmul.f32 %v2307, %v3243
  %v3588 = vmul.f32 %v2308, %v3258
  %v3589 = vmul.f32 %v2309, %v3273
  %v3590 = vmul.f32 %v2310, %v3288
  %v3591 = vmul.f32 %v2311, %v3303
  %v3592 = vmul.f32 %v2312, %v3318
  %v3593 = vmul.f32 %v2313, %v3333
  %v3594 = vmul.f32 %v2314, %v3348
  %v3595 = vmul.f32 %v2315, %v3363
  %v3596 = vmul.f32 %v2316, %v3378
  %v3597 = vmul.f32 %v2317, %v3393
  %v3598 = vmul.f32 %v2318, %v3408
  %v3599 = vmul.f32 %v2319, %v3423
  %v3600 = vmul.f32 %v2320, %v3438
  %v3601 = vmul.f32 %v2321, %v3453
  %v3602 = vmul.f32 %v2322, %v3468
  %v3603 = vmul.f32 %v2323, %v3483
  %v3604 = vmul.f32 %v2324, %v3498
  %v3605 = vmul.f32 %v2325, %v3513
  %v3606 = vmul.f32 %v2326, %v3528
  %v3607 = vmul.f32 %v2327, %v3543
  %3608 = vst.msk [vmem:[%s8] sm:$0xff] %vm1914, %v3544
  %3609 = vst.msk [vmem:[%s8 + $0x8] sm:$0xff] %vm1914, %v3545
  %3610 = vst.msk [vmem:[%s8 + $0x10] sm:$0xff] %vm1914, %v3546
  %3611 = vst.msk [vmem:[%s8 + $0x18] sm:$0xff] %vm1914, %v3547
  %3612 = vst.msk [vmem:[%s8 + $0x20] sm:$0xff] %vm1914, %v3548
  %3613 = vst.msk [vmem:[%s8 + $0x28] sm:$0xff] %vm1914, %v3549
  %3614 = vst.msk [vmem:[%s8 + $0x30] sm:$0xff] %vm1914, %v3550
  %3615 = vst.msk [vmem:[%s8 + $0x38] sm:$0xff] %vm1914, %v3551
  %3616 = vst.msk [vmem:[%s8 + $0x40] sm:$0xff] %vm1914, %v3552
  %3617 = vst.msk [vmem:[%s8 + $0x48] sm:$0xff] %vm1914, %v3553
  %3618 = vst.msk [vmem:[%s8 + $0x50] sm:$0xff] %vm1914, %v3554
  %3619 = vst.msk [vmem:[%s8 + $0x58] sm:$0xff] %vm1914, %v3555
  %3620 = vst.msk [vmem:[%s8 + $0x60] sm:$0xff] %vm1914, %v3556
  %3621 = vst.msk [vmem:[%s8 + $0x68] sm:$0xff] %vm1914, %v3557
  %3622 = vst.msk [vmem:[%s8 + $0x70] sm:$0xff] %vm1914, %v3558
  %3623 = vst.msk [vmem:[%s8 + $0x78] sm:$0xff] %vm1914, %v3559
  %3624 = vst.msk [vmem:[%s8 + $0x80] sm:$0xff] %vm1914, %v3560
  %3625 = vst.msk [vmem:[%s8 + $0x88] sm:$0xff] %vm1914, %v3561
  %3626 = vst.msk [vmem:[%s8 + $0x90] sm:$0xff] %vm1914, %v3562
  %3627 = vst.msk [vmem:[%s8 + $0x98] sm:$0xff] %vm1914, %v3563
  %3628 = vst.msk [vmem:[%s8 + $0xa0] sm:$0xff] %vm1914, %v3564
  %3629 = vst.msk [vmem:[%s8 + $0xa8] sm:$0xff] %vm1914, %v3565
  %3630 = vst.msk [vmem:[%s8 + $0xb0] sm:$0xff] %vm1914, %v3566
  %3631 = vst.msk [vmem:[%s8 + $0xb8] sm:$0xff] %vm1914, %v3567
  %3632 = vst.msk [vmem:[%s8 + $0xc0] sm:$0xff] %vm1914, %v3568
  %3633 = vst.msk [vmem:[%s8 + $0xc8] sm:$0xff] %vm1914, %v3569
  %3634 = vst.msk [vmem:[%s8 + $0xd0] sm:$0xff] %vm1914, %v3570
  %3635 = vst.msk [vmem:[%s8 + $0xd8] sm:$0xff] %vm1914, %v3571
  %3636 = vst.msk [vmem:[%s8 + $0xe0] sm:$0xff] %vm1914, %v3572
  %3637 = vst.msk [vmem:[%s8 + $0xe8] sm:$0xff] %vm1914, %v3573
  %3638 = vst.msk [vmem:[%s8 + $0xf0] sm:$0xff] %vm1914, %v3574
  %3639 = vst.msk [vmem:[%s8 + $0xf8] sm:$0xff] %vm1914, %v3575
  %3640 = vst.msk [vmem:[%s8 + $0x100] sm:$0xff] %vm1914, %v3576
  %3641 = vst.msk [vmem:[%s8 + $0x108] sm:$0xff] %vm1914, %v3577
  %3642 = vst.msk [vmem:[%s8 + $0x110] sm:$0xff] %vm1914, %v3578
  %3643 = vst.msk [vmem:[%s8 + $0x118] sm:$0xff] %vm1914, %v3579
  %3644 = vst.msk [vmem:[%s8 + $0x120] sm:$0xff] %vm1914, %v3580
  %3645 = vst.msk [vmem:[%s8 + $0x128] sm:$0xff] %vm1914, %v3581
  %3646 = vst.msk [vmem:[%s8 + $0x130] sm:$0xff] %vm1914, %v3582
  %3647 = vst.msk [vmem:[%s8 + $0x138] sm:$0xff] %vm1914, %v3583
  %3648 = vst.msk [vmem:[%s8 + $0x140] sm:$0xff] %vm1914, %v3584
  %3649 = vst.msk [vmem:[%s8 + $0x148] sm:$0xff] %vm1914, %v3585
  %3650 = vst.msk [vmem:[%s8 + $0x150] sm:$0xff] %vm1914, %v3586
  %3651 = vst.msk [vmem:[%s8 + $0x158] sm:$0xff] %vm1914, %v3587
  %3652 = vst.msk [vmem:[%s8 + $0x160] sm:$0xff] %vm1914, %v3588
  %3653 = vst.msk [vmem:[%s8 + $0x168] sm:$0xff] %vm1914, %v3589
  %3654 = vst.msk [vmem:[%s8 + $0x170] sm:$0xff] %vm1914, %v3590
  %3655 = vst.msk [vmem:[%s8 + $0x178] sm:$0xff] %vm1914, %v3591
  %3656 = vst.msk [vmem:[%s8 + $0x180] sm:$0xff] %vm1914, %v3592
  %3657 = vst.msk [vmem:[%s8 + $0x188] sm:$0xff] %vm1914, %v3593
  %3658 = vst.msk [vmem:[%s8 + $0x190] sm:$0xff] %vm1914, %v3594
  %3659 = vst.msk [vmem:[%s8 + $0x198] sm:$0xff] %vm1914, %v3595
  %3660 = vst.msk [vmem:[%s8 + $0x1a0] sm:$0xff] %vm1914, %v3596
  %3661 = vst.msk [vmem:[%s8 + $0x1a8] sm:$0xff] %vm1914, %v3597
  %3662 = vst.msk [vmem:[%s8 + $0x1b0] sm:$0xff] %vm1914, %v3598
  %3663 = vst.msk [vmem:[%s8 + $0x1b8] sm:$0xff] %vm1914, %v3599
  %3664 = vst.msk [vmem:[%s8 + $0x1c0] sm:$0xff] %vm1914, %v3600
  %3665 = vst.msk [vmem:[%s8 + $0x1c8] sm:$0xff] %vm1914, %v3601
  %3666 = vst.msk [vmem:[%s8 + $0x1d0] sm:$0xff] %vm1914, %v3602
  %3667 = vst.msk [vmem:[%s8 + $0x1d8] sm:$0xff] %vm1914, %v3603
  %3668 = vst.msk [vmem:[%s8 + $0x1e0] sm:$0xff] %vm1914, %v3604
  %3669 = vst.msk [vmem:[%s8 + $0x1e8] sm:$0xff] %vm1914, %v3605
  %3670 = vst.msk [vmem:[%s8 + $0x1f0] sm:$0xff] %vm1914, %v3606
  %3671 = vst.msk [vmem:[%s8 + $0x1f8] sm:$0xff] %vm1914, %v3607
  // Predicated region
  $region30: #{tpu_custom_call.1} parent=0 // pred_check
    _
  $region31: #{tpu_custom_call.1} parent=0 // pred_check_branch
    %3673 = sbr.rel (0) target = $region33
  $region32: #{tpu_custom_call.1} parent=0 // pred_region
    _
  $region33: #{tpu_custom_call.1} parent=0 // pred_fallthru
    _
  // Predicated region
  $region34: #{tpu_custom_call.1} parent=0 // pred_check
    _
  $region35: #{tpu_custom_call.1} parent=0 // pred_check_branch
    %3675 = sbr.rel (0) target = $region37
  $region36: #{tpu_custom_call.1} parent=0 // pred_region
    _
  $region37: #{tpu_custom_call.1} parent=0 // pred_fallthru
    _
  // Predicated region
  $region38: #{tpu_custom_call.1} parent=0 // pred_check
    _
  $region39: #{tpu_custom_call.1} parent=0 // pred_check_branch
    %3677 = sbr.rel (0) target = $region41
  $region40: #{tpu_custom_call.1} parent=0 // pred_region
    _
  $region41: #{tpu_custom_call.1} parent=0 // pred_fallthru
    _
  // Predicated region
  $region42: #{tpu_custom_call.1} parent=0 // pred_check
    _
  $region43: #{tpu_custom_call.1} parent=0 // pred_check_branch
    %3679 = sbr.rel (0) target = $region45
  $region44: #{tpu_custom_call.1} parent=0 // pred_region
    _
  $region45: #{tpu_custom_call.1} parent=0 // pred_fallthru
    _

</llo_original>
